<compile_context>
chip_gen: v6e
topology: v6e:2x2x1
jax: 0.10.0
libtpu: 0.0.40
codegen_flags: <defaults>
</compile_context>

<pallas_src>
import functools

import jax
import jax.numpy as jnp
from jax.experimental import pallas as pl
from jax.experimental.pallas import tpu as pltpu


# Union of the 4 branch kernels' spatial offsets (di, dj): a 9-tap "cross".
# Order == lane order of the (m, 9*C) tap slab == row order of the packed w1.
OFFSETS = ((0, -2), (0, -1), (0, 0), (0, 1), (0, 2),
           (-2, 0), (-1, 0), (1, 0), (2, 0))

# (kh, kw, ph, pw) for branch1..branch4 of BaseInception2 (order == concat order)
BRANCH_CFGS = ((1, 3, 0, 1), (3, 1, 1, 0), (1, 5, 0, 2), (5, 1, 2, 0))


# ----------------------------------------------------------------------------
# The whole-network Pallas kernel (one grid step == one full image)
# ----------------------------------------------------------------------------
def _cnn10_kernel(x_ref, w0_ref, b0_ref, w1_ref, s1_ref, t1_ref,
                  w2_ref, b2_ref, w17_ref, b17_ref, out_ref, act_ref,
                  *, H, W):
    """act_ref: zero-haloed f32 VMEM scratch, shape (2W + H*W + 2W, C).

    Rows [2W, 2W + H*W) hold the current activation (one image, NHWC
    flattened); the 2W rows above/below stay zero and give the vertical conv
    padding for free.  All per-block weights are whole-tensor VMEM residents,
    indexed dynamically inside the fori_loop.
    """
    C = act_ref.shape[-1]
    Cin0 = x_ref.shape[-1]
    n_blocks = w1_ref.shape[0]
    m = H * W
    pad = 2 * W

    # ---- block0: 1x1 conv + ReLU.  Cin0 is tiny, so this is a rank-1 VPU
    # broadcast instead of a wasteful K=1 MXU matmul.
    act_ref[...] = jnp.zeros_like(act_ref)            # zero the halo rows once
    if Cin0 <= 4:
        y0 = b0_ref[...]
        for k in range(Cin0):
            y0 = y0 + x_ref[:, k:k + 1] * w0_ref[k:k + 1, :]
    else:
        y0 = jnp.dot(x_ref[...], w0_ref[...],
                     preferred_element_type=jnp.float32) + b0_ref[...]
    act_ref[pad:pad + m, :] = jnp.maximum(y0, 0.0)

    # ---- Hoisted per-image constants: w-boundary masks for horizontal taps
    # ((m, 1), not (m, C)) -- built once, reused by all 16 blocks.
    col = jax.lax.broadcasted_iota(jnp.int32, (m, 1), 0) % W
    hmask = {dj: jnp.logical_and(col + dj >= 0, col + dj < W)
             for dj in (-2, -1, 1, 2)}

    # ---- 16 inception blocks: sequential in-kernel loop, resident weights.
    def block_body(blk, carry):
        # Build the 9-tap slab (m, 9C) so the 4 branches become ONE K=9*C MXU
        # matmul (instead of 9 K=C matmuls + a long-lived f32 accumulator).
        taps = []
        for (di, dj) in OFFSETS:
            start = pad + di * W + dj
            tap = act_ref[start:start + m, :]          # (m, C) f32
            if dj != 0:                                # mask row-boundary spill
                tap = jnp.where(hmask[dj], tap, 0.0)
            taps.append(tap)
        slab = jnp.concatenate(taps, axis=-1).astype(jnp.bfloat16)   # (m, 9C)

        # Fused 4-branch conv: one MXU matmul, K = 9*C, f32 accumulation.
        acc = jnp.dot(slab, w1_ref[blk],
                      preferred_element_type=jnp.float32)            # (m, 4C)
        # Folded conv-bias + BatchNorm(running stats) affine + ReLU, in f32
        # (v5e has no bf16 VPU datapath -> f32 epilogue is the fast path).
        h = jnp.maximum(acc * s1_ref[blk] + t1_ref[blk], 0.0)
        # Fused 1x1 reduce conv (4C -> C) + bias + ReLU.
        y = jnp.dot(h.astype(jnp.bfloat16), w2_ref[blk],
                    preferred_element_type=jnp.float32)              # (m, C)
        act_ref[pad:pad + m, :] = jnp.maximum(y + b2_ref[blk], 0.0)
        return carry

    jax.lax.fori_loop(0, n_blocks, block_body, 0)

    # ---- block17: 1x1 conv (C -> Cout) + ReLU, lane-dense (Cout_pad, m)
    # output (last dim is a multiple of 128 -> unmasked vst + dense DMA).
    y_last = act_ref[pad:pad + m, :].astype(jnp.bfloat16)            # (m, C)
    z = jax.lax.dot_general(
        w17_ref[...], y_last,
        dimension_numbers=(((1,), (1,)), ((), ())),   # (o,c) x (m,c) -> (o,m)
        preferred_element_type=jnp.float32)
    out_ref[...] = jnp.maximum(z + b17_ref[...], 0.0)


# ----------------------------------------------------------------------------
# Wrapper: one pallas_call for the full forward pass
# ----------------------------------------------------------------------------
def cnn10_forward(packed, x_nchw):
    N, Cin0, H, W = x_nchw.shape
    C = packed["w2"].shape[-1]
    C4 = packed["w2"].shape[1]
    nC9 = packed["w1"].shape[1]          # 9 * C
    n_blocks = packed["w1"].shape[0]
    Cout = packed["w17"].shape[0]
    m = H * W
    assert W % 8 == 0 and m % 8 == 0, "H*W and W must be multiples of 8"

    # Pad Cout to a full sublane group so the final matmul / output block is
    # nicely shaped; padded rows are zero and sliced off below.
    Cout_p = max(8, ((Cout + 7) // 8) * 8)
    w17p = jnp.zeros((Cout_p, C), packed["w17"].dtype).at[:Cout].set(packed["w17"])
    b17p = jnp.zeros((Cout_p, 1), jnp.float32).at[:Cout].set(packed["b17"])

    x_flat = jnp.transpose(x_nchw, (0, 2, 3, 1)).reshape(N * m, Cin0)
    kernel = functools.partial(_cnn10_kernel, H=H, W=W)

    out_flat = pl.pallas_call(
        kernel,
        out_shape=jax.ShapeDtypeStruct((N * Cout_p, m), jnp.float32),
        grid_spec=pltpu.PrefetchScalarGridSpec(
            num_scalar_prefetch=0,
            grid=(N,),                                   # one image per step
            in_specs=[
                pl.BlockSpec((m, Cin0), lambda n: (n, 0)),                 # x
                # Everything below is a whole-tensor, VMEM-resident block
                # (constant index_map): DMA'd once and reused for all images
                # and all 16 blocks, instead of being re-streamed per block.
                pl.BlockSpec((Cin0, C), lambda n: (0, 0)),                 # w0
                pl.BlockSpec((1, C), lambda n: (0, 0)),                    # b0
                pl.BlockSpec((n_blocks, nC9, C4), lambda n: (0, 0, 0)),    # w1
                pl.BlockSpec((n_blocks, 1, C4), lambda n: (0, 0, 0)),      # s1
                pl.BlockSpec((n_blocks, 1, C4), lambda n: (0, 0, 0)),      # t1
                pl.BlockSpec((n_blocks, C4, C), lambda n: (0, 0, 0)),      # w2
                pl.BlockSpec((n_blocks, 1, C), lambda n: (0, 0, 0)),       # b2
                pl.BlockSpec((Cout_p, C), lambda n: (0, 0)),               # w17
                pl.BlockSpec((Cout_p, 1), lambda n: (0, 0)),               # b17
            ],
            out_specs=pl.BlockSpec((Cout_p, m), lambda n: (n, 0)),
            scratch_shapes=[pltpu.VMEM((m + 4 * W, C), jnp.float32)],
        ),
        compiler_params=pltpu.CompilerParams(
            # Image axis shards across TensorCores on v7x (keep N even there;
            # for N == 1 split H with a 2-row halo instead).  VMEM budget:
            # resident weights ~1.3 MiB at C=32 (x2 for double buffers) plus a
            # ~160 KiB activation scratch -- far below every generation's
            # scoped limit.  Re-derive (and fall back to per-block streaming /
            # bf16 scratch / row tiling) if C or H*W grow, esp. on v7x (64 MiB).
            dimension_semantics=("parallel",),
        ),
    )(x_flat, packed["w0"], packed["b0"], packed["w1"], packed["s1"],
      packed["t1"], packed["w2"], packed["b2"], w17p, b17p)

    out = out_flat.reshape(N, Cout_p, m)[:, :Cout, :]
    return out.reshape(N, Cout, H, W)


# ----------------------------------------------------------------------------
# Parameter construction (deterministic, PyTorch-default-style init) + packing
# ----------------------------------------------------------------------------
def init_conv(key, cout, cin, kh, kw):
    k1, k2 = jax.random.split(key)
    fan_in = cin * kh * kw
    bound = 1.0 / (fan_in ** 0.5)
    w = jax.random.uniform(k1, (cout, cin, kh, kw), jnp.float32, -bound, bound)
    b = jax.random.uniform(k2, (cout,), jnp.float32, -bound, bound)
    return w, b


def fold_bn(bias, cout, eps=1e-5):
    # BN init: gamma=1, beta=0, running_mean=0, running_var=1 (eval mode).
    gamma = jnp.ones((cout,), jnp.float32)
    beta = jnp.zeros((cout,), jnp.float32)
    mean = jnp.zeros((cout,), jnp.float32)
    var = jnp.ones((cout,), jnp.float32)
    scale = gamma / jnp.sqrt(var + eps)
    shift = beta + scale * (bias - mean)
    return scale, shift


def build_raw_params(key, num_channels=1, out_channel_list=32):
    C = out_channel_list
    raw = {}
    keys = iter(jax.random.split(key, 200))
    raw["block0"] = init_conv(next(keys), C, num_channels, 1, 1)
    for blk in range(1, 17):
        branches = []
        for (kh, kw, ph, pw) in BRANCH_CFGS:
            w, b = init_conv(next(keys), C, C, kh, kw)
            scale, shift = fold_bn(b, C)
            branches.append((w, scale, shift, kh, kw, ph, pw))
        raw[f"block{blk}"] = branches
        raw[f"block{blk}_2"] = init_conv(next(keys), C, 4 * C, 1, 1)
    raw["block17"] = init_conv(next(keys), num_channels, C, 1, 1)
    return raw


def pack_params(raw, C):
    """Pack torch-layout params into the kernel's VMEM-resident tensors."""
    off_idx = {o: i for i, o in enumerate(OFFSETS)}
    n_taps = len(OFFSETS)

    w0, b0 = raw["block0"]
    packed = {
        "w0": w0[:, :, 0, 0].T,                 # (Cin0, C)  f32
        "b0": b0.reshape(1, C),                 # (1, C)     f32
    }

    w1s, s1s, t1s, w2s, b2s = [], [], [], [], []
    for blk in range(1, 17):
        w1 = jnp.zeros((n_taps, C, 4 * C), jnp.float32)
        s1 = jnp.zeros((4 * C,), jnp.float32)
        t1 = jnp.zeros((4 * C,), jnp.float32)
        for b, (w, scale, shift, kh, kw, ph, pw) in enumerate(raw[f"block{blk}"]):
            for ki in range(kh):
                for kj in range(kw):
                    t = off_idx[(ki - ph, kj - pw)]
                    w1 = w1.at[t, :, b * C:(b + 1) * C].set(w[:, :, ki, kj].T)
            s1 = s1.at[b * C:(b + 1) * C].set(scale)
            t1 = t1.at[b * C:(b + 1) * C].set(shift)
        w2, b2 = raw[f"block{blk}_2"]
        # (9, C, 4C) -> (9*C, 4C): row index t*C + cin matches the lane index
        # of the in-kernel tap slab (concat order == OFFSETS order).
        w1s.append(w1.reshape(n_taps * C, 4 * C))
        s1s.append(s1.reshape(1, 4 * C))
        t1s.append(t1.reshape(1, 4 * C))
        w2s.append(w2[:, :, 0, 0].T)            # (4C, C)
        b2s.append(b2.reshape(1, C))

    packed["w1"] = jnp.stack(w1s).astype(jnp.bfloat16)   # (16, 9C, 4C)
    packed["s1"] = jnp.stack(s1s)                        # (16, 1, 4C) f32
    packed["t1"] = jnp.stack(t1s)                        # (16, 1, 4C) f32
    packed["w2"] = jnp.stack(w2s).astype(jnp.bfloat16)   # (16, 4C, C)
    packed["b2"] = jnp.stack(b2s)                        # (16, 1, C)  f32

    w17, b17 = raw["block17"]
    packed["w17"] = w17[:, :, 0, 0].astype(jnp.bfloat16)  # (Cout, C) bf16
    packed["b17"] = b17.reshape(-1, 1)                    # (Cout, 1) f32
    return packed


# ----------------------------------------------------------------------------
# Plain-JAX reference (same eval-mode semantics) for validation
# ----------------------------------------------------------------------------
def reference_forward(raw, x_nchw):
    def conv(x, w, ph, pw):
        return jax.lax.conv_general_dilated(
            x, w, window_strides=(1, 1), padding=((ph, ph), (pw, pw)),
            dimension_numbers=("NCHW", "OIHW", "NCHW"))

    w0, b0 = raw["block0"]
    out = jax.nn.relu(conv(x_nchw, w0, 0, 0) + b0[None, :, None, None])
    for blk in range(1, 17):
        outs = []
        for (w, scale, shift, kh, kw, ph, pw) in raw[f"block{blk}"]:
            y = (conv(out, w, ph, pw) * scale[None, :, None, None]
                 + shift[None, :, None, None])
            outs.append(jax.nn.relu(y))
        cat = jnp.concatenate(outs, axis=1)
        w2, b2 = raw[f"block{blk}_2"]
        out = jax.nn.relu(conv(cat, w2, 0, 0) + b2[None, :, None, None])
    w17, b17 = raw["block17"]
    return jax.nn.relu(conv(out, w17, 0, 0) + b17[None, :, None, None])


if __name__ == "__main__":
    key = jax.random.PRNGKey(0)
    kp, kx = jax.random.split(key)

    NUM_CHANNELS = 1
    OUT_CHANNELS = 32        # out_channel_list (small test size; 4*C = 128 lanes)
    N, H, W = 2, 16, 16

    raw = build_raw_params(kp, NUM_CHANNELS, OUT_CHANNELS)
    packed = pack_params(raw, OUT_CHANNELS)
    x = jax.random.normal(kx, (N, NUM_CHANNELS, H, W), jnp.float32)

    fwd = jax.jit(cnn10_forward)
    y = fwd(packed, x)
    jax.block_until_ready(y)

    assert y.shape == (N, NUM_CHANNELS, H, W), y.shape
    assert bool(jnp.all(jnp.isfinite(y)))

    # Cross-check against a plain-JAX/XLA reference of the same eval-mode
    # forward; loose tolerance because the kernel uses bf16 matmul operands.
    y_ref = jax.jit(lambda xx: reference_forward(raw, xx))(x)
    err = float(jnp.max(jnp.abs(y - y_ref)))
    assert err < 0.3, f"kernel/reference mismatch: max abs diff = {err}"

    print("KERNEL_OK")
</pallas_src>

<mosaic_0001>
module attributes {stable_mosaic.version = 11 : i64} {
  func.func @_cnn10_kernel(%arg0: i32, %arg1: memref<256x1xf32, #tpu.memory_space<vmem>>, %arg2: memref<1x32xf32, #tpu.memory_space<vmem>>, %arg3: memref<1x32xf32, #tpu.memory_space<vmem>>, %arg4: memref<16x288x128xbf16, #tpu.memory_space<vmem>>, %arg5: memref<16x1x128xf32, #tpu.memory_space<vmem>>, %arg6: memref<16x1x128xf32, #tpu.memory_space<vmem>>, %arg7: memref<16x128x32xbf16, #tpu.memory_space<vmem>>, %arg8: memref<16x1x32xf32, #tpu.memory_space<vmem>>, %arg9: memref<8x32xbf16, #tpu.memory_space<vmem>>, %arg10: memref<8x1xf32, #tpu.memory_space<vmem>>, %arg11: memref<8x256xf32, #tpu.memory_space<vmem>>, %arg12: memref<320x32xf32, #tpu.memory_space<vmem>>) attributes {dimension_semantics = [#tpu.dimension_semantics<parallel>], iteration_bounds = array<i64: 2>, scalar_prefetch = 0 : i64, scratch_operands = 1 : i64, tpu.core_type = #tpu.core_type<tc>, window_params = [{transform_indices = @transform_0, window_bounds = array<i64: 256, 1>}, {pipeline_mode = #tpu.pipeline_mode<synchronous>, transform_indices = @transform_1, window_bounds = array<i64: 1, 32>}, {pipeline_mode = #tpu.pipeline_mode<synchronous>, transform_indices = @transform_2, window_bounds = array<i64: 1, 32>}, {pipeline_mode = #tpu.pipeline_mode<synchronous>, transform_indices = @transform_3, window_bounds = array<i64: 16, 288, 128>}, {pipeline_mode = #tpu.pipeline_mode<synchronous>, transform_indices = @transform_4, window_bounds = array<i64: 16, 1, 128>}, {pipeline_mode = #tpu.pipeline_mode<synchronous>, transform_indices = @transform_5, window_bounds = array<i64: 16, 1, 128>}, {pipeline_mode = #tpu.pipeline_mode<synchronous>, transform_indices = @transform_6, window_bounds = array<i64: 16, 128, 32>}, {pipeline_mode = #tpu.pipeline_mode<synchronous>, transform_indices = @transform_7, window_bounds = array<i64: 16, 1, 32>}, {pipeline_mode = #tpu.pipeline_mode<synchronous>, transform_indices = @transform_8, window_bounds = array<i64: 8, 32>}, {pipeline_mode = #tpu.pipeline_mode<synchronous>, transform_indices = @transform_9, window_bounds = array<i64: 8, 1>}, {transform_indices = @transform_10, window_bounds = array<i64: 8, 256>}]} {
    %cst = arith.constant 0.000000e+00 : f32
    %0 = vector.broadcast %cst : f32 to vector<320x32xf32>
    %c0 = arith.constant 0 : index
    %c0_0 = arith.constant 0 : index
    %1 = vector.load %arg12[%c0, %c0_0] : memref<320x32xf32, #tpu.memory_space<vmem>>, vector<320x32xf32>
    tpu.vector_store %arg12[%c0, %c0_0], %0 {strides = array<i32>} : memref<320x32xf32, #tpu.memory_space<vmem>>, vector<320x32xf32>,
    %c0_1 = arith.constant 0 : index
    %c0_2 = arith.constant 0 : index
    %2 = vector.load %arg3[%c0_1, %c0_2] : memref<1x32xf32, #tpu.memory_space<vmem>>, vector<1x32xf32>
    %c0_3 = arith.constant 0 : index
    %c0_4 = arith.constant 0 : index
    %3 = vector.load %arg1[%c0_3, %c0_4] : memref<256x1xf32, #tpu.memory_space<vmem>>, vector<256x1xf32>
    %c0_5 = arith.constant 0 : index
    %c0_6 = arith.constant 0 : index
    %4 = vector.load %arg2[%c0_5, %c0_6] : memref<1x32xf32, #tpu.memory_space<vmem>>, vector<1x32xf32>
    %5 = vector.broadcast %3 : vector<256x1xf32> to vector<256x32xf32>
    %6 = vector.broadcast %4 : vector<1x32xf32> to vector<256x32xf32>
    %7 = arith.mulf %5, %6 : vector<256x32xf32>
    %8 = vector.broadcast %2 : vector<1x32xf32> to vector<256x32xf32>
    %9 = arith.addf %8, %7 : vector<256x32xf32>
    %cst_7 = arith.constant 0.000000e+00 : f32
    %10 = vector.broadcast %cst_7 : f32 to vector<256x32xf32>
    %11 = arith.maximumf %9, %10 : vector<256x32xf32>
    %c32 = arith.constant 32 : index
    %c0_8 = arith.constant 0 : index
    %12 = vector.load %arg12[%c32, %c0_8] : memref<320x32xf32, #tpu.memory_space<vmem>>, vector<256x32xf32>
    tpu.vector_store %arg12[%c32, %c0_8], %11 {strides = array<i32>} : memref<320x32xf32, #tpu.memory_space<vmem>>, vector<256x32xf32>,
    %13 = tpu.iota {dimensions = array<i32: 0>} : vector<256x1xi32>
    %c16_i32 = arith.constant 16 : i32
    %c0_i32 = arith.constant 0 : i32
    %14 = arith.cmpi eq, %c16_i32, %c0_i32 : i32
    %c1_i32 = arith.constant 1 : i32
    %15 = arith.select %14, %c1_i32, %c16_i32 : i32
    %16 = vector.broadcast %15 : i32 to vector<256x1xi32>
    %17 = arith.remsi %13, %16 : vector<256x1xi32>
    %c0_i32_9 = arith.constant 0 : i32
    %18 = vector.broadcast %c0_i32_9 : i32 to vector<256x1xi32>
    %19 = arith.cmpi ne, %17, %18 : vector<256x1xi32>
    %c0_i32_10 = arith.constant 0 : i32
    %20 = vector.broadcast %c0_i32_10 : i32 to vector<256x1xi32>
    %21 = arith.cmpi slt, %17, %20 : vector<256x1xi32>
    %c0_i32_11 = arith.constant 0 : i32
    %22 = arith.cmpi slt, %15, %c0_i32_11 : i32
    %23 = vector.broadcast %22 : i1 to vector<256x1xi1>
    %24 = vector.broadcast %23 : vector<256x1xi1> to vector<256x1xi1>
    %25 = arith.xori %21, %24 : vector<256x1xi1>
    %26 = arith.andi %25, %19 : vector<256x1xi1>
    %27 = vector.broadcast %15 : i32 to vector<256x1xi32>
    %28 = arith.addi %17, %27 : vector<256x1xi32>
    %29 = arith.select %26, %28, %17 : vector<256x1xi1>, vector<256x1xi32>
    %c-2_i32 = arith.constant -2 : i32
    %30 = vector.broadcast %c-2_i32 : i32 to vector<256x1xi32>
    %31 = arith.addi %29, %30 : vector<256x1xi32>
    %c0_i32_12 = arith.constant 0 : i32
    %32 = vector.broadcast %c0_i32_12 : i32 to vector<256x1xi32>
    %33 = arith.cmpi sge, %31, %32 : vector<256x1xi32>
    %c-2_i32_13 = arith.constant -2 : i32
    %34 = vector.broadcast %c-2_i32_13 : i32 to vector<256x1xi32>
    %35 = arith.addi %29, %34 : vector<256x1xi32>
    %c16_i32_14 = arith.constant 16 : i32
    %36 = vector.broadcast %c16_i32_14 : i32 to vector<256x1xi32>
    %37 = arith.cmpi slt, %35, %36 : vector<256x1xi32>
    %38 = arith.andi %33, %37 : vector<256x1xi1>
    %c-1_i32 = arith.constant -1 : i32
    %39 = vector.broadcast %c-1_i32 : i32 to vector<256x1xi32>
    %40 = arith.addi %29, %39 : vector<256x1xi32>
    %c0_i32_15 = arith.constant 0 : i32
    %41 = vector.broadcast %c0_i32_15 : i32 to vector<256x1xi32>
    %42 = arith.cmpi sge, %40, %41 : vector<256x1xi32>
    %c-1_i32_16 = arith.constant -1 : i32
    %43 = vector.broadcast %c-1_i32_16 : i32 to vector<256x1xi32>
    %44 = arith.addi %29, %43 : vector<256x1xi32>
    %c16_i32_17 = arith.constant 16 : i32
    %45 = vector.broadcast %c16_i32_17 : i32 to vector<256x1xi32>
    %46 = arith.cmpi slt, %44, %45 : vector<256x1xi32>
    %47 = arith.andi %42, %46 : vector<256x1xi1>
    %c1_i32_18 = arith.constant 1 : i32
    %48 = vector.broadcast %c1_i32_18 : i32 to vector<256x1xi32>
    %49 = arith.addi %29, %48 : vector<256x1xi32>
    %c0_i32_19 = arith.constant 0 : i32
    %50 = vector.broadcast %c0_i32_19 : i32 to vector<256x1xi32>
    %51 = arith.cmpi sge, %49, %50 : vector<256x1xi32>
    %c1_i32_20 = arith.constant 1 : i32
    %52 = vector.broadcast %c1_i32_20 : i32 to vector<256x1xi32>
    %53 = arith.addi %29, %52 : vector<256x1xi32>
    %c16_i32_21 = arith.constant 16 : i32
    %54 = vector.broadcast %c16_i32_21 : i32 to vector<256x1xi32>
    %55 = arith.cmpi slt, %53, %54 : vector<256x1xi32>
    %56 = arith.andi %51, %55 : vector<256x1xi1>
    %c2_i32 = arith.constant 2 : i32
    %57 = vector.broadcast %c2_i32 : i32 to vector<256x1xi32>
    %58 = arith.addi %29, %57 : vector<256x1xi32>
    %c0_i32_22 = arith.constant 0 : i32
    %59 = vector.broadcast %c0_i32_22 : i32 to vector<256x1xi32>
    %60 = arith.cmpi sge, %58, %59 : vector<256x1xi32>
    %c2_i32_23 = arith.constant 2 : i32
    %61 = vector.broadcast %c2_i32_23 : i32 to vector<256x1xi32>
    %62 = arith.addi %29, %61 : vector<256x1xi32>
    %c16_i32_24 = arith.constant 16 : i32
    %63 = vector.broadcast %c16_i32_24 : i32 to vector<256x1xi32>
    %64 = arith.cmpi slt, %62, %63 : vector<256x1xi32>
    %65 = arith.andi %60, %64 : vector<256x1xi1>
    %c0_i32_25 = arith.constant 0 : i32
    %c16_i32_26 = arith.constant 16 : i32
    %66 = arith.addi %c0_i32_25, %c16_i32_26 : i32
    %c1_i32_27 = arith.constant 1 : i32
    scf.for %arg13 = %c0_i32_25 to %66 step %c1_i32_27  : i32 {
      %c30 = arith.constant 30 : index
      %c0_39 = arith.constant 0 : index
      %77 = vector.load %arg12[%c30, %c0_39] : memref<320x32xf32, #tpu.memory_space<vmem>>, vector<256x32xf32>
      %cst_40 = arith.constant 0.000000e+00 : f32
      %78 = vector.shape_cast %38 : vector<256x1xi1> to vector<256x1xi1>
      %79 = vector.broadcast %78 : vector<256x1xi1> to vector<256x32xi1>
      %80 = vector.broadcast %cst_40 : f32 to vector<256x32xf32>
      %81 = arith.select %79, %77, %80 : vector<256x32xi1>, vector<256x32xf32>
      %c31 = arith.constant 31 : index
      %c0_41 = arith.constant 0 : index
      %82 = vector.load %arg12[%c31, %c0_41] : memref<320x32xf32, #tpu.memory_space<vmem>>, vector<256x32xf32>
      %cst_42 = arith.constant 0.000000e+00 : f32
      %83 = vector.shape_cast %47 : vector<256x1xi1> to vector<256x1xi1>
      %84 = vector.broadcast %83 : vector<256x1xi1> to vector<256x32xi1>
      %85 = vector.broadcast %cst_42 : f32 to vector<256x32xf32>
      %86 = arith.select %84, %82, %85 : vector<256x32xi1>, vector<256x32xf32>
      %c32_43 = arith.constant 32 : index
      %c0_44 = arith.constant 0 : index
      %87 = vector.load %arg12[%c32_43, %c0_44] : memref<320x32xf32, #tpu.memory_space<vmem>>, vector<256x32xf32>
      %c33 = arith.constant 33 : index
      %c0_45 = arith.constant 0 : index
      %88 = vector.load %arg12[%c33, %c0_45] : memref<320x32xf32, #tpu.memory_space<vmem>>, vector<256x32xf32>
      %cst_46 = arith.constant 0.000000e+00 : f32
      %89 = vector.shape_cast %56 : vector<256x1xi1> to vector<256x1xi1>
      %90 = vector.broadcast %89 : vector<256x1xi1> to vector<256x32xi1>
      %91 = vector.broadcast %cst_46 : f32 to vector<256x32xf32>
      %92 = arith.select %90, %88, %91 : vector<256x32xi1>, vector<256x32xf32>
      %c34 = arith.constant 34 : index
      %c0_47 = arith.constant 0 : index
      %93 = vector.load %arg12[%c34, %c0_47] : memref<320x32xf32, #tpu.memory_space<vmem>>, vector<256x32xf32>
      %cst_48 = arith.constant 0.000000e+00 : f32
      %94 = vector.shape_cast %65 : vector<256x1xi1> to vector<256x1xi1>
      %95 = vector.broadcast %94 : vector<256x1xi1> to vector<256x32xi1>
      %96 = vector.broadcast %cst_48 : f32 to vector<256x32xf32>
      %97 = arith.select %95, %93, %96 : vector<256x32xi1>, vector<256x32xf32>
      %c0_49 = arith.constant 0 : index
      %c0_50 = arith.constant 0 : index
      %98 = vector.load %arg12[%c0_49, %c0_50] : memref<320x32xf32, #tpu.memory_space<vmem>>, vector<256x32xf32>
      %c16 = arith.constant 16 : index
      %c0_51 = arith.constant 0 : index
      %99 = vector.load %arg12[%c16, %c0_51] : memref<320x32xf32, #tpu.memory_space<vmem>>, vector<256x32xf32>
      %c48 = arith.constant 48 : index
      %c0_52 = arith.constant 0 : index
      %100 = vector.load %arg12[%c48, %c0_52] : memref<320x32xf32, #tpu.memory_space<vmem>>, vector<256x32xf32>
      %c64 = arith.constant 64 : index
      %c0_53 = arith.constant 0 : index
      %101 = vector.load %arg12[%c64, %c0_53] : memref<320x32xf32, #tpu.memory_space<vmem>>, vector<256x32xf32>
      %102 = tpu.concatenate %81, %86, %87, %92, %97, %98, %99, %100, %101 in 1 : vector<256x32xf32>, vector<256x32xf32>, vector<256x32xf32>, vector<256x32xf32>, vector<256x32xf32>, vector<256x32xf32>, vector<256x32xf32>, vector<256x32xf32>, vector<256x32xf32> -> vector<256x288xf32>
      %103 = arith.truncf %102 : vector<256x288xf32> to vector<256x288xbf16>
      %104 = arith.index_cast %arg13 : i32 to index
      %c0_54 = arith.constant 0 : index
      %c0_55 = arith.constant 0 : index
      %105 = vector.load %arg4[%104, %c0_54, %c0_55] : memref<16x288x128xbf16, #tpu.memory_space<vmem>>, vector<1x288x128xbf16>
      %106 = vector.shape_cast %105 : vector<1x288x128xbf16> to vector<288x128xbf16>
      %cst_56 = arith.constant dense<0.000000e+00> : vector<256x128xf32>
      %107 = tpu.matmul %103, %106, %cst_56 {dimension_numbers = #tpu.dot_dimension_numbers<[1], [0], [0], [1], [0, 0, 1, 1], [], []>} : vector<256x288xbf16>, vector<288x128xbf16>, vector<256x128xf32> -> vector<256x128xf32>
      %108 = arith.index_cast %arg13 : i32 to index
      %c0_57 = arith.constant 0 : index
      %c0_58 = arith.constant 0 : index
      %109 = vector.load %arg5[%108, %c0_57, %c0_58] : memref<16x1x128xf32, #tpu.memory_space<vmem>>, vector<1x1x128xf32>
      %110 = vector.shape_cast %109 : vector<1x1x128xf32> to vector<1x128xf32>
      %111 = vector.broadcast %110 : vector<1x128xf32> to vector<256x128xf32>
      %112 = arith.mulf %107, %111 : vector<256x128xf32>
      %113 = arith.index_cast %arg13 : i32 to index
      %c0_59 = arith.constant 0 : index
      %c0_60 = arith.constant 0 : index
      %114 = vector.load %arg6[%113, %c0_59, %c0_60] : memref<16x1x128xf32, #tpu.memory_space<vmem>>, vector<1x1x128xf32>
      %115 = vector.shape_cast %114 : vector<1x1x128xf32> to vector<1x128xf32>
      %116 = vector.broadcast %115 : vector<1x128xf32> to vector<256x128xf32>
      %117 = arith.addf %112, %116 : vector<256x128xf32>
      %cst_61 = arith.constant 0.000000e+00 : f32
      %118 = vector.broadcast %cst_61 : f32 to vector<256x128xf32>
      %119 = arith.maximumf %117, %118 : vector<256x128xf32>
      %120 = arith.truncf %119 : vector<256x128xf32> to vector<256x128xbf16>
      %121 = arith.index_cast %arg13 : i32 to index
      %c0_62 = arith.constant 0 : index
      %c0_63 = arith.constant 0 : index
      %122 = vector.load %arg7[%121, %c0_62, %c0_63] : memref<16x128x32xbf16, #tpu.memory_space<vmem>>, vector<1x128x32xbf16>
      %123 = vector.shape_cast %122 : vector<1x128x32xbf16> to vector<128x32xbf16>
      %cst_64 = arith.constant dense<0.000000e+00> : vector<256x32xf32>
      %124 = tpu.matmul %120, %123, %cst_64 {dimension_numbers = #tpu.dot_dimension_numbers<[1], [0], [0], [1], [0, 0, 1, 1], [], []>} : vector<256x128xbf16>, vector<128x32xbf16>, vector<256x32xf32> -> vector<256x32xf32>
      %125 = arith.index_cast %arg13 : i32 to index
      %c0_65 = arith.constant 0 : index
      %c0_66 = arith.constant 0 : index
      %126 = vector.load %arg8[%125, %c0_65, %c0_66] : memref<16x1x32xf32, #tpu.memory_space<vmem>>, vector<1x1x32xf32>
      %127 = vector.shape_cast %126 : vector<1x1x32xf32> to vector<1x32xf32>
      %128 = vector.broadcast %127 : vector<1x32xf32> to vector<256x32xf32>
      %129 = arith.addf %124, %128 : vector<256x32xf32>
      %cst_67 = arith.constant 0.000000e+00 : f32
      %130 = vector.broadcast %cst_67 : f32 to vector<256x32xf32>
      %131 = arith.maximumf %129, %130 : vector<256x32xf32>
      %c32_68 = arith.constant 32 : index
      %c0_69 = arith.constant 0 : index
      %132 = vector.load %arg12[%c32_68, %c0_69] : memref<320x32xf32, #tpu.memory_space<vmem>>, vector<256x32xf32>
      tpu.vector_store %arg12[%c32_68, %c0_69], %131 {strides = array<i32>} : memref<320x32xf32, #tpu.memory_space<vmem>>, vector<256x32xf32>,
    }
    %c16_i32_28 = arith.constant 16 : i32
    %c32_29 = arith.constant 32 : index
    %c0_30 = arith.constant 0 : index
    %67 = vector.load %arg12[%c32_29, %c0_30] : memref<320x32xf32, #tpu.memory_space<vmem>>, vector<256x32xf32>
    %68 = arith.truncf %67 : vector<256x32xf32> to vector<256x32xbf16>
    %c0_31 = arith.constant 0 : index
    %c0_32 = arith.constant 0 : index
    %69 = vector.load %arg9[%c0_31, %c0_32] : memref<8x32xbf16, #tpu.memory_space<vmem>>, vector<8x32xbf16>
    %cst_33 = arith.constant dense<0.000000e+00> : vector<8x256xf32>
    %70 = tpu.matmul %69, %68, %cst_33 {dimension_numbers = #tpu.dot_dimension_numbers<[1], [1], [0], [0], [0, 0, 1, 0], [], []>} : vector<8x32xbf16>, vector<256x32xbf16>, vector<8x256xf32> -> vector<8x256xf32>
    %c0_34 = arith.constant 0 : index
    %c0_35 = arith.constant 0 : index
    %71 = vector.load %arg10[%c0_34, %c0_35] : memref<8x1xf32, #tpu.memory_space<vmem>>, vector<8x1xf32>
    %72 = vector.broadcast %71 : vector<8x1xf32> to vector<8x256xf32>
    %73 = arith.addf %70, %72 : vector<8x256xf32>
    %cst_36 = arith.constant 0.000000e+00 : f32
    %74 = vector.broadcast %cst_36 : f32 to vector<8x256xf32>
    %75 = arith.maximumf %73, %74 : vector<8x256xf32>
    %c0_37 = arith.constant 0 : index
    %c0_38 = arith.constant 0 : index
    %76 = vector.load %arg11[%c0_37, %c0_38] : memref<8x256xf32, #tpu.memory_space<vmem>>, vector<8x256xf32>
    tpu.vector_store %arg11[%c0_37, %c0_38], %75 {strides = array<i32>} : memref<8x256xf32, #tpu.memory_space<vmem>>, vector<8x256xf32>,
    return
  }
  func.func @transform_0(%arg0: i32) -> (i32, i32) {
    %c0_i32 = arith.constant 0 : i32
    %c0_i32_0 = arith.constant 0 : i32
    return %arg0, %c0_i32 : i32, i32
  }
  func.func @transform_1(%arg0: i32) -> (i32, i32) {
    %c0_i32 = arith.constant 0 : i32
    %c0_i32_0 = arith.constant 0 : i32
    %c0_i32_1 = arith.constant 0 : i32
    return %c0_i32, %c0_i32_0 : i32, i32
  }
  func.func @transform_2(%arg0: i32) -> (i32, i32) {
    %c0_i32 = arith.constant 0 : i32
    %c0_i32_0 = arith.constant 0 : i32
    %c0_i32_1 = arith.constant 0 : i32
    return %c0_i32, %c0_i32_0 : i32, i32
  }
  func.func @transform_3(%arg0: i32) -> (i32, i32, i32) {
    %c0_i32 = arith.constant 0 : i32
    %c0_i32_0 = arith.constant 0 : i32
    %c0_i32_1 = arith.constant 0 : i32
    %c0_i32_2 = arith.constant 0 : i32
    return %c0_i32, %c0_i32_0, %c0_i32_1 : i32, i32, i32
  }
  func.func @transform_4(%arg0: i32) -> (i32, i32, i32) {
    %c0_i32 = arith.constant 0 : i32
    %c0_i32_0 = arith.constant 0 : i32
    %c0_i32_1 = arith.constant 0 : i32
    %c0_i32_2 = arith.constant 0 : i32
    return %c0_i32, %c0_i32_0, %c0_i32_1 : i32, i32, i32
  }
  func.func @transform_5(%arg0: i32) -> (i32, i32, i32) {
    %c0_i32 = arith.constant 0 : i32
    %c0_i32_0 = arith.constant 0 : i32
    %c0_i32_1 = arith.constant 0 : i32
    %c0_i32_2 = arith.constant 0 : i32
    return %c0_i32, %c0_i32_0, %c0_i32_1 : i32, i32, i32
  }
  func.func @transform_6(%arg0: i32) -> (i32, i32, i32) {
    %c0_i32 = arith.constant 0 : i32
    %c0_i32_0 = arith.constant 0 : i32
    %c0_i32_1 = arith.constant 0 : i32
    %c0_i32_2 = arith.constant 0 : i32
    return %c0_i32, %c0_i32_0, %c0_i32_1 : i32, i32, i32
  }
  func.func @transform_7(%arg0: i32) -> (i32, i32, i32) {
    %c0_i32 = arith.constant 0 : i32
    %c0_i32_0 = arith.constant 0 : i32
    %c0_i32_1 = arith.constant 0 : i32
    %c0_i32_2 = arith.constant 0 : i32
    return %c0_i32, %c0_i32_0, %c0_i32_1 : i32, i32, i32
  }
  func.func @transform_8(%arg0: i32) -> (i32, i32) {
    %c0_i32 = arith.constant 0 : i32
    %c0_i32_0 = arith.constant 0 : i32
    %c0_i32_1 = arith.constant 0 : i32
    return %c0_i32, %c0_i32_0 : i32, i32
  }
  func.func @transform_9(%arg0: i32) -> (i32, i32) {
    %c0_i32 = arith.constant 0 : i32
    %c0_i32_0 = arith.constant 0 : i32
    %c0_i32_1 = arith.constant 0 : i32
    return %c0_i32, %c0_i32_0 : i32, i32
  }
  func.func @transform_10(%arg0: i32) -> (i32, i32) {
    %c0_i32 = arith.constant 0 : i32
    %c0_i32_0 = arith.constant 0 : i32
    return %arg0, %c0_i32 : i32, i32
  }
}

</mosaic_0001>

<llo_original>
// kernel: cnn10_forward.1
$region0: #{cnn10_forward.1}
  #allocation0 [shape = 'u32[]', space=smem, size = 0x4, offset = 0x4, fixed_abs, tag = 'smem constant byte address 0x4 - core index']
  #allocation1 [shape = 'u32[144,128]{1,0:T(1,128)}', space=vmem, size = 0x12000, scoped, tag = 'internal scratch']
  #allocation2 [shape = 'f32[320,32]{1,0:T(8,128)}', space=vmem, size = 0x28000, scoped, tag = 'scratch operand']
  %s0 = inlined_call_operand.vmem [shape: f32[512,1], index: 0, kind: input, shape index: {}]
  %s1 = inlined_call_operand.hbm [shape: f32[1,32], index: 1, kind: input, shape index: {}]
  %s2 = inlined_call_operand.hbm [shape: f32[1,32], index: 2, kind: input, shape index: {}]
  %s3 = inlined_call_operand.hbm [shape: bf16[16,288,128], index: 3, kind: input, shape index: {}]
  %s4 = inlined_call_operand.hbm [shape: f32[16,1,128], index: 4, kind: input, shape index: {}]
  %s5 = inlined_call_operand.hbm [shape: f32[16,1,128], index: 5, kind: input, shape index: {}]
  %s6 = inlined_call_operand.vmem [shape: bf16[16,128,32], index: 6, kind: input, shape index: {}]
  %s7 = inlined_call_operand.hbm [shape: f32[16,1,32], index: 7, kind: input, shape index: {}]
  %s8 = inlined_call_operand.vmem [shape: bf16[8,32], index: 8, kind: input, shape index: {}]
  %s9 = inlined_call_operand.vmem [shape: f32[8,1], index: 9, kind: input, shape index: {}]
  %s10 = inlined_call_operand.vmem [shape: f32[16,256], index: 10, kind: output, shape index: {}]
  %s11 = sld [smem:[#allocation0]]
  $region104: #{cnn10_forward.1} parent=0
    _
  %s13 = ssub.s32 1, %s11
  %s14 = scalar_select 0, %s13, %s11
  $region1: #{cnn10_forward.1} parent=0
    #allocation3 [shape = 'u8[512]{0}', space=vmem, size = 0x400, scoped, tag = 'input window, operand 1, single buffered']
    #allocation4 [shape = 's32[2]{0}', space=sflag, size = 0x8, scoped, tag = 'scoped memory for cnn10_forward.1']
    #allocation5 [shape = 'u8[512]{0}', space=vmem, size = 0x400, scoped, tag = 'input window, operand 2, single buffered']
    #allocation6 [shape = 's32[1]{0}', space=sflag, size = 0x4, scoped, tag = 'scoped memory for cnn10_forward.1']
    #allocation7 [shape = 'u8[1179648]{0}', space=vmem, size = 0x120000, scoped, tag = 'input window, operand 3, single buffered']
    #allocation8 [shape = 'u8[8192]{0}', space=vmem, size = 0x2000, scoped, tag = 'input window, operand 4, single buffered']
    #allocation9 [shape = 's32[1]{0}', space=sflag, size = 0x4, scoped, tag = 'scoped memory for cnn10_forward.1']
    #allocation10 [shape = 'u8[8192]{0}', space=vmem, size = 0x2000, scoped, tag = 'input window, operand 5, single buffered']
    #allocation11 [shape = 'u8[8192]{0}', space=vmem, size = 0x2000, scoped, tag = 'input window, operand 7, single buffered']
    #allocation12 [shape = 's32[1]{0}', space=sflag, size = 0x4, scoped, tag = 'scoped memory for cnn10_forward.1']
    %15 = vsyncpa [#allocation4], 0
    %16 = vsyncpa [#allocation6], 0
    %17 = vsyncpa [#allocation9], 0
    %18 = vsyncpa [#allocation12], 0
    loop: start=0, step=1, limit=4
    $region2: #{cnn10_forward.1} parent=1 // loop_pre_header
      _
    $region3: #{cnn10_forward.1} parent=1 // loop_header
      %s20 = sphi 0, %s24
      %p21 = scmp.ge.s32.totalorder %s20, 4
      %s30 = sphi 0, %s32
      %s33 = sphi 0, %s30
      %s34 = sphi 0, %s33
      %s50 = sphi 0, %s34
      %s54 = sphi 0, %s54
      %s56 = sphi 0, %s54
      %s57 = sphi 0, %s56
      %s71 = sphi 0, %s57
      %s75 = sphi 0, %s75
      %s77 = sphi 0, %s75
      %s78 = sphi 0, %s77
      %s92 = sphi 0, %s78
      %s96 = sphi 0, %s96
      %s98 = sphi 0, %s96
      %s99 = sphi 0, %s98
      %s113 = sphi 0, %s99
      %s117 = sphi 0, %s117
      %s119 = sphi 0, %s117
      %s120 = sphi 0, %s119
      %s134 = sphi 0, %s120
      %s138 = sphi 0, %s138
      %s140 = sphi 0, %s138
      %s141 = sphi 0, %s140
      %s155 = sphi 0, %s141
      %s159 = sphi 0, %s159
      %s161 = sphi 0, %s159
      %s162 = sphi 0, %s161
      %s176 = sphi 0, %s162
      %s180 = sphi 0, %s180
      %s182 = sphi 0, %s180
      %s183 = sphi 0, %s182
      %s197 = sphi 0, %s183
      %s201 = sphi 0, %s201
      %s203 = sphi 0, %s201
      %s204 = sphi 0, %s203
      %s218 = sphi 0, %s204
      %s222 = sphi 0, %s222
      %s224 = sphi 0, %s222
      %s225 = sphi 0, %s224
      %s239 = sphi 0, %s225
      %s245 = sphi 0, %s247
      %s248 = sphi 0, %s245
      %s249 = sphi 0, %s248
      %s265 = sphi 0, %s249
    $region4: #{cnn10_forward.1} parent=1 // loop_header_branch
      %23 = sbr.rel (%p21) target = $region8
    $region5: #{cnn10_forward.1} parent=1 // loop_body
      %s25 = ssub.s32 %s20, 1
      %s26 = ssub.s32 %s20, 2
      %s27 = sadd.s32 %s20, 1
      %s28 = ssub.s32 %s20, %s27
      %p29 = scmp.eq.s32.totalorder %s28, 0
      %s31 = sadd.s32 %s30, 1
      %s32 = scalar_select %p29, %s30, %s31
      %p35 = pneg %p29
      %p36 = scmp.eq.s32.totalorder %s20, 1
      %p37 = por %p35, %p36
      %p38 = scmp.ne.s32.totalorder %s30, %s33
      %p39 = scmp.eq.s32.totalorder %s20, 0
      %p40 = por %p38, %p39
      %p41 = scmp.ne.s32.totalorder %s30, %s33
      %p42 = scmp.eq.s32.totalorder %s25, 1
      %p43 = por %p41, %p42
      %p44 = scmp.ne.s32.totalorder %s33, %s34
      %p45 = scmp.eq.s32.totalorder %s25, 0
      %p46 = por %p44, %p45
      %p47 = scmp.ne.s32.totalorder %s33, %s34
      %p48 = scmp.eq.s32.totalorder %s26, 1
      %p49 = por %p47, %p48
      %p51 = scmp.ne.s32.totalorder %s34, %s50
      %p52 = scmp.eq.s32.totalorder %s26, 0
      %p53 = por %p51, %p52
      %s55 = sadd.s32 %s54, 1
      %p58 = scmp.eq.s32.totalorder %s20, 1
      %p59 = scmp.ne.s32.totalorder %s54, %s56
      %p60 = scmp.eq.s32.totalorder %s20, 0
      %p61 = por %p59, %p60
      %p62 = scmp.ne.s32.totalorder %s54, %s56
      %p63 = scmp.eq.s32.totalorder %s25, 1
      %p64 = por %p62, %p63
      %p65 = scmp.ne.s32.totalorder %s56, %s57
      %p66 = scmp.eq.s32.totalorder %s25, 0
      %p67 = por %p65, %p66
      %p68 = scmp.ne.s32.totalorder %s56, %s57
      %p69 = scmp.eq.s32.totalorder %s26, 1
      %p70 = por %p68, %p69
      %p72 = scmp.ne.s32.totalorder %s57, %s71
      %p73 = scmp.eq.s32.totalorder %s26, 0
      %p74 = por %p72, %p73
      %s76 = sadd.s32 %s75, 1
      %p79 = scmp.eq.s32.totalorder %s20, 1
      %p80 = scmp.ne.s32.totalorder %s75, %s77
      %p81 = scmp.eq.s32.totalorder %s20, 0
      %p82 = por %p80, %p81
      %p83 = scmp.ne.s32.totalorder %s75, %s77
      %p84 = scmp.eq.s32.totalorder %s25, 1
      %p85 = por %p83, %p84
      %p86 = scmp.ne.s32.totalorder %s77, %s78
      %p87 = scmp.eq.s32.totalorder %s25, 0
      %p88 = por %p86, %p87
      %p89 = scmp.ne.s32.totalorder %s77, %s78
      %p90 = scmp.eq.s32.totalorder %s26, 1
      %p91 = por %p89, %p90
      %p93 = scmp.ne.s32.totalorder %s78, %s92
      %p94 = scmp.eq.s32.totalorder %s26, 0
      %p95 = por %p93, %p94
      %s97 = sadd.s32 %s96, 1
      %p100 = scmp.eq.s32.totalorder %s20, 1
      %p101 = scmp.ne.s32.totalorder %s96, %s98
      %p102 = scmp.eq.s32.totalorder %s20, 0
      %p103 = por %p101, %p102
      %p104 = scmp.ne.s32.totalorder %s96, %s98
      %p105 = scmp.eq.s32.totalorder %s25, 1
      %p106 = por %p104, %p105
      %p107 = scmp.ne.s32.totalorder %s98, %s99
      %p108 = scmp.eq.s32.totalorder %s25, 0
      %p109 = por %p107, %p108
      %p110 = scmp.ne.s32.totalorder %s98, %s99
      %p111 = scmp.eq.s32.totalorder %s26, 1
      %p112 = por %p110, %p111
      %p114 = scmp.ne.s32.totalorder %s99, %s113
      %p115 = scmp.eq.s32.totalorder %s26, 0
      %p116 = por %p114, %p115
      %s118 = sadd.s32 %s117, 1
      %p121 = scmp.eq.s32.totalorder %s20, 1
      %p122 = scmp.ne.s32.totalorder %s117, %s119
      %p123 = scmp.eq.s32.totalorder %s20, 0
      %p124 = por %p122, %p123
      %p125 = scmp.ne.s32.totalorder %s117, %s119
      %p126 = scmp.eq.s32.totalorder %s25, 1
      %p127 = por %p125, %p126
      %p128 = scmp.ne.s32.totalorder %s119, %s120
      %p129 = scmp.eq.s32.totalorder %s25, 0
      %p130 = por %p128, %p129
      %p131 = scmp.ne.s32.totalorder %s119, %s120
      %p132 = scmp.eq.s32.totalorder %s26, 1
      %p133 = por %p131, %p132
      %p135 = scmp.ne.s32.totalorder %s120, %s134
      %p136 = scmp.eq.s32.totalorder %s26, 0
      %p137 = por %p135, %p136
      %s139 = sadd.s32 %s138, 1
      %p142 = scmp.eq.s32.totalorder %s20, 1
      %p143 = scmp.ne.s32.totalorder %s138, %s140
      %p144 = scmp.eq.s32.totalorder %s20, 0
      %p145 = por %p143, %p144
      %p146 = scmp.ne.s32.totalorder %s138, %s140
      %p147 = scmp.eq.s32.totalorder %s25, 1
      %p148 = por %p146, %p147
      %p149 = scmp.ne.s32.totalorder %s140, %s141
      %p150 = scmp.eq.s32.totalorder %s25, 0
      %p151 = por %p149, %p150
      %p152 = scmp.ne.s32.totalorder %s140, %s141
      %p153 = scmp.eq.s32.totalorder %s26, 1
      %p154 = por %p152, %p153
      %p156 = scmp.ne.s32.totalorder %s141, %s155
      %p157 = scmp.eq.s32.totalorder %s26, 0
      %p158 = por %p156, %p157
      %s160 = sadd.s32 %s159, 1
      %p163 = scmp.eq.s32.totalorder %s20, 1
      %p164 = scmp.ne.s32.totalorder %s159, %s161
      %p165 = scmp.eq.s32.totalorder %s20, 0
      %p166 = por %p164, %p165
      %p167 = scmp.ne.s32.totalorder %s159, %s161
      %p168 = scmp.eq.s32.totalorder %s25, 1
      %p169 = por %p167, %p168
      %p170 = scmp.ne.s32.totalorder %s161, %s162
      %p171 = scmp.eq.s32.totalorder %s25, 0
      %p172 = por %p170, %p171
      %p173 = scmp.ne.s32.totalorder %s161, %s162
      %p174 = scmp.eq.s32.totalorder %s26, 1
      %p175 = por %p173, %p174
      %p177 = scmp.ne.s32.totalorder %s162, %s176
      %p178 = scmp.eq.s32.totalorder %s26, 0
      %p179 = por %p177, %p178
      %s181 = sadd.s32 %s180, 1
      %p184 = scmp.eq.s32.totalorder %s20, 1
      %p185 = scmp.ne.s32.totalorder %s180, %s182
      %p186 = scmp.eq.s32.totalorder %s20, 0
      %p187 = por %p185, %p186
      %p188 = scmp.ne.s32.totalorder %s180, %s182
      %p189 = scmp.eq.s32.totalorder %s25, 1
      %p190 = por %p188, %p189
      %p191 = scmp.ne.s32.totalorder %s182, %s183
      %p192 = scmp.eq.s32.totalorder %s25, 0
      %p193 = por %p191, %p192
      %p194 = scmp.ne.s32.totalorder %s182, %s183
      %p195 = scmp.eq.s32.totalorder %s26, 1
      %p196 = por %p194, %p195
      %p198 = scmp.ne.s32.totalorder %s183, %s197
      %p199 = scmp.eq.s32.totalorder %s26, 0
      %p200 = por %p198, %p199
      %s202 = sadd.s32 %s201, 1
      %p205 = scmp.eq.s32.totalorder %s20, 1
      %p206 = scmp.ne.s32.totalorder %s201, %s203
      %p207 = scmp.eq.s32.totalorder %s20, 0
      %p208 = por %p206, %p207
      %p209 = scmp.ne.s32.totalorder %s201, %s203
      %p210 = scmp.eq.s32.totalorder %s25, 1
      %p211 = por %p209, %p210
      %p212 = scmp.ne.s32.totalorder %s203, %s204
      %p213 = scmp.eq.s32.totalorder %s25, 0
      %p214 = por %p212, %p213
      %p215 = scmp.ne.s32.totalorder %s203, %s204
      %p216 = scmp.eq.s32.totalorder %s26, 1
      %p217 = por %p215, %p216
      %p219 = scmp.ne.s32.totalorder %s204, %s218
      %p220 = scmp.eq.s32.totalorder %s26, 0
      %p221 = por %p219, %p220
      %s223 = sadd.s32 %s222, 1
      %p226 = scmp.eq.s32.totalorder %s20, 1
      %p227 = scmp.ne.s32.totalorder %s222, %s224
      %p228 = scmp.eq.s32.totalorder %s20, 0
      %p229 = por %p227, %p228
      %p230 = scmp.ne.s32.totalorder %s222, %s224
      %p231 = scmp.eq.s32.totalorder %s25, 1
      %p232 = por %p230, %p231
      %p233 = scmp.ne.s32.totalorder %s224, %s225
      %p234 = scmp.eq.s32.totalorder %s25, 0
      %p235 = por %p233, %p234
      %p236 = scmp.ne.s32.totalorder %s224, %s225
      %p237 = scmp.eq.s32.totalorder %s26, 1
      %p238 = por %p236, %p237
      %p240 = scmp.ne.s32.totalorder %s225, %s239
      %p241 = scmp.eq.s32.totalorder %s26, 0
      %p242 = por %p240, %p241
      %s243 = ssub.s32 %s20, %s27
      %p244 = scmp.eq.s32.totalorder %s243, 0
      %s246 = sadd.s32 %s245, 1
      %s247 = scalar_select %p244, %s245, %s246
      %p250 = pneg %p244
      %p251 = scmp.eq.s32.totalorder %s20, 1
      %p252 = por %p250, %p251
      %p253 = scmp.ne.s32.totalorder %s245, %s248
      %p254 = scmp.eq.s32.totalorder %s20, 0
      %p255 = por %p253, %p254
      %p256 = scmp.ne.s32.totalorder %s245, %s248
      %p257 = scmp.eq.s32.totalorder %s25, 1
      %p258 = por %p256, %p257
      %p259 = scmp.ne.s32.totalorder %s248, %s249
      %p260 = scmp.eq.s32.totalorder %s25, 0
      %p261 = por %p259, %p260
      %p262 = scmp.ne.s32.totalorder %s248, %s249
      %p263 = scmp.eq.s32.totalorder %s26, 1
      %p264 = por %p262, %p263
      %p266 = scmp.ne.s32.totalorder %s249, %s265
      %p267 = scmp.eq.s32.totalorder %s26, 0
      %p268 = por %p266, %p267
      %p269 = scmp.le.s32.totalorder 1, %s20
      %p270 = scmp.lt.s32.totalorder %s20, 3
      %p271 = pnand %p269, %p270
      %p272 = pneg %p271
      // Predicated region
      $region9: #{cnn10_forward.1} parent=5 // pred_check
        _
      $region10: #{cnn10_forward.1} parent=5 // pred_check_branch
        %274 = sbr.rel (%p271) target = $region12
      $region11: #{cnn10_forward.1} parent=5 // pred_region
        %s275 = ssub.s32 %s20, 1
        // Predicated region
        $region13: #{cnn10_forward.1} parent=11 // pred_check
          %p276 = pneg %p67
        $region14: #{cnn10_forward.1} parent=11 // pred_check_branch
          %278 = sbr.rel (%p276) target = $region16
        $region15: #{cnn10_forward.1} parent=11 // pred_region
          %s280 = ssub.s32 16, 16
          %281 = vsyncadd [#allocation4], %s280
          %s283 = sshll.u32 [#allocation3], 4
          %s284 = int_to_ptr.vmem [resolvable:$true] %s283
          %286 = dma.hbm_to_vmem [thread:$0]  %s1, 16, %s284, [#allocation4]
        $region16: #{cnn10_forward.1} parent=11 // pred_fallthru
          _
        // Predicated region
        $region17: #{cnn10_forward.1} parent=11 // pred_check
          %p287 = pneg %p88
        $region18: #{cnn10_forward.1} parent=11 // pred_check_branch
          %289 = sbr.rel (%p287) target = $region20
        $region19: #{cnn10_forward.1} parent=11 // pred_region
          %s291 = ssub.s32 16, 16
          %292 = vsyncadd [#allocation6], %s291
          %s294 = sshll.u32 [#allocation5], 4
          %s295 = int_to_ptr.vmem [resolvable:$true] %s294
          %297 = dma.hbm_to_vmem [thread:$0]  %s2, 16, %s295, [#allocation6]
        $region20: #{cnn10_forward.1} parent=11 // pred_fallthru
          _
        // Predicated region
        $region21: #{cnn10_forward.1} parent=11 // pred_check
          %p298 = pneg %p109
        $region22: #{cnn10_forward.1} parent=11 // pred_check_branch
          %300 = sbr.rel (%p298) target = $region24
        $region23: #{cnn10_forward.1} parent=11 // pred_region
          %s302 = ssub.s32 36864, 36864
          %303 = vsyncadd [#allocation6], %s302
          %s304 = sshll.u32 [#allocation7], 4
          %s305 = int_to_ptr.vmem [resolvable:$true] %s304
          %310 = dma.hbm_to_vmem [thread:$0]  %s3, 36864, %s305, [#allocation6], 64, 64, 4
        $region24: #{cnn10_forward.1} parent=11 // pred_fallthru
          _
        // Predicated region
        $region25: #{cnn10_forward.1} parent=11 // pred_check
          %p311 = pneg %p130
        $region26: #{cnn10_forward.1} parent=11 // pred_check_branch
          %313 = sbr.rel (%p311) target = $region28
        $region27: #{cnn10_forward.1} parent=11 // pred_region
          %s315 = ssub.s32 256, 256
          %316 = vsyncadd [#allocation9], %s315
          %s317 = sshll.u32 [#allocation8], 4
          %s318 = int_to_ptr.vmem [resolvable:$true] %s317
          %323 = dma.hbm_to_vmem [thread:$0]  %s4, 256, %s318, [#allocation9], 16, 16, 1
        $region28: #{cnn10_forward.1} parent=11 // pred_fallthru
          _
        // Predicated region
        $region29: #{cnn10_forward.1} parent=11 // pred_check
          %p324 = pneg %p151
        $region30: #{cnn10_forward.1} parent=11 // pred_check_branch
          %326 = sbr.rel (%p324) target = $region32
        $region31: #{cnn10_forward.1} parent=11 // pred_region
          %s328 = ssub.s32 256, 256
          %329 = vsyncadd [#allocation9], %s328
          %s330 = sshll.u32 [#allocation10], 4
          %s331 = int_to_ptr.vmem [resolvable:$true] %s330
          %336 = dma.hbm_to_vmem [thread:$0]  %s5, 256, %s331, [#allocation9], 16, 16, 1
        $region32: #{cnn10_forward.1} parent=11 // pred_fallthru
          _
        // Predicated region
        $region33: #{cnn10_forward.1} parent=11 // pred_check
          %p337 = pneg %p172
        $region34: #{cnn10_forward.1} parent=11 // pred_check_branch
          %339 = sbr.rel (%p337) target = $region36
        $region35: #{cnn10_forward.1} parent=11 // pred_region
          _
        $region36: #{cnn10_forward.1} parent=11 // pred_fallthru
          _
        // Predicated region
        $region37: #{cnn10_forward.1} parent=11 // pred_check
          %p340 = pneg %p193
        $region38: #{cnn10_forward.1} parent=11 // pred_check_branch
          %342 = sbr.rel (%p340) target = $region40
        $region39: #{cnn10_forward.1} parent=11 // pred_region
          %s344 = ssub.s32 256, 256
          %345 = vsyncadd [#allocation12], %s344
          %s346 = sshll.u32 [#allocation11], 4
          %s347 = int_to_ptr.vmem [resolvable:$true] %s346
          %352 = dma.hbm_to_vmem [thread:$0]  %s7, 256, %s347, [#allocation12], 16, 16, 1
        $region40: #{cnn10_forward.1} parent=11 // pred_fallthru
          _
        // Predicated region
        $region41: #{cnn10_forward.1} parent=11 // pred_check
          %p353 = pneg %p214
        $region42: #{cnn10_forward.1} parent=11 // pred_check_branch
          %355 = sbr.rel (%p353) target = $region44
        $region43: #{cnn10_forward.1} parent=11 // pred_region
          _
        $region44: #{cnn10_forward.1} parent=11 // pred_fallthru
          _
        // Predicated region
        $region45: #{cnn10_forward.1} parent=11 // pred_check
          %p356 = pneg %p235
        $region46: #{cnn10_forward.1} parent=11 // pred_check_branch
          %358 = sbr.rel (%p356) target = $region48
        $region47: #{cnn10_forward.1} parent=11 // pred_region
          _
        $region48: #{cnn10_forward.1} parent=11 // pred_fallthru
          _
      $region12: #{cnn10_forward.1} parent=5 // pred_fallthru
        _
      %p359 = scmp.lt.s32.totalorder %s20, 2
      // Predicated region
      $region49: #{cnn10_forward.1} parent=5 // pred_check
        %p360 = pneg %p359
      $region50: #{cnn10_forward.1} parent=5 // pred_check_branch
        %362 = sbr.rel (%p360) target = $region52
      $region51: #{cnn10_forward.1} parent=5 // pred_region
        // Predicated region
        $region53: #{cnn10_forward.1} parent=51 // pred_check
          %p363 = pneg %p40
        $region54: #{cnn10_forward.1} parent=51 // pred_check_branch
          %365 = sbr.rel (%p363) target = $region56
        $region55: #{cnn10_forward.1} parent=51 // pred_region
          %s366 = smul.u32 32, %s20
          %p367 = scmp.lt.s32.totalorder %s366, 63
          %s368 = scalar_select %p367, %s366, 63
          %s369 = smul.addr %s368, 8
          %s370 = scalar_lea.vmem %s0, %s369
          %s371 = smul.u32 32, %s20
        $region56: #{cnn10_forward.1} parent=51 // pred_fallthru
          _
      $region52: #{cnn10_forward.1} parent=5 // pred_fallthru
        _
      %p372 = scmp.le.s32.totalorder 1, %s20
      %p373 = scmp.lt.s32.totalorder %s20, 3
      %p374 = pnand %p372, %p373
      %p375 = pneg %p374
      // Predicated region
      $region57: #{cnn10_forward.1} parent=5 // pred_check
        _
      $region58: #{cnn10_forward.1} parent=5 // pred_check_branch
        %377 = sbr.rel (%p374) target = $region60
      $region59: #{cnn10_forward.1} parent=5 // pred_region
        %s378 = ssub.s32 %s20, 1
        // Predicated region
        $region61: #{cnn10_forward.1} parent=59 // pred_check
          %p379 = pneg %p67
        $region62: #{cnn10_forward.1} parent=59 // pred_check_branch
          %381 = sbr.rel (%p379) target = $region64
        $region63: #{cnn10_forward.1} parent=59 // pred_region
          %382 = dma.done [#allocation4], 16
        $region64: #{cnn10_forward.1} parent=59 // pred_fallthru
          _
        // Predicated region
        $region65: #{cnn10_forward.1} parent=59 // pred_check
          %p383 = pneg %p88
        $region66: #{cnn10_forward.1} parent=59 // pred_check_branch
          %385 = sbr.rel (%p383) target = $region68
        $region67: #{cnn10_forward.1} parent=59 // pred_region
          %386 = dma.done [#allocation6], 16
        $region68: #{cnn10_forward.1} parent=59 // pred_fallthru
          _
        // Predicated region
        $region69: #{cnn10_forward.1} parent=59 // pred_check
          %p387 = pneg %p109
        $region70: #{cnn10_forward.1} parent=59 // pred_check_branch
          %389 = sbr.rel (%p387) target = $region72
        $region71: #{cnn10_forward.1} parent=59 // pred_region
          %390 = dma.done [#allocation6], 36864
        $region72: #{cnn10_forward.1} parent=59 // pred_fallthru
          _
        // Predicated region
        $region73: #{cnn10_forward.1} parent=59 // pred_check
          %p391 = pneg %p130
        $region74: #{cnn10_forward.1} parent=59 // pred_check_branch
          %393 = sbr.rel (%p391) target = $region76
        $region75: #{cnn10_forward.1} parent=59 // pred_region
          %394 = dma.done [#allocation9], 256
        $region76: #{cnn10_forward.1} parent=59 // pred_fallthru
          _
        // Predicated region
        $region77: #{cnn10_forward.1} parent=59 // pred_check
          %p395 = pneg %p151
        $region78: #{cnn10_forward.1} parent=59 // pred_check_branch
          %397 = sbr.rel (%p395) target = $region80
        $region79: #{cnn10_forward.1} parent=59 // pred_region
          %398 = dma.done [#allocation9], 256
        $region80: #{cnn10_forward.1} parent=59 // pred_fallthru
          _
        // Predicated region
        $region81: #{cnn10_forward.1} parent=59 // pred_check
          %p399 = pneg %p193
        $region82: #{cnn10_forward.1} parent=59 // pred_check_branch
          %401 = sbr.rel (%p399) target = $region84
        $region83: #{cnn10_forward.1} parent=59 // pred_region
          %402 = dma.done [#allocation12], 256
        $region84: #{cnn10_forward.1} parent=59 // pred_fallthru
          _
        %s403 = smul.u32 32, %s25
        %p404 = scmp.lt.s32.totalorder %s403, 63
        %s405 = scalar_select %p404, %s403, 63
        %s406 = smul.addr %s405, 8
        %s407 = scalar_lea.vmem %s0, %s406
        %p408 = pneg %p46
        %p409 = pneg %p43
        %p410 = pneg %p67
        %p411 = pneg %p64
        %p412 = pneg %p88
        %p413 = pneg %p85
        %p414 = pneg %p109
        %p415 = pneg %p106
        %p416 = pneg %p130
        %p417 = pneg %p127
        %p418 = pneg %p151
        %p419 = pneg %p148
        %p420 = pneg %p172
        %p421 = pneg %p169
        %p422 = pneg %p193
        %p423 = pneg %p190
        %p424 = pneg %p214
        %p425 = pneg %p211
        %p426 = pneg %p235
        %p427 = pneg %p232
        %p428 = pneg %p261
        %p429 = pneg %p258
        %p430 = scmp.lt.s32.totalorder %s25, 1
        %s431 = scalar_select %p430, %s25, 1
        %s432 = smul.addr %s431, 2
        %s433 = smul.addr %s432, 8
        %s434 = scalar_lea.vmem %s10, %s433
        %s435 = smul.u32 32, %s25
        %p436 = scmp.lt.s32.totalorder %s435, 63
        %s437 = scalar_select %p436, %s435, 63
        %s438 = smul.addr %s437, 8
        %s439 = scalar_lea.vmem %s0, %s438
        %s440 = smul.u32 32, %s25
        %p441 = scmp.lt.s32.totalorder %s25, 1
        %s442 = scalar_select %p441, %s25, 1
        %s443 = smul.addr %s442, 2
        %s444 = smul.addr %s443, 8
        %s445 = scalar_lea.vmem %s10, %s444
        %vm447 = vcmask 261120
        %448 = vst.msk [vmem:[#allocation2] sm:$0xff] %vm447, 0.0
        %449 = vst.msk [vmem:[#allocation2 + $0x8] sm:$0xff] %vm447, 0.0
        %450 = vst.msk [vmem:[#allocation2 + $0x10] sm:$0xff] %vm447, 0.0
        %451 = vst.msk [vmem:[#allocation2 + $0x18] sm:$0xff] %vm447, 0.0
        %452 = vst.msk [vmem:[#allocation2 + $0x20] sm:$0xff] %vm447, 0.0
        %453 = vst.msk [vmem:[#allocation2 + $0x28] sm:$0xff] %vm447, 0.0
        %454 = vst.msk [vmem:[#allocation2 + $0x30] sm:$0xff] %vm447, 0.0
        %455 = vst.msk [vmem:[#allocation2 + $0x38] sm:$0xff] %vm447, 0.0
        %456 = vst.msk [vmem:[#allocation2 + $0x40] sm:$0xff] %vm447, 0.0
        %457 = vst.msk [vmem:[#allocation2 + $0x48] sm:$0xff] %vm447, 0.0
        %458 = vst.msk [vmem:[#allocation2 + $0x50] sm:$0xff] %vm447, 0.0
        %459 = vst.msk [vmem:[#allocation2 + $0x58] sm:$0xff] %vm447, 0.0
        %460 = vst.msk [vmem:[#allocation2 + $0x60] sm:$0xff] %vm447, 0.0
        %461 = vst.msk [vmem:[#allocation2 + $0x68] sm:$0xff] %vm447, 0.0
        %462 = vst.msk [vmem:[#allocation2 + $0x70] sm:$0xff] %vm447, 0.0
        %463 = vst.msk [vmem:[#allocation2 + $0x78] sm:$0xff] %vm447, 0.0
        %464 = vst.msk [vmem:[#allocation2 + $0x80] sm:$0xff] %vm447, 0.0
        %465 = vst.msk [vmem:[#allocation2 + $0x88] sm:$0xff] %vm447, 0.0
        %466 = vst.msk [vmem:[#allocation2 + $0x90] sm:$0xff] %vm447, 0.0
        %467 = vst.msk [vmem:[#allocation2 + $0x98] sm:$0xff] %vm447, 0.0
        %468 = vst.msk [vmem:[#allocation2 + $0xa0] sm:$0xff] %vm447, 0.0
        %469 = vst.msk [vmem:[#allocation2 + $0xa8] sm:$0xff] %vm447, 0.0
        %470 = vst.msk [vmem:[#allocation2 + $0xb0] sm:$0xff] %vm447, 0.0
        %471 = vst.msk [vmem:[#allocation2 + $0xb8] sm:$0xff] %vm447, 0.0
        %472 = vst.msk [vmem:[#allocation2 + $0xc0] sm:$0xff] %vm447, 0.0
        %473 = vst.msk [vmem:[#allocation2 + $0xc8] sm:$0xff] %vm447, 0.0
        %474 = vst.msk [vmem:[#allocation2 + $0xd0] sm:$0xff] %vm447, 0.0
        %475 = vst.msk [vmem:[#allocation2 + $0xd8] sm:$0xff] %vm447, 0.0
        %476 = vst.msk [vmem:[#allocation2 + $0xe0] sm:$0xff] %vm447, 0.0
        %477 = vst.msk [vmem:[#allocation2 + $0xe8] sm:$0xff] %vm447, 0.0
        %478 = vst.msk [vmem:[#allocation2 + $0xf0] sm:$0xff] %vm447, 0.0
        %479 = vst.msk [vmem:[#allocation2 + $0xf8] sm:$0xff] %vm447, 0.0
        %480 = vst.msk [vmem:[#allocation2 + $0x100] sm:$0xff] %vm447, 0.0
        %481 = vst.msk [vmem:[#allocation2 + $0x108] sm:$0xff] %vm447, 0.0
        %482 = vst.msk [vmem:[#allocation2 + $0x110] sm:$0xff] %vm447, 0.0
        %483 = vst.msk [vmem:[#allocation2 + $0x118] sm:$0xff] %vm447, 0.0
        %484 = vst.msk [vmem:[#allocation2 + $0x120] sm:$0xff] %vm447, 0.0
        %485 = vst.msk [vmem:[#allocation2 + $0x128] sm:$0xff] %vm447, 0.0
        %486 = vst.msk [vmem:[#allocation2 + $0x130] sm:$0xff] %vm447, 0.0
        %487 = vst.msk [vmem:[#allocation2 + $0x138] sm:$0xff] %vm447, 0.0
        %v488 = vld [vmem:[#allocation5] sm:$0x1]
        %v489 = vld [vmem:[%s439] sm:$0xff]
        %v490 = vld [vmem:[%s439 + $0x8] sm:$0xff]
        %v491 = vld [vmem:[%s439 + $0x10] sm:$0xff]
        %v492 = vld [vmem:[%s439 + $0x18] sm:$0xff]
        %v493 = vld [vmem:[%s439 + $0x20] sm:$0xff]
        %v494 = vld [vmem:[%s439 + $0x28] sm:$0xff]
        %v495 = vld [vmem:[%s439 + $0x30] sm:$0xff]
        %v496 = vld [vmem:[%s439 + $0x38] sm:$0xff]
        %v497 = vld [vmem:[%s439 + $0x40] sm:$0xff]
        %v498 = vld [vmem:[%s439 + $0x48] sm:$0xff]
        %v499 = vld [vmem:[%s439 + $0x50] sm:$0xff]
        %v500 = vld [vmem:[%s439 + $0x58] sm:$0xff]
        %v501 = vld [vmem:[%s439 + $0x60] sm:$0xff]
        %v502 = vld [vmem:[%s439 + $0x68] sm:$0xff]
        %v503 = vld [vmem:[%s439 + $0x70] sm:$0xff]
        %v504 = vld [vmem:[%s439 + $0x78] sm:$0xff]
        %v505 = vld [vmem:[%s439 + $0x80] sm:$0xff]
        %v506 = vld [vmem:[%s439 + $0x88] sm:$0xff]
        %v507 = vld [vmem:[%s439 + $0x90] sm:$0xff]
        %v508 = vld [vmem:[%s439 + $0x98] sm:$0xff]
        %v509 = vld [vmem:[%s439 + $0xa0] sm:$0xff]
        %v510 = vld [vmem:[%s439 + $0xa8] sm:$0xff]
        %v511 = vld [vmem:[%s439 + $0xb0] sm:$0xff]
        %v512 = vld [vmem:[%s439 + $0xb8] sm:$0xff]
        %v513 = vld [vmem:[%s439 + $0xc0] sm:$0xff]
        %v514 = vld [vmem:[%s439 + $0xc8] sm:$0xff]
        %v515 = vld [vmem:[%s439 + $0xd0] sm:$0xff]
        %v516 = vld [vmem:[%s439 + $0xd8] sm:$0xff]
        %v517 = vld [vmem:[%s439 + $0xe0] sm:$0xff]
        %v518 = vld [vmem:[%s439 + $0xe8] sm:$0xff]
        %v519 = vld [vmem:[%s439 + $0xf0] sm:$0xff]
        %v520 = vld [vmem:[%s439 + $0xf8] sm:$0xff]
        %v521 = vld [vmem:[#allocation3] sm:$0x1]
        %523 = vset.pattern.permute.xlu0 0
        %524 = vperm.xlu0 %523, %v489
        %v525 = vpop.permute.xlu0 %524
        %528 = vset.pattern.permute.xlu0 0
        %529 = vperm.xlu0 %528, %v490
        %v530 = vpop.permute.xlu0 %529
        %533 = vset.pattern.permute.xlu0 0
        %534 = vperm.xlu0 %533, %v491
        %v535 = vpop.permute.xlu0 %534
        %538 = vset.pattern.permute.xlu0 0
        %539 = vperm.xlu0 %538, %v492
        %v540 = vpop.permute.xlu0 %539
        %543 = vset.pattern.permute.xlu0 0
        %544 = vperm.xlu0 %543, %v493
        %v545 = vpop.permute.xlu0 %544
        %548 = vset.pattern.permute.xlu0 0
        %549 = vperm.xlu0 %548, %v494
        %v550 = vpop.permute.xlu0 %549
        %553 = vset.pattern.permute.xlu0 0
        %554 = vperm.xlu0 %553, %v495
        %v555 = vpop.permute.xlu0 %554
        %558 = vset.pattern.permute.xlu0 0
        %559 = vperm.xlu0 %558, %v496
        %v560 = vpop.permute.xlu0 %559
        %563 = vset.pattern.permute.xlu0 0
        %564 = vperm.xlu0 %563, %v497
        %v565 = vpop.permute.xlu0 %564
        %568 = vset.pattern.permute.xlu0 0
        %569 = vperm.xlu0 %568, %v498
        %v570 = vpop.permute.xlu0 %569
        %573 = vset.pattern.permute.xlu0 0
        %574 = vperm.xlu0 %573, %v499
        %v575 = vpop.permute.xlu0 %574
        %578 = vset.pattern.permute.xlu0 0
        %579 = vperm.xlu0 %578, %v500
        %v580 = vpop.permute.xlu0 %579
        %583 = vset.pattern.permute.xlu0 0
        %584 = vperm.xlu0 %583, %v501
        %v585 = vpop.permute.xlu0 %584
        %588 = vset.pattern.permute.xlu0 0
        %589 = vperm.xlu0 %588, %v502
        %v590 = vpop.permute.xlu0 %589
        %593 = vset.pattern.permute.xlu0 0
        %594 = vperm.xlu0 %593, %v503
        %v595 = vpop.permute.xlu0 %594
        %598 = vset.pattern.permute.xlu0 0
        %599 = vperm.xlu0 %598, %v504
        %v600 = vpop.permute.xlu0 %599
        %603 = vset.pattern.permute.xlu0 0
        %604 = vperm.xlu0 %603, %v505
        %v605 = vpop.permute.xlu0 %604
        %608 = vset.pattern.permute.xlu0 0
        %609 = vperm.xlu0 %608, %v506
        %v610 = vpop.permute.xlu0 %609
        %613 = vset.pattern.permute.xlu0 0
        %614 = vperm.xlu0 %613, %v507
        %v615 = vpop.permute.xlu0 %614
        %618 = vset.pattern.permute.xlu0 0
        %619 = vperm.xlu0 %618, %v508
        %v620 = vpop.permute.xlu0 %619
        %623 = vset.pattern.permute.xlu0 0
        %624 = vperm.xlu0 %623, %v509
        %v625 = vpop.permute.xlu0 %624
        %628 = vset.pattern.permute.xlu0 0
        %629 = vperm.xlu0 %628, %v510
        %v630 = vpop.permute.xlu0 %629
        %633 = vset.pattern.permute.xlu0 0
        %634 = vperm.xlu0 %633, %v511
        %v635 = vpop.permute.xlu0 %634
        %638 = vset.pattern.permute.xlu0 0
        %639 = vperm.xlu0 %638, %v512
        %v640 = vpop.permute.xlu0 %639
        %643 = vset.pattern.permute.xlu0 0
        %644 = vperm.xlu0 %643, %v513
        %v645 = vpop.permute.xlu0 %644
        %648 = vset.pattern.permute.xlu0 0
        %649 = vperm.xlu0 %648, %v514
        %v650 = vpop.permute.xlu0 %649
        %653 = vset.pattern.permute.xlu0 0
        %654 = vperm.xlu0 %653, %v515
        %v655 = vpop.permute.xlu0 %654
        %658 = vset.pattern.permute.xlu0 0
        %659 = vperm.xlu0 %658, %v516
        %v660 = vpop.permute.xlu0 %659
        %663 = vset.pattern.permute.xlu0 0
        %664 = vperm.xlu0 %663, %v517
        %v665 = vpop.permute.xlu0 %664
        %668 = vset.pattern.permute.xlu0 0
        %669 = vperm.xlu0 %668, %v518
        %v670 = vpop.permute.xlu0 %669
        %673 = vset.pattern.permute.xlu0 0
        %674 = vperm.xlu0 %673, %v519
        %v675 = vpop.permute.xlu0 %674
        %678 = vset.pattern.permute.xlu0 0
        %679 = vperm.xlu0 %678, %v520
        %v680 = vpop.permute.xlu0 %679
        %v683 = vlaneseq
        %v684 = vshrl.u32 %v683, 7
        %v685 = vsub.s32 0, %v684
        %v686 = vrot.slane %v521, %v685
        %v688 = vmul.f32 %v525, %v686
        %v689 = vmul.f32 %v530, %v686
        %v690 = vmul.f32 %v535, %v686
        %v691 = vmul.f32 %v540, %v686
        %v692 = vmul.f32 %v545, %v686
        %v693 = vmul.f32 %v550, %v686
        %v694 = vmul.f32 %v555, %v686
        %v695 = vmul.f32 %v560, %v686
        %v696 = vmul.f32 %v565, %v686
        %v697 = vmul.f32 %v570, %v686
        %v698 = vmul.f32 %v575, %v686
        %v699 = vmul.f32 %v580, %v686
        %v700 = vmul.f32 %v585, %v686
        %v701 = vmul.f32 %v590, %v686
        %v702 = vmul.f32 %v595, %v686
        %v703 = vmul.f32 %v600, %v686
        %v704 = vmul.f32 %v605, %v686
        %v705 = vmul.f32 %v610, %v686
        %v706 = vmul.f32 %v615, %v686
        %v707 = vmul.f32 %v620, %v686
        %v708 = vmul.f32 %v625, %v686
        %v709 = vmul.f32 %v630, %v686
        %v710 = vmul.f32 %v635, %v686
        %v711 = vmul.f32 %v640, %v686
        %v712 = vmul.f32 %v645, %v686
        %v713 = vmul.f32 %v650, %v686
        %v714 = vmul.f32 %v655, %v686
        %v715 = vmul.f32 %v660, %v686
        %v716 = vmul.f32 %v665, %v686
        %v717 = vmul.f32 %v670, %v686
        %v718 = vmul.f32 %v675, %v686
        %v719 = vmul.f32 %v680, %v686
        %v721 = vlaneseq
        %v722 = vshrl.u32 %v721, 7
        %v723 = vsub.s32 0, %v722
        %v724 = vrot.slane %v488, %v723
        %v726 = vadd.f32 %v724, %v688
        %v727 = vadd.f32 %v724, %v689
        %v728 = vadd.f32 %v724, %v690
        %v729 = vadd.f32 %v724, %v691
        %v730 = vadd.f32 %v724, %v692
        %v731 = vadd.f32 %v724, %v693
        %v732 = vadd.f32 %v724, %v694
        %v733 = vadd.f32 %v724, %v695
        %v734 = vadd.f32 %v724, %v696
        %v735 = vadd.f32 %v724, %v697
        %v736 = vadd.f32 %v724, %v698
        %v737 = vadd.f32 %v724, %v699
        %v738 = vadd.f32 %v724, %v700
        %v739 = vadd.f32 %v724, %v701
        %v740 = vadd.f32 %v724, %v702
        %v741 = vadd.f32 %v724, %v703
        %v742 = vadd.f32 %v724, %v704
        %v743 = vadd.f32 %v724, %v705
        %v744 = vadd.f32 %v724, %v706
        %v745 = vadd.f32 %v724, %v707
        %v746 = vadd.f32 %v724, %v708
        %v747 = vadd.f32 %v724, %v709
        %v748 = vadd.f32 %v724, %v710
        %v749 = vadd.f32 %v724, %v711
        %v750 = vadd.f32 %v724, %v712
        %v751 = vadd.f32 %v724, %v713
        %v752 = vadd.f32 %v724, %v714
        %v753 = vadd.f32 %v724, %v715
        %v754 = vadd.f32 %v724, %v716
        %v755 = vadd.f32 %v724, %v717
        %v756 = vadd.f32 %v724, %v718
        %v757 = vadd.f32 %v724, %v719
        %v758 = vmax.f32 %v726, 0.0
        %v759 = vmax.f32 %v727, 0.0
        %v760 = vmax.f32 %v728, 0.0
        %v761 = vmax.f32 %v729, 0.0
        %v762 = vmax.f32 %v730, 0.0
        %v763 = vmax.f32 %v731, 0.0
        %v764 = vmax.f32 %v732, 0.0
        %v765 = vmax.f32 %v733, 0.0
        %v766 = vmax.f32 %v734, 0.0
        %v767 = vmax.f32 %v735, 0.0
        %v768 = vmax.f32 %v736, 0.0
        %v769 = vmax.f32 %v737, 0.0
        %v770 = vmax.f32 %v738, 0.0
        %v771 = vmax.f32 %v739, 0.0
        %v772 = vmax.f32 %v740, 0.0
        %v773 = vmax.f32 %v741, 0.0
        %v774 = vmax.f32 %v742, 0.0
        %v775 = vmax.f32 %v743, 0.0
        %v776 = vmax.f32 %v744, 0.0
        %v777 = vmax.f32 %v745, 0.0
        %v778 = vmax.f32 %v746, 0.0
        %v779 = vmax.f32 %v747, 0.0
        %v780 = vmax.f32 %v748, 0.0
        %v781 = vmax.f32 %v749, 0.0
        %v782 = vmax.f32 %v750, 0.0
        %v783 = vmax.f32 %v751, 0.0
        %v784 = vmax.f32 %v752, 0.0
        %v785 = vmax.f32 %v753, 0.0
        %v786 = vmax.f32 %v754, 0.0
        %v787 = vmax.f32 %v755, 0.0
        %v788 = vmax.f32 %v756, 0.0
        %v789 = vmax.f32 %v757, 0.0
        %790 = vst.msk [vmem:[#allocation2 + $0x20] sm:$0xff] %vm447, %v758
        %791 = vst.msk [vmem:[#allocation2 + $0x28] sm:$0xff] %vm447, %v759
        %792 = vst.msk [vmem:[#allocation2 + $0x30] sm:$0xff] %vm447, %v760
        %793 = vst.msk [vmem:[#allocation2 + $0x38] sm:$0xff] %vm447, %v761
        %794 = vst.msk [vmem:[#allocation2 + $0x40] sm:$0xff] %vm447, %v762
        %795 = vst.msk [vmem:[#allocation2 + $0x48] sm:$0xff] %vm447, %v763
        %796 = vst.msk [vmem:[#allocation2 + $0x50] sm:$0xff] %vm447, %v764
        %797 = vst.msk [vmem:[#allocation2 + $0x58] sm:$0xff] %vm447, %v765
        %798 = vst.msk [vmem:[#allocation2 + $0x60] sm:$0xff] %vm447, %v766
        %799 = vst.msk [vmem:[#allocation2 + $0x68] sm:$0xff] %vm447, %v767
        %800 = vst.msk [vmem:[#allocation2 + $0x70] sm:$0xff] %vm447, %v768
        %801 = vst.msk [vmem:[#allocation2 + $0x78] sm:$0xff] %vm447, %v769
        %802 = vst.msk [vmem:[#allocation2 + $0x80] sm:$0xff] %vm447, %v770
        %803 = vst.msk [vmem:[#allocation2 + $0x88] sm:$0xff] %vm447, %v771
        %804 = vst.msk [vmem:[#allocation2 + $0x90] sm:$0xff] %vm447, %v772
        %805 = vst.msk [vmem:[#allocation2 + $0x98] sm:$0xff] %vm447, %v773
        %806 = vst.msk [vmem:[#allocation2 + $0xa0] sm:$0xff] %vm447, %v774
        %807 = vst.msk [vmem:[#allocation2 + $0xa8] sm:$0xff] %vm447, %v775
        %808 = vst.msk [vmem:[#allocation2 + $0xb0] sm:$0xff] %vm447, %v776
        %809 = vst.msk [vmem:[#allocation2 + $0xb8] sm:$0xff] %vm447, %v777
        %810 = vst.msk [vmem:[#allocation2 + $0xc0] sm:$0xff] %vm447, %v778
        %811 = vst.msk [vmem:[#allocation2 + $0xc8] sm:$0xff] %vm447, %v779
        %812 = vst.msk [vmem:[#allocation2 + $0xd0] sm:$0xff] %vm447, %v780
        %813 = vst.msk [vmem:[#allocation2 + $0xd8] sm:$0xff] %vm447, %v781
        %814 = vst.msk [vmem:[#allocation2 + $0xe0] sm:$0xff] %vm447, %v782
        %815 = vst.msk [vmem:[#allocation2 + $0xe8] sm:$0xff] %vm447, %v783
        %816 = vst.msk [vmem:[#allocation2 + $0xf0] sm:$0xff] %vm447, %v784
        %817 = vst.msk [vmem:[#allocation2 + $0xf8] sm:$0xff] %vm447, %v785
        %818 = vst.msk [vmem:[#allocation2 + $0x100] sm:$0xff] %vm447, %v786
        %819 = vst.msk [vmem:[#allocation2 + $0x108] sm:$0xff] %vm447, %v787
        %820 = vst.msk [vmem:[#allocation2 + $0x110] sm:$0xff] %vm447, %v788
        %821 = vst.msk [vmem:[#allocation2 + $0x118] sm:$0xff] %vm447, %v789
        %v822 = vlaneseq
        %v823 = vshrl.u32 %v822, 7
        %v824 = vadd.s32 %v823, 8
        %v825 = vadd.s32 %v823, 16
        %v826 = vadd.s32 %v823, 24
        %v827 = vadd.s32 %v823, 32
        %v828 = vadd.s32 %v823, 40
        %v829 = vadd.s32 %v823, 48
        %v830 = vadd.s32 %v823, 56
        %v831 = vadd.s32 %v823, 64
        %v832 = vadd.s32 %v823, 72
        %v833 = vadd.s32 %v823, 80
        %v834 = vadd.s32 %v823, 88
        %v835 = vadd.s32 %v823, 96
        %v836 = vadd.s32 %v823, 104
        %v837 = vadd.s32 %v823, 112
        %v838 = vadd.s32 %v823, 120
        %v839 = vadd.s32 %v823, 128
        %v840 = vadd.s32 %v823, 136
        %v841 = vadd.s32 %v823, 144
        %v842 = vadd.s32 %v823, 152
        %v843 = vadd.s32 %v823, 160
        %v844 = vadd.s32 %v823, 168
        %v845 = vadd.s32 %v823, 176
        %v846 = vadd.s32 %v823, 184
        %v847 = vadd.s32 %v823, 192
        %v848 = vadd.s32 %v823, 200
        %v849 = vadd.s32 %v823, 208
        %v850 = vadd.s32 %v823, 216
        %v851 = vadd.s32 %v823, 224
        %v852 = vadd.s32 %v823, 232
        %v853 = vadd.s32 %v823, 240
        %v854 = vadd.s32 %v823, 248
        %vm855 = vcmp.lt.s32.totalorder %v823, 0
        %v856 = vsub.s32 0, %v823
        %v857 = vsel %vm855, %v856, %v823
        %v858 = vshrl.u32 %v857, 4
        %v859 = vand.u32 %v857, 15
        %v860 = vsub.s32 0, %v859
        %v861 = vsel %vm855, %v860, %v859
        %vm862 = vcmp.lt.s32.totalorder %v824, 0
        %v863 = vsub.s32 0, %v824
        %v864 = vsel %vm862, %v863, %v824
        %v865 = vshrl.u32 %v864, 4
        %v866 = vand.u32 %v864, 15
        %v867 = vsub.s32 0, %v866
        %v868 = vsel %vm862, %v867, %v866
        %vm869 = vcmp.lt.s32.totalorder %v825, 0
        %v870 = vsub.s32 0, %v825
        %v871 = vsel %vm869, %v870, %v825
        %v872 = vshrl.u32 %v871, 4
        %v873 = vand.u32 %v871, 15
        %v874 = vsub.s32 0, %v873
        %v875 = vsel %vm869, %v874, %v873
        %vm876 = vcmp.lt.s32.totalorder %v826, 0
        %v877 = vsub.s32 0, %v826
        %v878 = vsel %vm876, %v877, %v826
        %v879 = vshrl.u32 %v878, 4
        %v880 = vand.u32 %v878, 15
        %v881 = vsub.s32 0, %v880
        %v882 = vsel %vm876, %v881, %v880
        %vm883 = vcmp.lt.s32.totalorder %v827, 0
        %v884 = vsub.s32 0, %v827
        %v885 = vsel %vm883, %v884, %v827
        %v886 = vshrl.u32 %v885, 4
        %v887 = vand.u32 %v885, 15
        %v888 = vsub.s32 0, %v887
        %v889 = vsel %vm883, %v888, %v887
        %vm890 = vcmp.lt.s32.totalorder %v828, 0
        %v891 = vsub.s32 0, %v828
        %v892 = vsel %vm890, %v891, %v828
        %v893 = vshrl.u32 %v892, 4
        %v894 = vand.u32 %v892, 15
        %v895 = vsub.s32 0, %v894
        %v896 = vsel %vm890, %v895, %v894
        %vm897 = vcmp.lt.s32.totalorder %v829, 0
        %v898 = vsub.s32 0, %v829
        %v899 = vsel %vm897, %v898, %v829
        %v900 = vshrl.u32 %v899, 4
        %v901 = vand.u32 %v899, 15
        %v902 = vsub.s32 0, %v901
        %v903 = vsel %vm897, %v902, %v901
        %vm904 = vcmp.lt.s32.totalorder %v830, 0
        %v905 = vsub.s32 0, %v830
        %v906 = vsel %vm904, %v905, %v830
        %v907 = vshrl.u32 %v906, 4
        %v908 = vand.u32 %v906, 15
        %v909 = vsub.s32 0, %v908
        %v910 = vsel %vm904, %v909, %v908
        %vm911 = vcmp.lt.s32.totalorder %v831, 0
        %v912 = vsub.s32 0, %v831
        %v913 = vsel %vm911, %v912, %v831
        %v914 = vshrl.u32 %v913, 4
        %v915 = vand.u32 %v913, 15
        %v916 = vsub.s32 0, %v915
        %v917 = vsel %vm911, %v916, %v915
        %vm918 = vcmp.lt.s32.totalorder %v832, 0
        %v919 = vsub.s32 0, %v832
        %v920 = vsel %vm918, %v919, %v832
        %v921 = vshrl.u32 %v920, 4
        %v922 = vand.u32 %v920, 15
        %v923 = vsub.s32 0, %v922
        %v924 = vsel %vm918, %v923, %v922
        %vm925 = vcmp.lt.s32.totalorder %v833, 0
        %v926 = vsub.s32 0, %v833
        %v927 = vsel %vm925, %v926, %v833
        %v928 = vshrl.u32 %v927, 4
        %v929 = vand.u32 %v927, 15
        %v930 = vsub.s32 0, %v929
        %v931 = vsel %vm925, %v930, %v929
        %vm932 = vcmp.lt.s32.totalorder %v834, 0
        %v933 = vsub.s32 0, %v834
        %v934 = vsel %vm932, %v933, %v834
        %v935 = vshrl.u32 %v934, 4
        %v936 = vand.u32 %v934, 15
        %v937 = vsub.s32 0, %v936
        %v938 = vsel %vm932, %v937, %v936
        %vm939 = vcmp.lt.s32.totalorder %v835, 0
        %v940 = vsub.s32 0, %v835
        %v941 = vsel %vm939, %v940, %v835
        %v942 = vshrl.u32 %v941, 4
        %v943 = vand.u32 %v941, 15
        %v944 = vsub.s32 0, %v943
        %v945 = vsel %vm939, %v944, %v943
        %vm946 = vcmp.lt.s32.totalorder %v836, 0
        %v947 = vsub.s32 0, %v836
        %v948 = vsel %vm946, %v947, %v836
        %v949 = vshrl.u32 %v948, 4
        %v950 = vand.u32 %v948, 15
        %v951 = vsub.s32 0, %v950
        %v952 = vsel %vm946, %v951, %v950
        %vm953 = vcmp.lt.s32.totalorder %v837, 0
        %v954 = vsub.s32 0, %v837
        %v955 = vsel %vm953, %v954, %v837
        %v956 = vshrl.u32 %v955, 4
        %v957 = vand.u32 %v955, 15
        %v958 = vsub.s32 0, %v957
        %v959 = vsel %vm953, %v958, %v957
        %vm960 = vcmp.lt.s32.totalorder %v838, 0
        %v961 = vsub.s32 0, %v838
        %v962 = vsel %vm960, %v961, %v838
        %v963 = vshrl.u32 %v962, 4
        %v964 = vand.u32 %v962, 15
        %v965 = vsub.s32 0, %v964
        %v966 = vsel %vm960, %v965, %v964
        %vm967 = vcmp.lt.s32.totalorder %v839, 0
        %v968 = vsub.s32 0, %v839
        %v969 = vsel %vm967, %v968, %v839
        %v970 = vshrl.u32 %v969, 4
        %v971 = vand.u32 %v969, 15
        %v972 = vsub.s32 0, %v971
        %v973 = vsel %vm967, %v972, %v971
        %vm974 = vcmp.lt.s32.totalorder %v840, 0
        %v975 = vsub.s32 0, %v840
        %v976 = vsel %vm974, %v975, %v840
        %v977 = vshrl.u32 %v976, 4
        %v978 = vand.u32 %v976, 15
        %v979 = vsub.s32 0, %v978
        %v980 = vsel %vm974, %v979, %v978
        %vm981 = vcmp.lt.s32.totalorder %v841, 0
        %v982 = vsub.s32 0, %v841
        %v983 = vsel %vm981, %v982, %v841
        %v984 = vshrl.u32 %v983, 4
        %v985 = vand.u32 %v983, 15
        %v986 = vsub.s32 0, %v985
        %v987 = vsel %vm981, %v986, %v985
        %vm988 = vcmp.lt.s32.totalorder %v842, 0
        %v989 = vsub.s32 0, %v842
        %v990 = vsel %vm988, %v989, %v842
        %v991 = vshrl.u32 %v990, 4
        %v992 = vand.u32 %v990, 15
        %v993 = vsub.s32 0, %v992
        %v994 = vsel %vm988, %v993, %v992
        %vm995 = vcmp.lt.s32.totalorder %v843, 0
        %v996 = vsub.s32 0, %v843
        %v997 = vsel %vm995, %v996, %v843
        %v998 = vshrl.u32 %v997, 4
        %v999 = vand.u32 %v997, 15
        %v1000 = vsub.s32 0, %v999
        %v1001 = vsel %vm995, %v1000, %v999
        %vm1002 = vcmp.lt.s32.totalorder %v844, 0
        %v1003 = vsub.s32 0, %v844
        %v1004 = vsel %vm1002, %v1003, %v844
        %v1005 = vshrl.u32 %v1004, 4
        %v1006 = vand.u32 %v1004, 15
        %v1007 = vsub.s32 0, %v1006
        %v1008 = vsel %vm1002, %v1007, %v1006
        %vm1009 = vcmp.lt.s32.totalorder %v845, 0
        %v1010 = vsub.s32 0, %v845
        %v1011 = vsel %vm1009, %v1010, %v845
        %v1012 = vshrl.u32 %v1011, 4
        %v1013 = vand.u32 %v1011, 15
        %v1014 = vsub.s32 0, %v1013
        %v1015 = vsel %vm1009, %v1014, %v1013
        %vm1016 = vcmp.lt.s32.totalorder %v846, 0
        %v1017 = vsub.s32 0, %v846
        %v1018 = vsel %vm1016, %v1017, %v846
        %v1019 = vshrl.u32 %v1018, 4
        %v1020 = vand.u32 %v1018, 15
        %v1021 = vsub.s32 0, %v1020
        %v1022 = vsel %vm1016, %v1021, %v1020
        %vm1023 = vcmp.lt.s32.totalorder %v847, 0
        %v1024 = vsub.s32 0, %v847
        %v1025 = vsel %vm1023, %v1024, %v847
        %v1026 = vshrl.u32 %v1025, 4
        %v1027 = vand.u32 %v1025, 15
        %v1028 = vsub.s32 0, %v1027
        %v1029 = vsel %vm1023, %v1028, %v1027
        %vm1030 = vcmp.lt.s32.totalorder %v848, 0
        %v1031 = vsub.s32 0, %v848
        %v1032 = vsel %vm1030, %v1031, %v848
        %v1033 = vshrl.u32 %v1032, 4
        %v1034 = vand.u32 %v1032, 15
        %v1035 = vsub.s32 0, %v1034
        %v1036 = vsel %vm1030, %v1035, %v1034
        %vm1037 = vcmp.lt.s32.totalorder %v849, 0
        %v1038 = vsub.s32 0, %v849
        %v1039 = vsel %vm1037, %v1038, %v849
        %v1040 = vshrl.u32 %v1039, 4
        %v1041 = vand.u32 %v1039, 15
        %v1042 = vsub.s32 0, %v1041
        %v1043 = vsel %vm1037, %v1042, %v1041
        %vm1044 = vcmp.lt.s32.totalorder %v850, 0
        %v1045 = vsub.s32 0, %v850
        %v1046 = vsel %vm1044, %v1045, %v850
        %v1047 = vshrl.u32 %v1046, 4
        %v1048 = vand.u32 %v1046, 15
        %v1049 = vsub.s32 0, %v1048
        %v1050 = vsel %vm1044, %v1049, %v1048
        %vm1051 = vcmp.lt.s32.totalorder %v851, 0
        %v1052 = vsub.s32 0, %v851
        %v1053 = vsel %vm1051, %v1052, %v851
        %v1054 = vshrl.u32 %v1053, 4
        %v1055 = vand.u32 %v1053, 15
        %v1056 = vsub.s32 0, %v1055
        %v1057 = vsel %vm1051, %v1056, %v1055
        %vm1058 = vcmp.lt.s32.totalorder %v852, 0
        %v1059 = vsub.s32 0, %v852
        %v1060 = vsel %vm1058, %v1059, %v852
        %v1061 = vshrl.u32 %v1060, 4
        %v1062 = vand.u32 %v1060, 15
        %v1063 = vsub.s32 0, %v1062
        %v1064 = vsel %vm1058, %v1063, %v1062
        %vm1065 = vcmp.lt.s32.totalorder %v853, 0
        %v1066 = vsub.s32 0, %v853
        %v1067 = vsel %vm1065, %v1066, %v853
        %v1068 = vshrl.u32 %v1067, 4
        %v1069 = vand.u32 %v1067, 15
        %v1070 = vsub.s32 0, %v1069
        %v1071 = vsel %vm1065, %v1070, %v1069
        %vm1072 = vcmp.lt.s32.totalorder %v854, 0
        %v1073 = vsub.s32 0, %v854
        %v1074 = vsel %vm1072, %v1073, %v854
        %v1075 = vshrl.u32 %v1074, 4
        %v1076 = vand.u32 %v1074, 15
        %v1077 = vsub.s32 0, %v1076
        %v1078 = vsel %vm1072, %v1077, %v1076
        %vm1079 = vcmp.ne.s32.totalorder %v861, 0
        %vm1080 = vcmp.ne.s32.totalorder %v868, 0
        %vm1081 = vcmp.ne.s32.totalorder %v875, 0
        %vm1082 = vcmp.ne.s32.totalorder %v882, 0
        %vm1083 = vcmp.ne.s32.totalorder %v889, 0
        %vm1084 = vcmp.ne.s32.totalorder %v896, 0
        %vm1085 = vcmp.ne.s32.totalorder %v903, 0
        %vm1086 = vcmp.ne.s32.totalorder %v910, 0
        %vm1087 = vcmp.ne.s32.totalorder %v917, 0
        %vm1088 = vcmp.ne.s32.totalorder %v924, 0
        %vm1089 = vcmp.ne.s32.totalorder %v931, 0
        %vm1090 = vcmp.ne.s32.totalorder %v938, 0
        %vm1091 = vcmp.ne.s32.totalorder %v945, 0
        %vm1092 = vcmp.ne.s32.totalorder %v952, 0
        %vm1093 = vcmp.ne.s32.totalorder %v959, 0
        %vm1094 = vcmp.ne.s32.totalorder %v966, 0
        %vm1095 = vcmp.ne.s32.totalorder %v973, 0
        %vm1096 = vcmp.ne.s32.totalorder %v980, 0
        %vm1097 = vcmp.ne.s32.totalorder %v987, 0
        %vm1098 = vcmp.ne.s32.totalorder %v994, 0
        %vm1099 = vcmp.ne.s32.totalorder %v1001, 0
        %vm1100 = vcmp.ne.s32.totalorder %v1008, 0
        %vm1101 = vcmp.ne.s32.totalorder %v1015, 0
        %vm1102 = vcmp.ne.s32.totalorder %v1022, 0
        %vm1103 = vcmp.ne.s32.totalorder %v1029, 0
        %vm1104 = vcmp.ne.s32.totalorder %v1036, 0
        %vm1105 = vcmp.ne.s32.totalorder %v1043, 0
        %vm1106 = vcmp.ne.s32.totalorder %v1050, 0
        %vm1107 = vcmp.ne.s32.totalorder %v1057, 0
        %vm1108 = vcmp.ne.s32.totalorder %v1064, 0
        %vm1109 = vcmp.ne.s32.totalorder %v1071, 0
        %vm1110 = vcmp.ne.s32.totalorder %v1078, 0
        %vm1111 = vcmp.lt.s32.totalorder %v861, 0
        %vm1112 = vcmp.lt.s32.totalorder %v868, 0
        %vm1113 = vcmp.lt.s32.totalorder %v875, 0
        %vm1114 = vcmp.lt.s32.totalorder %v882, 0
        %vm1115 = vcmp.lt.s32.totalorder %v889, 0
        %vm1116 = vcmp.lt.s32.totalorder %v896, 0
        %vm1117 = vcmp.lt.s32.totalorder %v903, 0
        %vm1118 = vcmp.lt.s32.totalorder %v910, 0
        %vm1119 = vcmp.lt.s32.totalorder %v917, 0
        %vm1120 = vcmp.lt.s32.totalorder %v924, 0
        %vm1121 = vcmp.lt.s32.totalorder %v931, 0
        %vm1122 = vcmp.lt.s32.totalorder %v938, 0
        %vm1123 = vcmp.lt.s32.totalorder %v945, 0
        %vm1124 = vcmp.lt.s32.totalorder %v952, 0
        %vm1125 = vcmp.lt.s32.totalorder %v959, 0
        %vm1126 = vcmp.lt.s32.totalorder %v966, 0
        %vm1127 = vcmp.lt.s32.totalorder %v973, 0
        %vm1128 = vcmp.lt.s32.totalorder %v980, 0
        %vm1129 = vcmp.lt.s32.totalorder %v987, 0
        %vm1130 = vcmp.lt.s32.totalorder %v994, 0
        %vm1131 = vcmp.lt.s32.totalorder %v1001, 0
        %vm1132 = vcmp.lt.s32.totalorder %v1008, 0
        %vm1133 = vcmp.lt.s32.totalorder %v1015, 0
        %vm1134 = vcmp.lt.s32.totalorder %v1022, 0
        %vm1135 = vcmp.lt.s32.totalorder %v1029, 0
        %vm1136 = vcmp.lt.s32.totalorder %v1036, 0
        %vm1137 = vcmp.lt.s32.totalorder %v1043, 0
        %vm1138 = vcmp.lt.s32.totalorder %v1050, 0
        %vm1139 = vcmp.lt.s32.totalorder %v1057, 0
        %vm1140 = vcmp.lt.s32.totalorder %v1064, 0
        %vm1141 = vcmp.lt.s32.totalorder %v1071, 0
        %vm1142 = vcmp.lt.s32.totalorder %v1078, 0
        %vm1143 = vmand %vm1111, %vm1079
        %vm1144 = vmand %vm1112, %vm1080
        %vm1145 = vmand %vm1113, %vm1081
        %vm1146 = vmand %vm1114, %vm1082
        %vm1147 = vmand %vm1115, %vm1083
        %vm1148 = vmand %vm1116, %vm1084
        %vm1149 = vmand %vm1117, %vm1085
        %vm1150 = vmand %vm1118, %vm1086
        %vm1151 = vmand %vm1119, %vm1087
        %vm1152 = vmand %vm1120, %vm1088
        %vm1153 = vmand %vm1121, %vm1089
        %vm1154 = vmand %vm1122, %vm1090
        %vm1155 = vmand %vm1123, %vm1091
        %vm1156 = vmand %vm1124, %vm1092
        %vm1157 = vmand %vm1125, %vm1093
        %vm1158 = vmand %vm1126, %vm1094
        %vm1159 = vmand %vm1127, %vm1095
        %vm1160 = vmand %vm1128, %vm1096
        %vm1161 = vmand %vm1129, %vm1097
        %vm1162 = vmand %vm1130, %vm1098
        %vm1163 = vmand %vm1131, %vm1099
        %vm1164 = vmand %vm1132, %vm1100
        %vm1165 = vmand %vm1133, %vm1101
        %vm1166 = vmand %vm1134, %vm1102
        %vm1167 = vmand %vm1135, %vm1103
        %vm1168 = vmand %vm1136, %vm1104
        %vm1169 = vmand %vm1137, %vm1105
        %vm1170 = vmand %vm1138, %vm1106
        %vm1171 = vmand %vm1139, %vm1107
        %vm1172 = vmand %vm1140, %vm1108
        %vm1173 = vmand %vm1141, %vm1109
        %vm1174 = vmand %vm1142, %vm1110
        %v1175 = vadd.s32 %v861, 16
        %v1176 = vadd.s32 %v868, 16
        %v1177 = vadd.s32 %v875, 16
        %v1178 = vadd.s32 %v882, 16
        %v1179 = vadd.s32 %v889, 16
        %v1180 = vadd.s32 %v896, 16
        %v1181 = vadd.s32 %v903, 16
        %v1182 = vadd.s32 %v910, 16
        %v1183 = vadd.s32 %v917, 16
        %v1184 = vadd.s32 %v924, 16
        %v1185 = vadd.s32 %v931, 16
        %v1186 = vadd.s32 %v938, 16
        %v1187 = vadd.s32 %v945, 16
        %v1188 = vadd.s32 %v952, 16
        %v1189 = vadd.s32 %v959, 16
        %v1190 = vadd.s32 %v966, 16
        %v1191 = vadd.s32 %v973, 16
        %v1192 = vadd.s32 %v980, 16
        %v1193 = vadd.s32 %v987, 16
        %v1194 = vadd.s32 %v994, 16
        %v1195 = vadd.s32 %v1001, 16
        %v1196 = vadd.s32 %v1008, 16
        %v1197 = vadd.s32 %v1015, 16
        %v1198 = vadd.s32 %v1022, 16
        %v1199 = vadd.s32 %v1029, 16
        %v1200 = vadd.s32 %v1036, 16
        %v1201 = vadd.s32 %v1043, 16
        %v1202 = vadd.s32 %v1050, 16
        %v1203 = vadd.s32 %v1057, 16
        %v1204 = vadd.s32 %v1064, 16
        %v1205 = vadd.s32 %v1071, 16
        %v1206 = vadd.s32 %v1078, 16
        %v1207 = vsel %vm1143, %v1175, %v861
        %v1208 = vsel %vm1144, %v1176, %v868
        %v1209 = vsel %vm1145, %v1177, %v875
        %v1210 = vsel %vm1146, %v1178, %v882
        %v1211 = vsel %vm1147, %v1179, %v889
        %v1212 = vsel %vm1148, %v1180, %v896
        %v1213 = vsel %vm1149, %v1181, %v903
        %v1214 = vsel %vm1150, %v1182, %v910
        %v1215 = vsel %vm1151, %v1183, %v917
        %v1216 = vsel %vm1152, %v1184, %v924
        %v1217 = vsel %vm1153, %v1185, %v931
        %v1218 = vsel %vm1154, %v1186, %v938
        %v1219 = vsel %vm1155, %v1187, %v945
        %v1220 = vsel %vm1156, %v1188, %v952
        %v1221 = vsel %vm1157, %v1189, %v959
        %v1222 = vsel %vm1158, %v1190, %v966
        %v1223 = vsel %vm1159, %v1191, %v973
        %v1224 = vsel %vm1160, %v1192, %v980
        %v1225 = vsel %vm1161, %v1193, %v987
        %v1226 = vsel %vm1162, %v1194, %v994
        %v1227 = vsel %vm1163, %v1195, %v1001
        %v1228 = vsel %vm1164, %v1196, %v1008
        %v1229 = vsel %vm1165, %v1197, %v1015
        %v1230 = vsel %vm1166, %v1198, %v1022
        %v1231 = vsel %vm1167, %v1199, %v1029
        %v1232 = vsel %vm1168, %v1200, %v1036
        %v1233 = vsel %vm1169, %v1201, %v1043
        %v1234 = vsel %vm1170, %v1202, %v1050
        %v1235 = vsel %vm1171, %v1203, %v1057
        %v1236 = vsel %vm1172, %v1204, %v1064
        %v1237 = vsel %vm1173, %v1205, %v1071
        %v1238 = vsel %vm1174, %v1206, %v1078
        %v1239 = vadd.s32 %v1207, 4294967294
        %v1240 = vadd.s32 %v1208, 4294967294
        %v1241 = vadd.s32 %v1209, 4294967294
        %v1242 = vadd.s32 %v1210, 4294967294
        %v1243 = vadd.s32 %v1211, 4294967294
        %v1244 = vadd.s32 %v1212, 4294967294
        %v1245 = vadd.s32 %v1213, 4294967294
        %v1246 = vadd.s32 %v1214, 4294967294
        %v1247 = vadd.s32 %v1215, 4294967294
        %v1248 = vadd.s32 %v1216, 4294967294
        %v1249 = vadd.s32 %v1217, 4294967294
        %v1250 = vadd.s32 %v1218, 4294967294
        %v1251 = vadd.s32 %v1219, 4294967294
        %v1252 = vadd.s32 %v1220, 4294967294
        %v1253 = vadd.s32 %v1221, 4294967294
        %v1254 = vadd.s32 %v1222, 4294967294
        %v1255 = vadd.s32 %v1223, 4294967294
        %v1256 = vadd.s32 %v1224, 4294967294
        %v1257 = vadd.s32 %v1225, 4294967294
        %v1258 = vadd.s32 %v1226, 4294967294
        %v1259 = vadd.s32 %v1227, 4294967294
        %v1260 = vadd.s32 %v1228, 4294967294
        %v1261 = vadd.s32 %v1229, 4294967294
        %v1262 = vadd.s32 %v1230, 4294967294
        %v1263 = vadd.s32 %v1231, 4294967294
        %v1264 = vadd.s32 %v1232, 4294967294
        %v1265 = vadd.s32 %v1233, 4294967294
        %v1266 = vadd.s32 %v1234, 4294967294
        %v1267 = vadd.s32 %v1235, 4294967294
        %v1268 = vadd.s32 %v1236, 4294967294
        %v1269 = vadd.s32 %v1237, 4294967294
        %v1270 = vadd.s32 %v1238, 4294967294
        %vm1271 = vcmp.ge.s32.totalorder %v1239, 0
        %vm1272 = vcmp.ge.s32.totalorder %v1240, 0
        %vm1273 = vcmp.ge.s32.totalorder %v1241, 0
        %vm1274 = vcmp.ge.s32.totalorder %v1242, 0
        %vm1275 = vcmp.ge.s32.totalorder %v1243, 0
        %vm1276 = vcmp.ge.s32.totalorder %v1244, 0
        %vm1277 = vcmp.ge.s32.totalorder %v1245, 0
        %vm1278 = vcmp.ge.s32.totalorder %v1246, 0
        %vm1279 = vcmp.ge.s32.totalorder %v1247, 0
        %vm1280 = vcmp.ge.s32.totalorder %v1248, 0
        %vm1281 = vcmp.ge.s32.totalorder %v1249, 0
        %vm1282 = vcmp.ge.s32.totalorder %v1250, 0
        %vm1283 = vcmp.ge.s32.totalorder %v1251, 0
        %vm1284 = vcmp.ge.s32.totalorder %v1252, 0
        %vm1285 = vcmp.ge.s32.totalorder %v1253, 0
        %vm1286 = vcmp.ge.s32.totalorder %v1254, 0
        %vm1287 = vcmp.ge.s32.totalorder %v1255, 0
        %vm1288 = vcmp.ge.s32.totalorder %v1256, 0
        %vm1289 = vcmp.ge.s32.totalorder %v1257, 0
        %vm1290 = vcmp.ge.s32.totalorder %v1258, 0
        %vm1291 = vcmp.ge.s32.totalorder %v1259, 0
        %vm1292 = vcmp.ge.s32.totalorder %v1260, 0
        %vm1293 = vcmp.ge.s32.totalorder %v1261, 0
        %vm1294 = vcmp.ge.s32.totalorder %v1262, 0
        %vm1295 = vcmp.ge.s32.totalorder %v1263, 0
        %vm1296 = vcmp.ge.s32.totalorder %v1264, 0
        %vm1297 = vcmp.ge.s32.totalorder %v1265, 0
        %vm1298 = vcmp.ge.s32.totalorder %v1266, 0
        %vm1299 = vcmp.ge.s32.totalorder %v1267, 0
        %vm1300 = vcmp.ge.s32.totalorder %v1268, 0
        %vm1301 = vcmp.ge.s32.totalorder %v1269, 0
        %vm1302 = vcmp.ge.s32.totalorder %v1270, 0
        %vm1303 = vcmp.lt.s32.totalorder %v1239, 16
        %vm1304 = vcmp.lt.s32.totalorder %v1240, 16
        %vm1305 = vcmp.lt.s32.totalorder %v1241, 16
        %vm1306 = vcmp.lt.s32.totalorder %v1242, 16
        %vm1307 = vcmp.lt.s32.totalorder %v1243, 16
        %vm1308 = vcmp.lt.s32.totalorder %v1244, 16
        %vm1309 = vcmp.lt.s32.totalorder %v1245, 16
        %vm1310 = vcmp.lt.s32.totalorder %v1246, 16
        %vm1311 = vcmp.lt.s32.totalorder %v1247, 16
        %vm1312 = vcmp.lt.s32.totalorder %v1248, 16
        %vm1313 = vcmp.lt.s32.totalorder %v1249, 16
        %vm1314 = vcmp.lt.s32.totalorder %v1250, 16
        %vm1315 = vcmp.lt.s32.totalorder %v1251, 16
        %vm1316 = vcmp.lt.s32.totalorder %v1252, 16
        %vm1317 = vcmp.lt.s32.totalorder %v1253, 16
        %vm1318 = vcmp.lt.s32.totalorder %v1254, 16
        %vm1319 = vcmp.lt.s32.totalorder %v1255, 16
        %vm1320 = vcmp.lt.s32.totalorder %v1256, 16
        %vm1321 = vcmp.lt.s32.totalorder %v1257, 16
        %vm1322 = vcmp.lt.s32.totalorder %v1258, 16
        %vm1323 = vcmp.lt.s32.totalorder %v1259, 16
        %vm1324 = vcmp.lt.s32.totalorder %v1260, 16
        %vm1325 = vcmp.lt.s32.totalorder %v1261, 16
        %vm1326 = vcmp.lt.s32.totalorder %v1262, 16
        %vm1327 = vcmp.lt.s32.totalorder %v1263, 16
        %vm1328 = vcmp.lt.s32.totalorder %v1264, 16
        %vm1329 = vcmp.lt.s32.totalorder %v1265, 16
        %vm1330 = vcmp.lt.s32.totalorder %v1266, 16
        %vm1331 = vcmp.lt.s32.totalorder %v1267, 16
        %vm1332 = vcmp.lt.s32.totalorder %v1268, 16
        %vm1333 = vcmp.lt.s32.totalorder %v1269, 16
        %vm1334 = vcmp.lt.s32.totalorder %v1270, 16
        %vm1335 = vmand %vm1271, %vm1303
        %vm1336 = vmand %vm1272, %vm1304
        %vm1337 = vmand %vm1273, %vm1305
        %vm1338 = vmand %vm1274, %vm1306
        %vm1339 = vmand %vm1275, %vm1307
        %vm1340 = vmand %vm1276, %vm1308
        %vm1341 = vmand %vm1277, %vm1309
        %vm1342 = vmand %vm1278, %vm1310
        %vm1343 = vmand %vm1279, %vm1311
        %vm1344 = vmand %vm1280, %vm1312
        %vm1345 = vmand %vm1281, %vm1313
        %vm1346 = vmand %vm1282, %vm1314
        %vm1347 = vmand %vm1283, %vm1315
        %vm1348 = vmand %vm1284, %vm1316
        %vm1349 = vmand %vm1285, %vm1317
        %vm1350 = vmand %vm1286, %vm1318
        %vm1351 = vmand %vm1287, %vm1319
        %vm1352 = vmand %vm1288, %vm1320
        %vm1353 = vmand %vm1289, %vm1321
        %vm1354 = vmand %vm1290, %vm1322
        %vm1355 = vmand %vm1291, %vm1323
        %vm1356 = vmand %vm1292, %vm1324
        %vm1357 = vmand %vm1293, %vm1325
        %vm1358 = vmand %vm1294, %vm1326
        %vm1359 = vmand %vm1295, %vm1327
        %vm1360 = vmand %vm1296, %vm1328
        %vm1361 = vmand %vm1297, %vm1329
        %vm1362 = vmand %vm1298, %vm1330
        %vm1363 = vmand %vm1299, %vm1331
        %vm1364 = vmand %vm1300, %vm1332
        %vm1365 = vmand %vm1301, %vm1333
        %vm1366 = vmand %vm1302, %vm1334
        %v1367 = vadd.s32 %v1207, 4294967295
        %v1368 = vadd.s32 %v1208, 4294967295
        %v1369 = vadd.s32 %v1209, 4294967295
        %v1370 = vadd.s32 %v1210, 4294967295
        %v1371 = vadd.s32 %v1211, 4294967295
        %v1372 = vadd.s32 %v1212, 4294967295
        %v1373 = vadd.s32 %v1213, 4294967295
        %v1374 = vadd.s32 %v1214, 4294967295
        %v1375 = vadd.s32 %v1215, 4294967295
        %v1376 = vadd.s32 %v1216, 4294967295
        %v1377 = vadd.s32 %v1217, 4294967295
        %v1378 = vadd.s32 %v1218, 4294967295
        %v1379 = vadd.s32 %v1219, 4294967295
        %v1380 = vadd.s32 %v1220, 4294967295
        %v1381 = vadd.s32 %v1221, 4294967295
        %v1382 = vadd.s32 %v1222, 4294967295
        %v1383 = vadd.s32 %v1223, 4294967295
        %v1384 = vadd.s32 %v1224, 4294967295
        %v1385 = vadd.s32 %v1225, 4294967295
        %v1386 = vadd.s32 %v1226, 4294967295
        %v1387 = vadd.s32 %v1227, 4294967295
        %v1388 = vadd.s32 %v1228, 4294967295
        %v1389 = vadd.s32 %v1229, 4294967295
        %v1390 = vadd.s32 %v1230, 4294967295
        %v1391 = vadd.s32 %v1231, 4294967295
        %v1392 = vadd.s32 %v1232, 4294967295
        %v1393 = vadd.s32 %v1233, 4294967295
        %v1394 = vadd.s32 %v1234, 4294967295
        %v1395 = vadd.s32 %v1235, 4294967295
        %v1396 = vadd.s32 %v1236, 4294967295
        %v1397 = vadd.s32 %v1237, 4294967295
        %v1398 = vadd.s32 %v1238, 4294967295
        %vm1399 = vcmp.ge.s32.totalorder %v1367, 0
        %vm1400 = vcmp.ge.s32.totalorder %v1368, 0
        %vm1401 = vcmp.ge.s32.totalorder %v1369, 0
        %vm1402 = vcmp.ge.s32.totalorder %v1370, 0
        %vm1403 = vcmp.ge.s32.totalorder %v1371, 0
        %vm1404 = vcmp.ge.s32.totalorder %v1372, 0
        %vm1405 = vcmp.ge.s32.totalorder %v1373, 0
        %vm1406 = vcmp.ge.s32.totalorder %v1374, 0
        %vm1407 = vcmp.ge.s32.totalorder %v1375, 0
        %vm1408 = vcmp.ge.s32.totalorder %v1376, 0
        %vm1409 = vcmp.ge.s32.totalorder %v1377, 0
        %vm1410 = vcmp.ge.s32.totalorder %v1378, 0
        %vm1411 = vcmp.ge.s32.totalorder %v1379, 0
        %vm1412 = vcmp.ge.s32.totalorder %v1380, 0
        %vm1413 = vcmp.ge.s32.totalorder %v1381, 0
        %vm1414 = vcmp.ge.s32.totalorder %v1382, 0
        %vm1415 = vcmp.ge.s32.totalorder %v1383, 0
        %vm1416 = vcmp.ge.s32.totalorder %v1384, 0
        %vm1417 = vcmp.ge.s32.totalorder %v1385, 0
        %vm1418 = vcmp.ge.s32.totalorder %v1386, 0
        %vm1419 = vcmp.ge.s32.totalorder %v1387, 0
        %vm1420 = vcmp.ge.s32.totalorder %v1388, 0
        %vm1421 = vcmp.ge.s32.totalorder %v1389, 0
        %vm1422 = vcmp.ge.s32.totalorder %v1390, 0
        %vm1423 = vcmp.ge.s32.totalorder %v1391, 0
        %vm1424 = vcmp.ge.s32.totalorder %v1392, 0
        %vm1425 = vcmp.ge.s32.totalorder %v1393, 0
        %vm1426 = vcmp.ge.s32.totalorder %v1394, 0
        %vm1427 = vcmp.ge.s32.totalorder %v1395, 0
        %vm1428 = vcmp.ge.s32.totalorder %v1396, 0
        %vm1429 = vcmp.ge.s32.totalorder %v1397, 0
        %vm1430 = vcmp.ge.s32.totalorder %v1398, 0
        %vm1431 = vcmp.lt.s32.totalorder %v1367, 16
        %vm1432 = vcmp.lt.s32.totalorder %v1368, 16
        %vm1433 = vcmp.lt.s32.totalorder %v1369, 16
        %vm1434 = vcmp.lt.s32.totalorder %v1370, 16
        %vm1435 = vcmp.lt.s32.totalorder %v1371, 16
        %vm1436 = vcmp.lt.s32.totalorder %v1372, 16
        %vm1437 = vcmp.lt.s32.totalorder %v1373, 16
        %vm1438 = vcmp.lt.s32.totalorder %v1374, 16
        %vm1439 = vcmp.lt.s32.totalorder %v1375, 16
        %vm1440 = vcmp.lt.s32.totalorder %v1376, 16
        %vm1441 = vcmp.lt.s32.totalorder %v1377, 16
        %vm1442 = vcmp.lt.s32.totalorder %v1378, 16
        %vm1443 = vcmp.lt.s32.totalorder %v1379, 16
        %vm1444 = vcmp.lt.s32.totalorder %v1380, 16
        %vm1445 = vcmp.lt.s32.totalorder %v1381, 16
        %vm1446 = vcmp.lt.s32.totalorder %v1382, 16
        %vm1447 = vcmp.lt.s32.totalorder %v1383, 16
        %vm1448 = vcmp.lt.s32.totalorder %v1384, 16
        %vm1449 = vcmp.lt.s32.totalorder %v1385, 16
        %vm1450 = vcmp.lt.s32.totalorder %v1386, 16
        %vm1451 = vcmp.lt.s32.totalorder %v1387, 16
        %vm1452 = vcmp.lt.s32.totalorder %v1388, 16
        %vm1453 = vcmp.lt.s32.totalorder %v1389, 16
        %vm1454 = vcmp.lt.s32.totalorder %v1390, 16
        %vm1455 = vcmp.lt.s32.totalorder %v1391, 16
        %vm1456 = vcmp.lt.s32.totalorder %v1392, 16
        %vm1457 = vcmp.lt.s32.totalorder %v1393, 16
        %vm1458 = vcmp.lt.s32.totalorder %v1394, 16
        %vm1459 = vcmp.lt.s32.totalorder %v1395, 16
        %vm1460 = vcmp.lt.s32.totalorder %v1396, 16
        %vm1461 = vcmp.lt.s32.totalorder %v1397, 16
        %vm1462 = vcmp.lt.s32.totalorder %v1398, 16
        %vm1463 = vmand %vm1399, %vm1431
        %vm1464 = vmand %vm1400, %vm1432
        %vm1465 = vmand %vm1401, %vm1433
        %vm1466 = vmand %vm1402, %vm1434
        %vm1467 = vmand %vm1403, %vm1435
        %vm1468 = vmand %vm1404, %vm1436
        %vm1469 = vmand %vm1405, %vm1437
        %vm1470 = vmand %vm1406, %vm1438
        %vm1471 = vmand %vm1407, %vm1439
        %vm1472 = vmand %vm1408, %vm1440
        %vm1473 = vmand %vm1409, %vm1441
        %vm1474 = vmand %vm1410, %vm1442
        %vm1475 = vmand %vm1411, %vm1443
        %vm1476 = vmand %vm1412, %vm1444
        %vm1477 = vmand %vm1413, %vm1445
        %vm1478 = vmand %vm1414, %vm1446
        %vm1479 = vmand %vm1415, %vm1447
        %vm1480 = vmand %vm1416, %vm1448
        %vm1481 = vmand %vm1417, %vm1449
        %vm1482 = vmand %vm1418, %vm1450
        %vm1483 = vmand %vm1419, %vm1451
        %vm1484 = vmand %vm1420, %vm1452
        %vm1485 = vmand %vm1421, %vm1453
        %vm1486 = vmand %vm1422, %vm1454
        %vm1487 = vmand %vm1423, %vm1455
        %vm1488 = vmand %vm1424, %vm1456
        %vm1489 = vmand %vm1425, %vm1457
        %vm1490 = vmand %vm1426, %vm1458
        %vm1491 = vmand %vm1427, %vm1459
        %vm1492 = vmand %vm1428, %vm1460
        %vm1493 = vmand %vm1429, %vm1461
        %vm1494 = vmand %vm1430, %vm1462
        %v1495 = vadd.s32 %v1207, 1
        %v1496 = vadd.s32 %v1208, 1
        %v1497 = vadd.s32 %v1209, 1
        %v1498 = vadd.s32 %v1210, 1
        %v1499 = vadd.s32 %v1211, 1
        %v1500 = vadd.s32 %v1212, 1
        %v1501 = vadd.s32 %v1213, 1
        %v1502 = vadd.s32 %v1214, 1
        %v1503 = vadd.s32 %v1215, 1
        %v1504 = vadd.s32 %v1216, 1
        %v1505 = vadd.s32 %v1217, 1
        %v1506 = vadd.s32 %v1218, 1
        %v1507 = vadd.s32 %v1219, 1
        %v1508 = vadd.s32 %v1220, 1
        %v1509 = vadd.s32 %v1221, 1
        %v1510 = vadd.s32 %v1222, 1
        %v1511 = vadd.s32 %v1223, 1
        %v1512 = vadd.s32 %v1224, 1
        %v1513 = vadd.s32 %v1225, 1
        %v1514 = vadd.s32 %v1226, 1
        %v1515 = vadd.s32 %v1227, 1
        %v1516 = vadd.s32 %v1228, 1
        %v1517 = vadd.s32 %v1229, 1
        %v1518 = vadd.s32 %v1230, 1
        %v1519 = vadd.s32 %v1231, 1
        %v1520 = vadd.s32 %v1232, 1
        %v1521 = vadd.s32 %v1233, 1
        %v1522 = vadd.s32 %v1234, 1
        %v1523 = vadd.s32 %v1235, 1
        %v1524 = vadd.s32 %v1236, 1
        %v1525 = vadd.s32 %v1237, 1
        %v1526 = vadd.s32 %v1238, 1
        %vm1527 = vcmp.ge.s32.totalorder %v1495, 0
        %vm1528 = vcmp.ge.s32.totalorder %v1496, 0
        %vm1529 = vcmp.ge.s32.totalorder %v1497, 0
        %vm1530 = vcmp.ge.s32.totalorder %v1498, 0
        %vm1531 = vcmp.ge.s32.totalorder %v1499, 0
        %vm1532 = vcmp.ge.s32.totalorder %v1500, 0
        %vm1533 = vcmp.ge.s32.totalorder %v1501, 0
        %vm1534 = vcmp.ge.s32.totalorder %v1502, 0
        %vm1535 = vcmp.ge.s32.totalorder %v1503, 0
        %vm1536 = vcmp.ge.s32.totalorder %v1504, 0
        %vm1537 = vcmp.ge.s32.totalorder %v1505, 0
        %vm1538 = vcmp.ge.s32.totalorder %v1506, 0
        %vm1539 = vcmp.ge.s32.totalorder %v1507, 0
        %vm1540 = vcmp.ge.s32.totalorder %v1508, 0
        %vm1541 = vcmp.ge.s32.totalorder %v1509, 0
        %vm1542 = vcmp.ge.s32.totalorder %v1510, 0
        %vm1543 = vcmp.ge.s32.totalorder %v1511, 0
        %vm1544 = vcmp.ge.s32.totalorder %v1512, 0
        %vm1545 = vcmp.ge.s32.totalorder %v1513, 0
        %vm1546 = vcmp.ge.s32.totalorder %v1514, 0
        %vm1547 = vcmp.ge.s32.totalorder %v1515, 0
        %vm1548 = vcmp.ge.s32.totalorder %v1516, 0
        %vm1549 = vcmp.ge.s32.totalorder %v1517, 0
        %vm1550 = vcmp.ge.s32.totalorder %v1518, 0
        %vm1551 = vcmp.ge.s32.totalorder %v1519, 0
        %vm1552 = vcmp.ge.s32.totalorder %v1520, 0
        %vm1553 = vcmp.ge.s32.totalorder %v1521, 0
        %vm1554 = vcmp.ge.s32.totalorder %v1522, 0
        %vm1555 = vcmp.ge.s32.totalorder %v1523, 0
        %vm1556 = vcmp.ge.s32.totalorder %v1524, 0
        %vm1557 = vcmp.ge.s32.totalorder %v1525, 0
        %vm1558 = vcmp.ge.s32.totalorder %v1526, 0
        %vm1559 = vcmp.lt.s32.totalorder %v1495, 16
        %vm1560 = vcmp.lt.s32.totalorder %v1496, 16
        %vm1561 = vcmp.lt.s32.totalorder %v1497, 16
        %vm1562 = vcmp.lt.s32.totalorder %v1498, 16
        %vm1563 = vcmp.lt.s32.totalorder %v1499, 16
        %vm1564 = vcmp.lt.s32.totalorder %v1500, 16
        %vm1565 = vcmp.lt.s32.totalorder %v1501, 16
        %vm1566 = vcmp.lt.s32.totalorder %v1502, 16
        %vm1567 = vcmp.lt.s32.totalorder %v1503, 16
        %vm1568 = vcmp.lt.s32.totalorder %v1504, 16
        %vm1569 = vcmp.lt.s32.totalorder %v1505, 16
        %vm1570 = vcmp.lt.s32.totalorder %v1506, 16
        %vm1571 = vcmp.lt.s32.totalorder %v1507, 16
        %vm1572 = vcmp.lt.s32.totalorder %v1508, 16
        %vm1573 = vcmp.lt.s32.totalorder %v1509, 16
        %vm1574 = vcmp.lt.s32.totalorder %v1510, 16
        %vm1575 = vcmp.lt.s32.totalorder %v1511, 16
        %vm1576 = vcmp.lt.s32.totalorder %v1512, 16
        %vm1577 = vcmp.lt.s32.totalorder %v1513, 16
        %vm1578 = vcmp.lt.s32.totalorder %v1514, 16
        %vm1579 = vcmp.lt.s32.totalorder %v1515, 16
        %vm1580 = vcmp.lt.s32.totalorder %v1516, 16
        %vm1581 = vcmp.lt.s32.totalorder %v1517, 16
        %vm1582 = vcmp.lt.s32.totalorder %v1518, 16
        %vm1583 = vcmp.lt.s32.totalorder %v1519, 16
        %vm1584 = vcmp.lt.s32.totalorder %v1520, 16
        %vm1585 = vcmp.lt.s32.totalorder %v1521, 16
        %vm1586 = vcmp.lt.s32.totalorder %v1522, 16
        %vm1587 = vcmp.lt.s32.totalorder %v1523, 16
        %vm1588 = vcmp.lt.s32.totalorder %v1524, 16
        %vm1589 = vcmp.lt.s32.totalorder %v1525, 16
        %vm1590 = vcmp.lt.s32.totalorder %v1526, 16
        %vm1591 = vmand %vm1527, %vm1559
        %vm1592 = vmand %vm1528, %vm1560
        %vm1593 = vmand %vm1529, %vm1561
        %vm1594 = vmand %vm1530, %vm1562
        %vm1595 = vmand %vm1531, %vm1563
        %vm1596 = vmand %vm1532, %vm1564
        %vm1597 = vmand %vm1533, %vm1565
        %vm1598 = vmand %vm1534, %vm1566
        %vm1599 = vmand %vm1535, %vm1567
        %vm1600 = vmand %vm1536, %vm1568
        %vm1601 = vmand %vm1537, %vm1569
        %vm1602 = vmand %vm1538, %vm1570
        %vm1603 = vmand %vm1539, %vm1571
        %vm1604 = vmand %vm1540, %vm1572
        %vm1605 = vmand %vm1541, %vm1573
        %vm1606 = vmand %vm1542, %vm1574
        %vm1607 = vmand %vm1543, %vm1575
        %vm1608 = vmand %vm1544, %vm1576
        %vm1609 = vmand %vm1545, %vm1577
        %vm1610 = vmand %vm1546, %vm1578
        %vm1611 = vmand %vm1547, %vm1579
        %vm1612 = vmand %vm1548, %vm1580
        %vm1613 = vmand %vm1549, %vm1581
        %vm1614 = vmand %vm1550, %vm1582
        %vm1615 = vmand %vm1551, %vm1583
        %vm1616 = vmand %vm1552, %vm1584
        %vm1617 = vmand %vm1553, %vm1585
        %vm1618 = vmand %vm1554, %vm1586
        %vm1619 = vmand %vm1555, %vm1587
        %vm1620 = vmand %vm1556, %vm1588
        %vm1621 = vmand %vm1557, %vm1589
        %vm1622 = vmand %vm1558, %vm1590
        %v1623 = vadd.s32 %v1207, 2
        %v1624 = vadd.s32 %v1208, 2
        %v1625 = vadd.s32 %v1209, 2
        %v1626 = vadd.s32 %v1210, 2
        %v1627 = vadd.s32 %v1211, 2
        %v1628 = vadd.s32 %v1212, 2
        %v1629 = vadd.s32 %v1213, 2
        %v1630 = vadd.s32 %v1214, 2
        %v1631 = vadd.s32 %v1215, 2
        %v1632 = vadd.s32 %v1216, 2
        %v1633 = vadd.s32 %v1217, 2
        %v1634 = vadd.s32 %v1218, 2
        %v1635 = vadd.s32 %v1219, 2
        %v1636 = vadd.s32 %v1220, 2
        %v1637 = vadd.s32 %v1221, 2
        %v1638 = vadd.s32 %v1222, 2
        %v1639 = vadd.s32 %v1223, 2
        %v1640 = vadd.s32 %v1224, 2
        %v1641 = vadd.s32 %v1225, 2
        %v1642 = vadd.s32 %v1226, 2
        %v1643 = vadd.s32 %v1227, 2
        %v1644 = vadd.s32 %v1228, 2
        %v1645 = vadd.s32 %v1229, 2
        %v1646 = vadd.s32 %v1230, 2
        %v1647 = vadd.s32 %v1231, 2
        %v1648 = vadd.s32 %v1232, 2
        %v1649 = vadd.s32 %v1233, 2
        %v1650 = vadd.s32 %v1234, 2
        %v1651 = vadd.s32 %v1235, 2
        %v1652 = vadd.s32 %v1236, 2
        %v1653 = vadd.s32 %v1237, 2
        %v1654 = vadd.s32 %v1238, 2
        %vm1655 = vcmp.ge.s32.totalorder %v1623, 0
        %vm1656 = vcmp.ge.s32.totalorder %v1624, 0
        %vm1657 = vcmp.ge.s32.totalorder %v1625, 0
        %vm1658 = vcmp.ge.s32.totalorder %v1626, 0
        %vm1659 = vcmp.ge.s32.totalorder %v1627, 0
        %vm1660 = vcmp.ge.s32.totalorder %v1628, 0
        %vm1661 = vcmp.ge.s32.totalorder %v1629, 0
        %vm1662 = vcmp.ge.s32.totalorder %v1630, 0
        %vm1663 = vcmp.ge.s32.totalorder %v1631, 0
        %vm1664 = vcmp.ge.s32.totalorder %v1632, 0
        %vm1665 = vcmp.ge.s32.totalorder %v1633, 0
        %vm1666 = vcmp.ge.s32.totalorder %v1634, 0
        %vm1667 = vcmp.ge.s32.totalorder %v1635, 0
        %vm1668 = vcmp.ge.s32.totalorder %v1636, 0
        %vm1669 = vcmp.ge.s32.totalorder %v1637, 0
        %vm1670 = vcmp.ge.s32.totalorder %v1638, 0
        %vm1671 = vcmp.ge.s32.totalorder %v1639, 0
        %vm1672 = vcmp.ge.s32.totalorder %v1640, 0
        %vm1673 = vcmp.ge.s32.totalorder %v1641, 0
        %vm1674 = vcmp.ge.s32.totalorder %v1642, 0
        %vm1675 = vcmp.ge.s32.totalorder %v1643, 0
        %vm1676 = vcmp.ge.s32.totalorder %v1644, 0
        %vm1677 = vcmp.ge.s32.totalorder %v1645, 0
        %vm1678 = vcmp.ge.s32.totalorder %v1646, 0
        %vm1679 = vcmp.ge.s32.totalorder %v1647, 0
        %vm1680 = vcmp.ge.s32.totalorder %v1648, 0
        %vm1681 = vcmp.ge.s32.totalorder %v1649, 0
        %vm1682 = vcmp.ge.s32.totalorder %v1650, 0
        %vm1683 = vcmp.ge.s32.totalorder %v1651, 0
        %vm1684 = vcmp.ge.s32.totalorder %v1652, 0
        %vm1685 = vcmp.ge.s32.totalorder %v1653, 0
        %vm1686 = vcmp.ge.s32.totalorder %v1654, 0
        %vm1687 = vcmp.lt.s32.totalorder %v1623, 16
        %vm1688 = vcmp.lt.s32.totalorder %v1624, 16
        %vm1689 = vcmp.lt.s32.totalorder %v1625, 16
        %vm1690 = vcmp.lt.s32.totalorder %v1626, 16
        %vm1691 = vcmp.lt.s32.totalorder %v1627, 16
        %vm1692 = vcmp.lt.s32.totalorder %v1628, 16
        %vm1693 = vcmp.lt.s32.totalorder %v1629, 16
        %vm1694 = vcmp.lt.s32.totalorder %v1630, 16
        %vm1695 = vcmp.lt.s32.totalorder %v1631, 16
        %vm1696 = vcmp.lt.s32.totalorder %v1632, 16
        %vm1697 = vcmp.lt.s32.totalorder %v1633, 16
        %vm1698 = vcmp.lt.s32.totalorder %v1634, 16
        %vm1699 = vcmp.lt.s32.totalorder %v1635, 16
        %vm1700 = vcmp.lt.s32.totalorder %v1636, 16
        %vm1701 = vcmp.lt.s32.totalorder %v1637, 16
        %vm1702 = vcmp.lt.s32.totalorder %v1638, 16
        %vm1703 = vcmp.lt.s32.totalorder %v1639, 16
        %vm1704 = vcmp.lt.s32.totalorder %v1640, 16
        %vm1705 = vcmp.lt.s32.totalorder %v1641, 16
        %vm1706 = vcmp.lt.s32.totalorder %v1642, 16
        %vm1707 = vcmp.lt.s32.totalorder %v1643, 16
        %vm1708 = vcmp.lt.s32.totalorder %v1644, 16
        %vm1709 = vcmp.lt.s32.totalorder %v1645, 16
        %vm1710 = vcmp.lt.s32.totalorder %v1646, 16
        %vm1711 = vcmp.lt.s32.totalorder %v1647, 16
        %vm1712 = vcmp.lt.s32.totalorder %v1648, 16
        %vm1713 = vcmp.lt.s32.totalorder %v1649, 16
        %vm1714 = vcmp.lt.s32.totalorder %v1650, 16
        %vm1715 = vcmp.lt.s32.totalorder %v1651, 16
        %vm1716 = vcmp.lt.s32.totalorder %v1652, 16
        %vm1717 = vcmp.lt.s32.totalorder %v1653, 16
        %vm1718 = vcmp.lt.s32.totalorder %v1654, 16
        %vm1719 = vmand %vm1655, %vm1687
        %vm1720 = vmand %vm1656, %vm1688
        %vm1721 = vmand %vm1657, %vm1689
        %vm1722 = vmand %vm1658, %vm1690
        %vm1723 = vmand %vm1659, %vm1691
        %vm1724 = vmand %vm1660, %vm1692
        %vm1725 = vmand %vm1661, %vm1693
        %vm1726 = vmand %vm1662, %vm1694
        %vm1727 = vmand %vm1663, %vm1695
        %vm1728 = vmand %vm1664, %vm1696
        %vm1729 = vmand %vm1665, %vm1697
        %vm1730 = vmand %vm1666, %vm1698
        %vm1731 = vmand %vm1667, %vm1699
        %vm1732 = vmand %vm1668, %vm1700
        %vm1733 = vmand %vm1669, %vm1701
        %vm1734 = vmand %vm1670, %vm1702
        %vm1735 = vmand %vm1671, %vm1703
        %vm1736 = vmand %vm1672, %vm1704
        %vm1737 = vmand %vm1673, %vm1705
        %vm1738 = vmand %vm1674, %vm1706
        %vm1739 = vmand %vm1675, %vm1707
        %vm1740 = vmand %vm1676, %vm1708
        %vm1741 = vmand %vm1677, %vm1709
        %vm1742 = vmand %vm1678, %vm1710
        %vm1743 = vmand %vm1679, %vm1711
        %vm1744 = vmand %vm1680, %vm1712
        %vm1745 = vmand %vm1681, %vm1713
        %vm1746 = vmand %vm1682, %vm1714
        %vm1747 = vmand %vm1683, %vm1715
        %vm1748 = vmand %vm1684, %vm1716
        %vm1749 = vmand %vm1685, %vm1717
        %vm1750 = vmand %vm1686, %vm1718
        loop: start=0, step=1, limit=16
        $region85: #{cnn10_forward.1} parent=59 // loop_pre_header
          _
        $region86: #{cnn10_forward.1} parent=59 // loop_header
          %s1752 = sphi 0, %s1756
          %p1753 = scmp.ge.s32.totalorder %s1752, 16
        $region87: #{cnn10_forward.1} parent=59 // loop_header_branch
          %1755 = sbr.rel (%p1753) target = $region91
        $region88: #{cnn10_forward.1} parent=59 // loop_body
          %v1757 = vld [vmem:[#allocation2 + $0x1e] sm:$0xff]
          %v1758 = vld [vmem:[#allocation2 + $0x26] sm:$0xff]
          %v1759 = vld [vmem:[#allocation2 + $0x2e] sm:$0xff]
          %v1760 = vld [vmem:[#allocation2 + $0x36] sm:$0xff]
          %v1761 = vld [vmem:[#allocation2 + $0x3e] sm:$0xff]
          %v1762 = vld [vmem:[#allocation2 + $0x46] sm:$0xff]
          %v1763 = vld [vmem:[#allocation2 + $0x4e] sm:$0xff]
          %v1764 = vld [vmem:[#allocation2 + $0x56] sm:$0xff]
          %v1765 = vld [vmem:[#allocation2 + $0x5e] sm:$0xff]
          %v1766 = vld [vmem:[#allocation2 + $0x66] sm:$0xff]
          %v1767 = vld [vmem:[#allocation2 + $0x6e] sm:$0xff]
          %v1768 = vld [vmem:[#allocation2 + $0x76] sm:$0xff]
          %v1769 = vld [vmem:[#allocation2 + $0x7e] sm:$0xff]
          %v1770 = vld [vmem:[#allocation2 + $0x86] sm:$0xff]
          %v1771 = vld [vmem:[#allocation2 + $0x8e] sm:$0xff]
          %v1772 = vld [vmem:[#allocation2 + $0x96] sm:$0xff]
          %v1773 = vld [vmem:[#allocation2 + $0x9e] sm:$0xff]
          %v1774 = vld [vmem:[#allocation2 + $0xa6] sm:$0xff]
          %v1775 = vld [vmem:[#allocation2 + $0xae] sm:$0xff]
          %v1776 = vld [vmem:[#allocation2 + $0xb6] sm:$0xff]
          %v1777 = vld [vmem:[#allocation2 + $0xbe] sm:$0xff]
          %v1778 = vld [vmem:[#allocation2 + $0xc6] sm:$0xff]
          %v1779 = vld [vmem:[#allocation2 + $0xce] sm:$0xff]
          %v1780 = vld [vmem:[#allocation2 + $0xd6] sm:$0xff]
          %v1781 = vld [vmem:[#allocation2 + $0xde] sm:$0xff]
          %v1782 = vld [vmem:[#allocation2 + $0xe6] sm:$0xff]
          %v1783 = vld [vmem:[#allocation2 + $0xee] sm:$0xff]
          %v1784 = vld [vmem:[#allocation2 + $0xf6] sm:$0xff]
          %v1785 = vld [vmem:[#allocation2 + $0xfe] sm:$0xff]
          %v1786 = vld [vmem:[#allocation2 + $0x106] sm:$0xff]
          %v1787 = vld [vmem:[#allocation2 + $0x10e] sm:$0xff]
          %v1788 = vld [vmem:[#allocation2 + $0x116] sm:$0xff]
          %v1789 = vsel %vm1335, 1, 0
          %v1790 = vsel %vm1336, 1, 0
          %v1791 = vsel %vm1337, 1, 0
          %v1792 = vsel %vm1338, 1, 0
          %v1793 = vsel %vm1339, 1, 0
          %v1794 = vsel %vm1340, 1, 0
          %v1795 = vsel %vm1341, 1, 0
          %v1796 = vsel %vm1342, 1, 0
          %v1797 = vsel %vm1343, 1, 0
          %v1798 = vsel %vm1344, 1, 0
          %v1799 = vsel %vm1345, 1, 0
          %v1800 = vsel %vm1346, 1, 0
          %v1801 = vsel %vm1347, 1, 0
          %v1802 = vsel %vm1348, 1, 0
          %v1803 = vsel %vm1349, 1, 0
          %v1804 = vsel %vm1350, 1, 0
          %v1805 = vsel %vm1351, 1, 0
          %v1806 = vsel %vm1352, 1, 0
          %v1807 = vsel %vm1353, 1, 0
          %v1808 = vsel %vm1354, 1, 0
          %v1809 = vsel %vm1355, 1, 0
          %v1810 = vsel %vm1356, 1, 0
          %v1811 = vsel %vm1357, 1, 0
          %v1812 = vsel %vm1358, 1, 0
          %v1813 = vsel %vm1359, 1, 0
          %v1814 = vsel %vm1360, 1, 0
          %v1815 = vsel %vm1361, 1, 0
          %v1816 = vsel %vm1362, 1, 0
          %v1817 = vsel %vm1363, 1, 0
          %v1818 = vsel %vm1364, 1, 0
          %v1819 = vsel %vm1365, 1, 0
          %v1820 = vsel %vm1366, 1, 0
          %vm1821 = vcmp.eq.s32.totalorder %v1789, 1
          %vm1822 = vcmp.eq.s32.totalorder %v1790, 1
          %vm1823 = vcmp.eq.s32.totalorder %v1791, 1
          %vm1824 = vcmp.eq.s32.totalorder %v1792, 1
          %vm1825 = vcmp.eq.s32.totalorder %v1793, 1
          %vm1826 = vcmp.eq.s32.totalorder %v1794, 1
          %vm1827 = vcmp.eq.s32.totalorder %v1795, 1
          %vm1828 = vcmp.eq.s32.totalorder %v1796, 1
          %vm1829 = vcmp.eq.s32.totalorder %v1797, 1
          %vm1830 = vcmp.eq.s32.totalorder %v1798, 1
          %vm1831 = vcmp.eq.s32.totalorder %v1799, 1
          %vm1832 = vcmp.eq.s32.totalorder %v1800, 1
          %vm1833 = vcmp.eq.s32.totalorder %v1801, 1
          %vm1834 = vcmp.eq.s32.totalorder %v1802, 1
          %vm1835 = vcmp.eq.s32.totalorder %v1803, 1
          %vm1836 = vcmp.eq.s32.totalorder %v1804, 1
          %vm1837 = vcmp.eq.s32.totalorder %v1805, 1
          %vm1838 = vcmp.eq.s32.totalorder %v1806, 1
          %vm1839 = vcmp.eq.s32.totalorder %v1807, 1
          %vm1840 = vcmp.eq.s32.totalorder %v1808, 1
          %vm1841 = vcmp.eq.s32.totalorder %v1809, 1
          %vm1842 = vcmp.eq.s32.totalorder %v1810, 1
          %vm1843 = vcmp.eq.s32.totalorder %v1811, 1
          %vm1844 = vcmp.eq.s32.totalorder %v1812, 1
          %vm1845 = vcmp.eq.s32.totalorder %v1813, 1
          %vm1846 = vcmp.eq.s32.totalorder %v1814, 1
          %vm1847 = vcmp.eq.s32.totalorder %v1815, 1
          %vm1848 = vcmp.eq.s32.totalorder %v1816, 1
          %vm1849 = vcmp.eq.s32.totalorder %v1817, 1
          %vm1850 = vcmp.eq.s32.totalorder %v1818, 1
          %vm1851 = vcmp.eq.s32.totalorder %v1819, 1
          %vm1852 = vcmp.eq.s32.totalorder %v1820, 1
          %v1853 = vsel %vm1821, %v1757, 0.0
          %v1854 = vsel %vm1822, %v1758, 0.0
          %v1855 = vsel %vm1823, %v1759, 0.0
          %v1856 = vsel %vm1824, %v1760, 0.0
          %v1857 = vsel %vm1825, %v1761, 0.0
          %v1858 = vsel %vm1826, %v1762, 0.0
          %v1859 = vsel %vm1827, %v1763, 0.0
          %v1860 = vsel %vm1828, %v1764, 0.0
          %v1861 = vsel %vm1829, %v1765, 0.0
          %v1862 = vsel %vm1830, %v1766, 0.0
          %v1863 = vsel %vm1831, %v1767, 0.0
          %v1864 = vsel %vm1832, %v1768, 0.0
          %v1865 = vsel %vm1833, %v1769, 0.0
          %v1866 = vsel %vm1834, %v1770, 0.0
          %v1867 = vsel %vm1835, %v1771, 0.0
          %v1868 = vsel %vm1836, %v1772, 0.0
          %v1869 = vsel %vm1837, %v1773, 0.0
          %v1870 = vsel %vm1838, %v1774, 0.0
          %v1871 = vsel %vm1839, %v1775, 0.0
          %v1872 = vsel %vm1840, %v1776, 0.0
          %v1873 = vsel %vm1841, %v1777, 0.0
          %v1874 = vsel %vm1842, %v1778, 0.0
          %v1875 = vsel %vm1843, %v1779, 0.0
          %v1876 = vsel %vm1844, %v1780, 0.0
          %v1877 = vsel %vm1845, %v1781, 0.0
          %v1878 = vsel %vm1846, %v1782, 0.0
          %v1879 = vsel %vm1847, %v1783, 0.0
          %v1880 = vsel %vm1848, %v1784, 0.0
          %v1881 = vsel %vm1849, %v1785, 0.0
          %v1882 = vsel %vm1850, %v1786, 0.0
          %v1883 = vsel %vm1851, %v1787, 0.0
          %v1884 = vsel %vm1852, %v1788, 0.0
          %v1885 = vld [vmem:[#allocation2 + $0x1f] sm:$0xff]
          %v1886 = vld [vmem:[#allocation2 + $0x27] sm:$0xff]
          %v1887 = vld [vmem:[#allocation2 + $0x2f] sm:$0xff]
          %v1888 = vld [vmem:[#allocation2 + $0x37] sm:$0xff]
          %v1889 = vld [vmem:[#allocation2 + $0x3f] sm:$0xff]
          %v1890 = vld [vmem:[#allocation2 + $0x47] sm:$0xff]
          %v1891 = vld [vmem:[#allocation2 + $0x4f] sm:$0xff]
          %v1892 = vld [vmem:[#allocation2 + $0x57] sm:$0xff]
          %v1893 = vld [vmem:[#allocation2 + $0x5f] sm:$0xff]
          %v1894 = vld [vmem:[#allocation2 + $0x67] sm:$0xff]
          %v1895 = vld [vmem:[#allocation2 + $0x6f] sm:$0xff]
          %v1896 = vld [vmem:[#allocation2 + $0x77] sm:$0xff]
          %v1897 = vld [vmem:[#allocation2 + $0x7f] sm:$0xff]
          %v1898 = vld [vmem:[#allocation2 + $0x87] sm:$0xff]
          %v1899 = vld [vmem:[#allocation2 + $0x8f] sm:$0xff]
          %v1900 = vld [vmem:[#allocation2 + $0x97] sm:$0xff]
          %v1901 = vld [vmem:[#allocation2 + $0x9f] sm:$0xff]
          %v1902 = vld [vmem:[#allocation2 + $0xa7] sm:$0xff]
          %v1903 = vld [vmem:[#allocation2 + $0xaf] sm:$0xff]
          %v1904 = vld [vmem:[#allocation2 + $0xb7] sm:$0xff]
          %v1905 = vld [vmem:[#allocation2 + $0xbf] sm:$0xff]
          %v1906 = vld [vmem:[#allocation2 + $0xc7] sm:$0xff]
          %v1907 = vld [vmem:[#allocation2 + $0xcf] sm:$0xff]
          %v1908 = vld [vmem:[#allocation2 + $0xd7] sm:$0xff]
          %v1909 = vld [vmem:[#allocation2 + $0xdf] sm:$0xff]
          %v1910 = vld [vmem:[#allocation2 + $0xe7] sm:$0xff]
          %v1911 = vld [vmem:[#allocation2 + $0xef] sm:$0xff]
          %v1912 = vld [vmem:[#allocation2 + $0xf7] sm:$0xff]
          %v1913 = vld [vmem:[#allocation2 + $0xff] sm:$0xff]
          %v1914 = vld [vmem:[#allocation2 + $0x107] sm:$0xff]
          %v1915 = vld [vmem:[#allocation2 + $0x10f] sm:$0xff]
          %v1916 = vld [vmem:[#allocation2 + $0x117] sm:$0xff]
          %v1917 = vsel %vm1463, 1, 0
          %v1918 = vsel %vm1464, 1, 0
          %v1919 = vsel %vm1465, 1, 0
          %v1920 = vsel %vm1466, 1, 0
          %v1921 = vsel %vm1467, 1, 0
          %v1922 = vsel %vm1468, 1, 0
          %v1923 = vsel %vm1469, 1, 0
          %v1924 = vsel %vm1470, 1, 0
          %v1925 = vsel %vm1471, 1, 0
          %v1926 = vsel %vm1472, 1, 0
          %v1927 = vsel %vm1473, 1, 0
          %v1928 = vsel %vm1474, 1, 0
          %v1929 = vsel %vm1475, 1, 0
          %v1930 = vsel %vm1476, 1, 0
          %v1931 = vsel %vm1477, 1, 0
          %v1932 = vsel %vm1478, 1, 0
          %v1933 = vsel %vm1479, 1, 0
          %v1934 = vsel %vm1480, 1, 0
          %v1935 = vsel %vm1481, 1, 0
          %v1936 = vsel %vm1482, 1, 0
          %v1937 = vsel %vm1483, 1, 0
          %v1938 = vsel %vm1484, 1, 0
          %v1939 = vsel %vm1485, 1, 0
          %v1940 = vsel %vm1486, 1, 0
          %v1941 = vsel %vm1487, 1, 0
          %v1942 = vsel %vm1488, 1, 0
          %v1943 = vsel %vm1489, 1, 0
          %v1944 = vsel %vm1490, 1, 0
          %v1945 = vsel %vm1491, 1, 0
          %v1946 = vsel %vm1492, 1, 0
          %v1947 = vsel %vm1493, 1, 0
          %v1948 = vsel %vm1494, 1, 0
          %vm1949 = vcmp.eq.s32.totalorder %v1917, 1
          %vm1950 = vcmp.eq.s32.totalorder %v1918, 1
          %vm1951 = vcmp.eq.s32.totalorder %v1919, 1
          %vm1952 = vcmp.eq.s32.totalorder %v1920, 1
          %vm1953 = vcmp.eq.s32.totalorder %v1921, 1
          %vm1954 = vcmp.eq.s32.totalorder %v1922, 1
          %vm1955 = vcmp.eq.s32.totalorder %v1923, 1
          %vm1956 = vcmp.eq.s32.totalorder %v1924, 1
          %vm1957 = vcmp.eq.s32.totalorder %v1925, 1
          %vm1958 = vcmp.eq.s32.totalorder %v1926, 1
          %vm1959 = vcmp.eq.s32.totalorder %v1927, 1
          %vm1960 = vcmp.eq.s32.totalorder %v1928, 1
          %vm1961 = vcmp.eq.s32.totalorder %v1929, 1
          %vm1962 = vcmp.eq.s32.totalorder %v1930, 1
          %vm1963 = vcmp.eq.s32.totalorder %v1931, 1
          %vm1964 = vcmp.eq.s32.totalorder %v1932, 1
          %vm1965 = vcmp.eq.s32.totalorder %v1933, 1
          %vm1966 = vcmp.eq.s32.totalorder %v1934, 1
          %vm1967 = vcmp.eq.s32.totalorder %v1935, 1
          %vm1968 = vcmp.eq.s32.totalorder %v1936, 1
          %vm1969 = vcmp.eq.s32.totalorder %v1937, 1
          %vm1970 = vcmp.eq.s32.totalorder %v1938, 1
          %vm1971 = vcmp.eq.s32.totalorder %v1939, 1
          %vm1972 = vcmp.eq.s32.totalorder %v1940, 1
          %vm1973 = vcmp.eq.s32.totalorder %v1941, 1
          %vm1974 = vcmp.eq.s32.totalorder %v1942, 1
          %vm1975 = vcmp.eq.s32.totalorder %v1943, 1
          %vm1976 = vcmp.eq.s32.totalorder %v1944, 1
          %vm1977 = vcmp.eq.s32.totalorder %v1945, 1
          %vm1978 = vcmp.eq.s32.totalorder %v1946, 1
          %vm1979 = vcmp.eq.s32.totalorder %v1947, 1
          %vm1980 = vcmp.eq.s32.totalorder %v1948, 1
          %v1981 = vsel %vm1949, %v1885, 0.0
          %v1982 = vsel %vm1950, %v1886, 0.0
          %v1983 = vsel %vm1951, %v1887, 0.0
          %v1984 = vsel %vm1952, %v1888, 0.0
          %v1985 = vsel %vm1953, %v1889, 0.0
          %v1986 = vsel %vm1954, %v1890, 0.0
          %v1987 = vsel %vm1955, %v1891, 0.0
          %v1988 = vsel %vm1956, %v1892, 0.0
          %v1989 = vsel %vm1957, %v1893, 0.0
          %v1990 = vsel %vm1958, %v1894, 0.0
          %v1991 = vsel %vm1959, %v1895, 0.0
          %v1992 = vsel %vm1960, %v1896, 0.0
          %v1993 = vsel %vm1961, %v1897, 0.0
          %v1994 = vsel %vm1962, %v1898, 0.0
          %v1995 = vsel %vm1963, %v1899, 0.0
          %v1996 = vsel %vm1964, %v1900, 0.0
          %v1997 = vsel %vm1965, %v1901, 0.0
          %v1998 = vsel %vm1966, %v1902, 0.0
          %v1999 = vsel %vm1967, %v1903, 0.0
          %v2000 = vsel %vm1968, %v1904, 0.0
          %v2001 = vsel %vm1969, %v1905, 0.0
          %v2002 = vsel %vm1970, %v1906, 0.0
          %v2003 = vsel %vm1971, %v1907, 0.0
          %v2004 = vsel %vm1972, %v1908, 0.0
          %v2005 = vsel %vm1973, %v1909, 0.0
          %v2006 = vsel %vm1974, %v1910, 0.0
          %v2007 = vsel %vm1975, %v1911, 0.0
          %v2008 = vsel %vm1976, %v1912, 0.0
          %v2009 = vsel %vm1977, %v1913, 0.0
          %v2010 = vsel %vm1978, %v1914, 0.0
          %v2011 = vsel %vm1979, %v1915, 0.0
          %v2012 = vsel %vm1980, %v1916, 0.0
          %v2013 = vld [vmem:[#allocation2 + $0x20] sm:$0xff]
          %v2014 = vld [vmem:[#allocation2 + $0x28] sm:$0xff]
          %v2015 = vld [vmem:[#allocation2 + $0x30] sm:$0xff]
          %v2016 = vld [vmem:[#allocation2 + $0x38] sm:$0xff]
          %v2017 = vld [vmem:[#allocation2 + $0x40] sm:$0xff]
          %v2018 = vld [vmem:[#allocation2 + $0x48] sm:$0xff]
          %v2019 = vld [vmem:[#allocation2 + $0x50] sm:$0xff]
          %v2020 = vld [vmem:[#allocation2 + $0x58] sm:$0xff]
          %v2021 = vld [vmem:[#allocation2 + $0x60] sm:$0xff]
          %v2022 = vld [vmem:[#allocation2 + $0x68] sm:$0xff]
          %v2023 = vld [vmem:[#allocation2 + $0x70] sm:$0xff]
          %v2024 = vld [vmem:[#allocation2 + $0x78] sm:$0xff]
          %v2025 = vld [vmem:[#allocation2 + $0x80] sm:$0xff]
          %v2026 = vld [vmem:[#allocation2 + $0x88] sm:$0xff]
          %v2027 = vld [vmem:[#allocation2 + $0x90] sm:$0xff]
          %v2028 = vld [vmem:[#allocation2 + $0x98] sm:$0xff]
          %v2029 = vld [vmem:[#allocation2 + $0xa0] sm:$0xff]
          %v2030 = vld [vmem:[#allocation2 + $0xa8] sm:$0xff]
          %v2031 = vld [vmem:[#allocation2 + $0xb0] sm:$0xff]
          %v2032 = vld [vmem:[#allocation2 + $0xb8] sm:$0xff]
          %v2033 = vld [vmem:[#allocation2 + $0xc0] sm:$0xff]
          %v2034 = vld [vmem:[#allocation2 + $0xc8] sm:$0xff]
          %v2035 = vld [vmem:[#allocation2 + $0xd0] sm:$0xff]
          %v2036 = vld [vmem:[#allocation2 + $0xd8] sm:$0xff]
          %v2037 = vld [vmem:[#allocation2 + $0xe0] sm:$0xff]
          %v2038 = vld [vmem:[#allocation2 + $0xe8] sm:$0xff]
          %v2039 = vld [vmem:[#allocation2 + $0xf0] sm:$0xff]
          %v2040 = vld [vmem:[#allocation2 + $0xf8] sm:$0xff]
          %v2041 = vld [vmem:[#allocation2 + $0x100] sm:$0xff]
          %v2042 = vld [vmem:[#allocation2 + $0x108] sm:$0xff]
          %v2043 = vld [vmem:[#allocation2 + $0x110] sm:$0xff]
          %v2044 = vld [vmem:[#allocation2 + $0x118] sm:$0xff]
          %v2045 = vld [vmem:[#allocation2 + $0x21] sm:$0xff]
          %v2046 = vld [vmem:[#allocation2 + $0x29] sm:$0xff]
          %v2047 = vld [vmem:[#allocation2 + $0x31] sm:$0xff]
          %v2048 = vld [vmem:[#allocation2 + $0x39] sm:$0xff]
          %v2049 = vld [vmem:[#allocation2 + $0x41] sm:$0xff]
          %v2050 = vld [vmem:[#allocation2 + $0x49] sm:$0xff]
          %v2051 = vld [vmem:[#allocation2 + $0x51] sm:$0xff]
          %v2052 = vld [vmem:[#allocation2 + $0x59] sm:$0xff]
          %v2053 = vld [vmem:[#allocation2 + $0x61] sm:$0xff]
          %v2054 = vld [vmem:[#allocation2 + $0x69] sm:$0xff]
          %v2055 = vld [vmem:[#allocation2 + $0x71] sm:$0xff]
          %v2056 = vld [vmem:[#allocation2 + $0x79] sm:$0xff]
          %v2057 = vld [vmem:[#allocation2 + $0x81] sm:$0xff]
          %v2058 = vld [vmem:[#allocation2 + $0x89] sm:$0xff]
          %v2059 = vld [vmem:[#allocation2 + $0x91] sm:$0xff]
          %v2060 = vld [vmem:[#allocation2 + $0x99] sm:$0xff]
          %v2061 = vld [vmem:[#allocation2 + $0xa1] sm:$0xff]
          %v2062 = vld [vmem:[#allocation2 + $0xa9] sm:$0xff]
          %v2063 = vld [vmem:[#allocation2 + $0xb1] sm:$0xff]
          %v2064 = vld [vmem:[#allocation2 + $0xb9] sm:$0xff]
          %v2065 = vld [vmem:[#allocation2 + $0xc1] sm:$0xff]
          %v2066 = vld [vmem:[#allocation2 + $0xc9] sm:$0xff]
          %v2067 = vld [vmem:[#allocation2 + $0xd1] sm:$0xff]
          %v2068 = vld [vmem:[#allocation2 + $0xd9] sm:$0xff]
          %v2069 = vld [vmem:[#allocation2 + $0xe1] sm:$0xff]
          %v2070 = vld [vmem:[#allocation2 + $0xe9] sm:$0xff]
          %v2071 = vld [vmem:[#allocation2 + $0xf1] sm:$0xff]
          %v2072 = vld [vmem:[#allocation2 + $0xf9] sm:$0xff]
          %v2073 = vld [vmem:[#allocation2 + $0x101] sm:$0xff]
          %v2074 = vld [vmem:[#allocation2 + $0x109] sm:$0xff]
          %v2075 = vld [vmem:[#allocation2 + $0x111] sm:$0xff]
          %v2076 = vld [vmem:[#allocation2 + $0x119] sm:$0xff]
          %v2077 = vsel %vm1591, 1, 0
          %v2078 = vsel %vm1592, 1, 0
          %v2079 = vsel %vm1593, 1, 0
          %v2080 = vsel %vm1594, 1, 0
          %v2081 = vsel %vm1595, 1, 0
          %v2082 = vsel %vm1596, 1, 0
          %v2083 = vsel %vm1597, 1, 0
          %v2084 = vsel %vm1598, 1, 0
          %v2085 = vsel %vm1599, 1, 0
          %v2086 = vsel %vm1600, 1, 0
          %v2087 = vsel %vm1601, 1, 0
          %v2088 = vsel %vm1602, 1, 0
          %v2089 = vsel %vm1603, 1, 0
          %v2090 = vsel %vm1604, 1, 0
          %v2091 = vsel %vm1605, 1, 0
          %v2092 = vsel %vm1606, 1, 0
          %v2093 = vsel %vm1607, 1, 0
          %v2094 = vsel %vm1608, 1, 0
          %v2095 = vsel %vm1609, 1, 0
          %v2096 = vsel %vm1610, 1, 0
          %v2097 = vsel %vm1611, 1, 0
          %v2098 = vsel %vm1612, 1, 0
          %v2099 = vsel %vm1613, 1, 0
          %v2100 = vsel %vm1614, 1, 0
          %v2101 = vsel %vm1615, 1, 0
          %v2102 = vsel %vm1616, 1, 0
          %v2103 = vsel %vm1617, 1, 0
          %v2104 = vsel %vm1618, 1, 0
          %v2105 = vsel %vm1619, 1, 0
          %v2106 = vsel %vm1620, 1, 0
          %v2107 = vsel %vm1621, 1, 0
          %v2108 = vsel %vm1622, 1, 0
          %vm2109 = vcmp.eq.s32.totalorder %v2077, 1
          %vm2110 = vcmp.eq.s32.totalorder %v2078, 1
          %vm2111 = vcmp.eq.s32.totalorder %v2079, 1
          %vm2112 = vcmp.eq.s32.totalorder %v2080, 1
          %vm2113 = vcmp.eq.s32.totalorder %v2081, 1
          %vm2114 = vcmp.eq.s32.totalorder %v2082, 1
          %vm2115 = vcmp.eq.s32.totalorder %v2083, 1
          %vm2116 = vcmp.eq.s32.totalorder %v2084, 1
          %vm2117 = vcmp.eq.s32.totalorder %v2085, 1
          %vm2118 = vcmp.eq.s32.totalorder %v2086, 1
          %vm2119 = vcmp.eq.s32.totalorder %v2087, 1
          %vm2120 = vcmp.eq.s32.totalorder %v2088, 1
          %vm2121 = vcmp.eq.s32.totalorder %v2089, 1
          %vm2122 = vcmp.eq.s32.totalorder %v2090, 1
          %vm2123 = vcmp.eq.s32.totalorder %v2091, 1
          %vm2124 = vcmp.eq.s32.totalorder %v2092, 1
          %vm2125 = vcmp.eq.s32.totalorder %v2093, 1
          %vm2126 = vcmp.eq.s32.totalorder %v2094, 1
          %vm2127 = vcmp.eq.s32.totalorder %v2095, 1
          %vm2128 = vcmp.eq.s32.totalorder %v2096, 1
          %vm2129 = vcmp.eq.s32.totalorder %v2097, 1
          %vm2130 = vcmp.eq.s32.totalorder %v2098, 1
          %vm2131 = vcmp.eq.s32.totalorder %v2099, 1
          %vm2132 = vcmp.eq.s32.totalorder %v2100, 1
          %vm2133 = vcmp.eq.s32.totalorder %v2101, 1
          %vm2134 = vcmp.eq.s32.totalorder %v2102, 1
          %vm2135 = vcmp.eq.s32.totalorder %v2103, 1
          %vm2136 = vcmp.eq.s32.totalorder %v2104, 1
          %vm2137 = vcmp.eq.s32.totalorder %v2105, 1
          %vm2138 = vcmp.eq.s32.totalorder %v2106, 1
          %vm2139 = vcmp.eq.s32.totalorder %v2107, 1
          %vm2140 = vcmp.eq.s32.totalorder %v2108, 1
          %v2141 = vsel %vm2109, %v2045, 0.0
          %v2142 = vsel %vm2110, %v2046, 0.0
          %v2143 = vsel %vm2111, %v2047, 0.0
          %v2144 = vsel %vm2112, %v2048, 0.0
          %v2145 = vsel %vm2113, %v2049, 0.0
          %v2146 = vsel %vm2114, %v2050, 0.0
          %v2147 = vsel %vm2115, %v2051, 0.0
          %v2148 = vsel %vm2116, %v2052, 0.0
          %v2149 = vsel %vm2117, %v2053, 0.0
          %v2150 = vsel %vm2118, %v2054, 0.0
          %v2151 = vsel %vm2119, %v2055, 0.0
          %v2152 = vsel %vm2120, %v2056, 0.0
          %v2153 = vsel %vm2121, %v2057, 0.0
          %v2154 = vsel %vm2122, %v2058, 0.0
          %v2155 = vsel %vm2123, %v2059, 0.0
          %v2156 = vsel %vm2124, %v2060, 0.0
          %v2157 = vsel %vm2125, %v2061, 0.0
          %v2158 = vsel %vm2126, %v2062, 0.0
          %v2159 = vsel %vm2127, %v2063, 0.0
          %v2160 = vsel %vm2128, %v2064, 0.0
          %v2161 = vsel %vm2129, %v2065, 0.0
          %v2162 = vsel %vm2130, %v2066, 0.0
          %v2163 = vsel %vm2131, %v2067, 0.0
          %v2164 = vsel %vm2132, %v2068, 0.0
          %v2165 = vsel %vm2133, %v2069, 0.0
          %v2166 = vsel %vm2134, %v2070, 0.0
          %v2167 = vsel %vm2135, %v2071, 0.0
          %v2168 = vsel %vm2136, %v2072, 0.0
          %v2169 = vsel %vm2137, %v2073, 0.0
          %v2170 = vsel %vm2138, %v2074, 0.0
          %v2171 = vsel %vm2139, %v2075, 0.0
          %v2172 = vsel %vm2140, %v2076, 0.0
          %v2173 = vld [vmem:[#allocation2 + $0x22] sm:$0xff]
          %v2174 = vld [vmem:[#allocation2 + $0x2a] sm:$0xff]
          %v2175 = vld [vmem:[#allocation2 + $0x32] sm:$0xff]
          %v2176 = vld [vmem:[#allocation2 + $0x3a] sm:$0xff]
          %v2177 = vld [vmem:[#allocation2 + $0x42] sm:$0xff]
          %v2178 = vld [vmem:[#allocation2 + $0x4a] sm:$0xff]
          %v2179 = vld [vmem:[#allocation2 + $0x52] sm:$0xff]
          %v2180 = vld [vmem:[#allocation2 + $0x5a] sm:$0xff]
          %v2181 = vld [vmem:[#allocation2 + $0x62] sm:$0xff]
          %v2182 = vld [vmem:[#allocation2 + $0x6a] sm:$0xff]
          %v2183 = vld [vmem:[#allocation2 + $0x72] sm:$0xff]
          %v2184 = vld [vmem:[#allocation2 + $0x7a] sm:$0xff]
          %v2185 = vld [vmem:[#allocation2 + $0x82] sm:$0xff]
          %v2186 = vld [vmem:[#allocation2 + $0x8a] sm:$0xff]
          %v2187 = vld [vmem:[#allocation2 + $0x92] sm:$0xff]
          %v2188 = vld [vmem:[#allocation2 + $0x9a] sm:$0xff]
          %v2189 = vld [vmem:[#allocation2 + $0xa2] sm:$0xff]
          %v2190 = vld [vmem:[#allocation2 + $0xaa] sm:$0xff]
          %v2191 = vld [vmem:[#allocation2 + $0xb2] sm:$0xff]
          %v2192 = vld [vmem:[#allocation2 + $0xba] sm:$0xff]
          %v2193 = vld [vmem:[#allocation2 + $0xc2] sm:$0xff]
          %v2194 = vld [vmem:[#allocation2 + $0xca] sm:$0xff]
          %v2195 = vld [vmem:[#allocation2 + $0xd2] sm:$0xff]
          %v2196 = vld [vmem:[#allocation2 + $0xda] sm:$0xff]
          %v2197 = vld [vmem:[#allocation2 + $0xe2] sm:$0xff]
          %v2198 = vld [vmem:[#allocation2 + $0xea] sm:$0xff]
          %v2199 = vld [vmem:[#allocation2 + $0xf2] sm:$0xff]
          %v2200 = vld [vmem:[#allocation2 + $0xfa] sm:$0xff]
          %v2201 = vld [vmem:[#allocation2 + $0x102] sm:$0xff]
          %v2202 = vld [vmem:[#allocation2 + $0x10a] sm:$0xff]
          %v2203 = vld [vmem:[#allocation2 + $0x112] sm:$0xff]
          %v2204 = vld [vmem:[#allocation2 + $0x11a] sm:$0xff]
          %v2205 = vsel %vm1719, 1, 0
          %v2206 = vsel %vm1720, 1, 0
          %v2207 = vsel %vm1721, 1, 0
          %v2208 = vsel %vm1722, 1, 0
          %v2209 = vsel %vm1723, 1, 0
          %v2210 = vsel %vm1724, 1, 0
          %v2211 = vsel %vm1725, 1, 0
          %v2212 = vsel %vm1726, 1, 0
          %v2213 = vsel %vm1727, 1, 0
          %v2214 = vsel %vm1728, 1, 0
          %v2215 = vsel %vm1729, 1, 0
          %v2216 = vsel %vm1730, 1, 0
          %v2217 = vsel %vm1731, 1, 0
          %v2218 = vsel %vm1732, 1, 0
          %v2219 = vsel %vm1733, 1, 0
          %v2220 = vsel %vm1734, 1, 0
          %v2221 = vsel %vm1735, 1, 0
          %v2222 = vsel %vm1736, 1, 0
          %v2223 = vsel %vm1737, 1, 0
          %v2224 = vsel %vm1738, 1, 0
          %v2225 = vsel %vm1739, 1, 0
          %v2226 = vsel %vm1740, 1, 0
          %v2227 = vsel %vm1741, 1, 0
          %v2228 = vsel %vm1742, 1, 0
          %v2229 = vsel %vm1743, 1, 0
          %v2230 = vsel %vm1744, 1, 0
          %v2231 = vsel %vm1745, 1, 0
          %v2232 = vsel %vm1746, 1, 0
          %v2233 = vsel %vm1747, 1, 0
          %v2234 = vsel %vm1748, 1, 0
          %v2235 = vsel %vm1749, 1, 0
          %v2236 = vsel %vm1750, 1, 0
          %vm2237 = vcmp.eq.s32.totalorder %v2205, 1
          %vm2238 = vcmp.eq.s32.totalorder %v2206, 1
          %vm2239 = vcmp.eq.s32.totalorder %v2207, 1
          %vm2240 = vcmp.eq.s32.totalorder %v2208, 1
          %vm2241 = vcmp.eq.s32.totalorder %v2209, 1
          %vm2242 = vcmp.eq.s32.totalorder %v2210, 1
          %vm2243 = vcmp.eq.s32.totalorder %v2211, 1
          %vm2244 = vcmp.eq.s32.totalorder %v2212, 1
          %vm2245 = vcmp.eq.s32.totalorder %v2213, 1
          %vm2246 = vcmp.eq.s32.totalorder %v2214, 1
          %vm2247 = vcmp.eq.s32.totalorder %v2215, 1
          %vm2248 = vcmp.eq.s32.totalorder %v2216, 1
          %vm2249 = vcmp.eq.s32.totalorder %v2217, 1
          %vm2250 = vcmp.eq.s32.totalorder %v2218, 1
          %vm2251 = vcmp.eq.s32.totalorder %v2219, 1
          %vm2252 = vcmp.eq.s32.totalorder %v2220, 1
          %vm2253 = vcmp.eq.s32.totalorder %v2221, 1
          %vm2254 = vcmp.eq.s32.totalorder %v2222, 1
          %vm2255 = vcmp.eq.s32.totalorder %v2223, 1
          %vm2256 = vcmp.eq.s32.totalorder %v2224, 1
          %vm2257 = vcmp.eq.s32.totalorder %v2225, 1
          %vm2258 = vcmp.eq.s32.totalorder %v2226, 1
          %vm2259 = vcmp.eq.s32.totalorder %v2227, 1
          %vm2260 = vcmp.eq.s32.totalorder %v2228, 1
          %vm2261 = vcmp.eq.s32.totalorder %v2229, 1
          %vm2262 = vcmp.eq.s32.totalorder %v2230, 1
          %vm2263 = vcmp.eq.s32.totalorder %v2231, 1
          %vm2264 = vcmp.eq.s32.totalorder %v2232, 1
          %vm2265 = vcmp.eq.s32.totalorder %v2233, 1
          %vm2266 = vcmp.eq.s32.totalorder %v2234, 1
          %vm2267 = vcmp.eq.s32.totalorder %v2235, 1
          %vm2268 = vcmp.eq.s32.totalorder %v2236, 1
          %v2269 = vsel %vm2237, %v2173, 0.0
          %v2270 = vsel %vm2238, %v2174, 0.0
          %v2271 = vsel %vm2239, %v2175, 0.0
          %v2272 = vsel %vm2240, %v2176, 0.0
          %v2273 = vsel %vm2241, %v2177, 0.0
          %v2274 = vsel %vm2242, %v2178, 0.0
          %v2275 = vsel %vm2243, %v2179, 0.0
          %v2276 = vsel %vm2244, %v2180, 0.0
          %v2277 = vsel %vm2245, %v2181, 0.0
          %v2278 = vsel %vm2246, %v2182, 0.0
          %v2279 = vsel %vm2247, %v2183, 0.0
          %v2280 = vsel %vm2248, %v2184, 0.0
          %v2281 = vsel %vm2249, %v2185, 0.0
          %v2282 = vsel %vm2250, %v2186, 0.0
          %v2283 = vsel %vm2251, %v2187, 0.0
          %v2284 = vsel %vm2252, %v2188, 0.0
          %v2285 = vsel %vm2253, %v2189, 0.0
          %v2286 = vsel %vm2254, %v2190, 0.0
          %v2287 = vsel %vm2255, %v2191, 0.0
          %v2288 = vsel %vm2256, %v2192, 0.0
          %v2289 = vsel %vm2257, %v2193, 0.0
          %v2290 = vsel %vm2258, %v2194, 0.0
          %v2291 = vsel %vm2259, %v2195, 0.0
          %v2292 = vsel %vm2260, %v2196, 0.0
          %v2293 = vsel %vm2261, %v2197, 0.0
          %v2294 = vsel %vm2262, %v2198, 0.0
          %v2295 = vsel %vm2263, %v2199, 0.0
          %v2296 = vsel %vm2264, %v2200, 0.0
          %v2297 = vsel %vm2265, %v2201, 0.0
          %v2298 = vsel %vm2266, %v2202, 0.0
          %v2299 = vsel %vm2267, %v2203, 0.0
          %v2300 = vsel %vm2268, %v2204, 0.0
          %v2301 = vld [vmem:[#allocation2] sm:$0xff]
          %v2302 = vld [vmem:[#allocation2 + $0x8] sm:$0xff]
          %v2303 = vld [vmem:[#allocation2 + $0x10] sm:$0xff]
          %v2304 = vld [vmem:[#allocation2 + $0x18] sm:$0xff]
          %v2305 = vld [vmem:[#allocation2 + $0x120] sm:$0xff]
          %v2306 = vld [vmem:[#allocation2 + $0x128] sm:$0xff]
          %v2307 = vld [vmem:[#allocation2 + $0x130] sm:$0xff]
          %v2308 = vld [vmem:[#allocation2 + $0x138] sm:$0xff]
          %2341 = vrot.lane.b32.xlu0 %v1981, 32
          %v2342 = vpop.permute.xlu0 %2341
          %2343 = vrot.lane.b32.xlu0 %v1982, 32
          %v2344 = vpop.permute.xlu0 %2343
          %2345 = vrot.lane.b32.xlu0 %v1983, 32
          %v2346 = vpop.permute.xlu0 %2345
          %2347 = vrot.lane.b32.xlu0 %v1984, 32
          %v2348 = vpop.permute.xlu0 %2347
          %2349 = vrot.lane.b32.xlu0 %v1985, 32
          %v2350 = vpop.permute.xlu0 %2349
          %2351 = vrot.lane.b32.xlu0 %v1986, 32
          %v2352 = vpop.permute.xlu0 %2351
          %2353 = vrot.lane.b32.xlu0 %v1987, 32
          %v2354 = vpop.permute.xlu0 %2353
          %2355 = vrot.lane.b32.xlu0 %v1988, 32
          %v2356 = vpop.permute.xlu0 %2355
          %2357 = vrot.lane.b32.xlu0 %v1989, 32
          %v2358 = vpop.permute.xlu0 %2357
          %2359 = vrot.lane.b32.xlu0 %v1990, 32
          %v2360 = vpop.permute.xlu0 %2359
          %2361 = vrot.lane.b32.xlu0 %v1991, 32
          %v2362 = vpop.permute.xlu0 %2361
          %2363 = vrot.lane.b32.xlu0 %v1992, 32
          %v2364 = vpop.permute.xlu0 %2363
          %2365 = vrot.lane.b32.xlu0 %v1993, 32
          %v2366 = vpop.permute.xlu0 %2365
          %2367 = vrot.lane.b32.xlu0 %v1994, 32
          %v2368 = vpop.permute.xlu0 %2367
          %2369 = vrot.lane.b32.xlu0 %v1995, 32
          %v2370 = vpop.permute.xlu0 %2369
          %2371 = vrot.lane.b32.xlu0 %v1996, 32
          %v2372 = vpop.permute.xlu0 %2371
          %2373 = vrot.lane.b32.xlu0 %v1997, 32
          %v2374 = vpop.permute.xlu0 %2373
          %2375 = vrot.lane.b32.xlu0 %v1998, 32
          %v2376 = vpop.permute.xlu0 %2375
          %2377 = vrot.lane.b32.xlu0 %v1999, 32
          %v2378 = vpop.permute.xlu0 %2377
          %2379 = vrot.lane.b32.xlu0 %v2000, 32
          %v2380 = vpop.permute.xlu0 %2379
          %2381 = vrot.lane.b32.xlu0 %v2001, 32
          %v2382 = vpop.permute.xlu0 %2381
          %2383 = vrot.lane.b32.xlu0 %v2002, 32
          %v2384 = vpop.permute.xlu0 %2383
          %2385 = vrot.lane.b32.xlu0 %v2003, 32
          %v2386 = vpop.permute.xlu0 %2385
          %2387 = vrot.lane.b32.xlu0 %v2004, 32
          %v2388 = vpop.permute.xlu0 %2387
          %2389 = vrot.lane.b32.xlu0 %v2005, 32
          %v2390 = vpop.permute.xlu0 %2389
          %2391 = vrot.lane.b32.xlu0 %v2006, 32
          %v2392 = vpop.permute.xlu0 %2391
          %2393 = vrot.lane.b32.xlu0 %v2007, 32
          %v2394 = vpop.permute.xlu0 %2393
          %2395 = vrot.lane.b32.xlu0 %v2008, 32
          %v2396 = vpop.permute.xlu0 %2395
          %2397 = vrot.lane.b32.xlu0 %v2009, 32
          %v2398 = vpop.permute.xlu0 %2397
          %2399 = vrot.lane.b32.xlu0 %v2010, 32
          %v2400 = vpop.permute.xlu0 %2399
          %2401 = vrot.lane.b32.xlu0 %v2011, 32
          %v2402 = vpop.permute.xlu0 %2401
          %2403 = vrot.lane.b32.xlu0 %v2012, 32
          %v2404 = vpop.permute.xlu0 %2403
          %2469 = vrot.lane.b32.xlu0 %v2013, 64
          %v2470 = vpop.permute.xlu0 %2469
          %2471 = vrot.lane.b32.xlu0 %v2014, 64
          %v2472 = vpop.permute.xlu0 %2471
          %2473 = vrot.lane.b32.xlu0 %v2015, 64
          %v2474 = vpop.permute.xlu0 %2473
          %2475 = vrot.lane.b32.xlu0 %v2016, 64
          %v2476 = vpop.permute.xlu0 %2475
          %2477 = vrot.lane.b32.xlu0 %v2017, 64
          %v2478 = vpop.permute.xlu0 %2477
          %2479 = vrot.lane.b32.xlu0 %v2018, 64
          %v2480 = vpop.permute.xlu0 %2479
          %2481 = vrot.lane.b32.xlu0 %v2019, 64
          %v2482 = vpop.permute.xlu0 %2481
          %2483 = vrot.lane.b32.xlu0 %v2020, 64
          %v2484 = vpop.permute.xlu0 %2483
          %2485 = vrot.lane.b32.xlu0 %v2021, 64
          %v2486 = vpop.permute.xlu0 %2485
          %2487 = vrot.lane.b32.xlu0 %v2022, 64
          %v2488 = vpop.permute.xlu0 %2487
          %2489 = vrot.lane.b32.xlu0 %v2023, 64
          %v2490 = vpop.permute.xlu0 %2489
          %2491 = vrot.lane.b32.xlu0 %v2024, 64
          %v2492 = vpop.permute.xlu0 %2491
          %2493 = vrot.lane.b32.xlu0 %v2025, 64
          %v2494 = vpop.permute.xlu0 %2493
          %2495 = vrot.lane.b32.xlu0 %v2026, 64
          %v2496 = vpop.permute.xlu0 %2495
          %2497 = vrot.lane.b32.xlu0 %v2027, 64
          %v2498 = vpop.permute.xlu0 %2497
          %2499 = vrot.lane.b32.xlu0 %v2028, 64
          %v2500 = vpop.permute.xlu0 %2499
          %2501 = vrot.lane.b32.xlu0 %v2029, 64
          %v2502 = vpop.permute.xlu0 %2501
          %2503 = vrot.lane.b32.xlu0 %v2030, 64
          %v2504 = vpop.permute.xlu0 %2503
          %2505 = vrot.lane.b32.xlu0 %v2031, 64
          %v2506 = vpop.permute.xlu0 %2505
          %2507 = vrot.lane.b32.xlu0 %v2032, 64
          %v2508 = vpop.permute.xlu0 %2507
          %2509 = vrot.lane.b32.xlu0 %v2033, 64
          %v2510 = vpop.permute.xlu0 %2509
          %2511 = vrot.lane.b32.xlu0 %v2034, 64
          %v2512 = vpop.permute.xlu0 %2511
          %2513 = vrot.lane.b32.xlu0 %v2035, 64
          %v2514 = vpop.permute.xlu0 %2513
          %2515 = vrot.lane.b32.xlu0 %v2036, 64
          %v2516 = vpop.permute.xlu0 %2515
          %2517 = vrot.lane.b32.xlu0 %v2037, 64
          %v2518 = vpop.permute.xlu0 %2517
          %2519 = vrot.lane.b32.xlu0 %v2038, 64
          %v2520 = vpop.permute.xlu0 %2519
          %2521 = vrot.lane.b32.xlu0 %v2039, 64
          %v2522 = vpop.permute.xlu0 %2521
          %2523 = vrot.lane.b32.xlu0 %v2040, 64
          %v2524 = vpop.permute.xlu0 %2523
          %2525 = vrot.lane.b32.xlu0 %v2041, 64
          %v2526 = vpop.permute.xlu0 %2525
          %2527 = vrot.lane.b32.xlu0 %v2042, 64
          %v2528 = vpop.permute.xlu0 %2527
          %2529 = vrot.lane.b32.xlu0 %v2043, 64
          %v2530 = vpop.permute.xlu0 %2529
          %2531 = vrot.lane.b32.xlu0 %v2044, 64
          %v2532 = vpop.permute.xlu0 %2531
          %2597 = vrot.lane.b32.xlu0 %v2141, 96
          %v2598 = vpop.permute.xlu0 %2597
          %2599 = vrot.lane.b32.xlu0 %v2142, 96
          %v2600 = vpop.permute.xlu0 %2599
          %2601 = vrot.lane.b32.xlu0 %v2143, 96
          %v2602 = vpop.permute.xlu0 %2601
          %2603 = vrot.lane.b32.xlu0 %v2144, 96
          %v2604 = vpop.permute.xlu0 %2603
          %2605 = vrot.lane.b32.xlu0 %v2145, 96
          %v2606 = vpop.permute.xlu0 %2605
          %2607 = vrot.lane.b32.xlu0 %v2146, 96
          %v2608 = vpop.permute.xlu0 %2607
          %2609 = vrot.lane.b32.xlu0 %v2147, 96
          %v2610 = vpop.permute.xlu0 %2609
          %2611 = vrot.lane.b32.xlu0 %v2148, 96
          %v2612 = vpop.permute.xlu0 %2611
          %2613 = vrot.lane.b32.xlu0 %v2149, 96
          %v2614 = vpop.permute.xlu0 %2613
          %2615 = vrot.lane.b32.xlu0 %v2150, 96
          %v2616 = vpop.permute.xlu0 %2615
          %2617 = vrot.lane.b32.xlu0 %v2151, 96
          %v2618 = vpop.permute.xlu0 %2617
          %2619 = vrot.lane.b32.xlu0 %v2152, 96
          %v2620 = vpop.permute.xlu0 %2619
          %2621 = vrot.lane.b32.xlu0 %v2153, 96
          %v2622 = vpop.permute.xlu0 %2621
          %2623 = vrot.lane.b32.xlu0 %v2154, 96
          %v2624 = vpop.permute.xlu0 %2623
          %2625 = vrot.lane.b32.xlu0 %v2155, 96
          %v2626 = vpop.permute.xlu0 %2625
          %2627 = vrot.lane.b32.xlu0 %v2156, 96
          %v2628 = vpop.permute.xlu0 %2627
          %2629 = vrot.lane.b32.xlu0 %v2157, 96
          %v2630 = vpop.permute.xlu0 %2629
          %2631 = vrot.lane.b32.xlu0 %v2158, 96
          %v2632 = vpop.permute.xlu0 %2631
          %2633 = vrot.lane.b32.xlu0 %v2159, 96
          %v2634 = vpop.permute.xlu0 %2633
          %2635 = vrot.lane.b32.xlu0 %v2160, 96
          %v2636 = vpop.permute.xlu0 %2635
          %2637 = vrot.lane.b32.xlu0 %v2161, 96
          %v2638 = vpop.permute.xlu0 %2637
          %2639 = vrot.lane.b32.xlu0 %v2162, 96
          %v2640 = vpop.permute.xlu0 %2639
          %2641 = vrot.lane.b32.xlu0 %v2163, 96
          %v2642 = vpop.permute.xlu0 %2641
          %2643 = vrot.lane.b32.xlu0 %v2164, 96
          %v2644 = vpop.permute.xlu0 %2643
          %2645 = vrot.lane.b32.xlu0 %v2165, 96
          %v2646 = vpop.permute.xlu0 %2645
          %2647 = vrot.lane.b32.xlu0 %v2166, 96
          %v2648 = vpop.permute.xlu0 %2647
          %2649 = vrot.lane.b32.xlu0 %v2167, 96
          %v2650 = vpop.permute.xlu0 %2649
          %2651 = vrot.lane.b32.xlu0 %v2168, 96
          %v2652 = vpop.permute.xlu0 %2651
          %2653 = vrot.lane.b32.xlu0 %v2169, 96
          %v2654 = vpop.permute.xlu0 %2653
          %2655 = vrot.lane.b32.xlu0 %v2170, 96
          %v2656 = vpop.permute.xlu0 %2655
          %2657 = vrot.lane.b32.xlu0 %v2171, 96
          %v2658 = vpop.permute.xlu0 %2657
          %2659 = vrot.lane.b32.xlu0 %v2172, 96
          %v2660 = vpop.permute.xlu0 %2659
          %2697 = vrot.lane.b32.xlu0 %v2301, 32
          %v2698 = vpop.permute.xlu0 %2697
          %2699 = vrot.lane.b32.xlu0 %v2302, 32
          %v2700 = vpop.permute.xlu0 %2699
          %2701 = vrot.lane.b32.xlu0 %v2303, 32
          %v2702 = vpop.permute.xlu0 %2701
          %2703 = vrot.lane.b32.xlu0 %v2304, 32
          %v2704 = vpop.permute.xlu0 %2703
          %2705 = vrot.lane.b32.xlu0 %v2013, 32
          %v2706 = vpop.permute.xlu0 %2705
          %2707 = vrot.lane.b32.xlu0 %v2014, 32
          %v2708 = vpop.permute.xlu0 %2707
          %2709 = vrot.lane.b32.xlu0 %v2015, 32
          %v2710 = vpop.permute.xlu0 %2709
          %2711 = vrot.lane.b32.xlu0 %v2016, 32
          %v2712 = vpop.permute.xlu0 %2711
          %2713 = vrot.lane.b32.xlu0 %v2017, 32
          %v2714 = vpop.permute.xlu0 %2713
          %2715 = vrot.lane.b32.xlu0 %v2018, 32
          %v2716 = vpop.permute.xlu0 %2715
          %2717 = vrot.lane.b32.xlu0 %v2019, 32
          %v2718 = vpop.permute.xlu0 %2717
          %2719 = vrot.lane.b32.xlu0 %v2020, 32
          %v2720 = vpop.permute.xlu0 %2719
          %2721 = vrot.lane.b32.xlu0 %v2021, 32
          %v2722 = vpop.permute.xlu0 %2721
          %2723 = vrot.lane.b32.xlu0 %v2022, 32
          %v2724 = vpop.permute.xlu0 %2723
          %2725 = vrot.lane.b32.xlu0 %v2023, 32
          %v2726 = vpop.permute.xlu0 %2725
          %2727 = vrot.lane.b32.xlu0 %v2024, 32
          %v2728 = vpop.permute.xlu0 %2727
          %2729 = vrot.lane.b32.xlu0 %v2025, 32
          %v2730 = vpop.permute.xlu0 %2729
          %2731 = vrot.lane.b32.xlu0 %v2026, 32
          %v2732 = vpop.permute.xlu0 %2731
          %2733 = vrot.lane.b32.xlu0 %v2027, 32
          %v2734 = vpop.permute.xlu0 %2733
          %2735 = vrot.lane.b32.xlu0 %v2028, 32
          %v2736 = vpop.permute.xlu0 %2735
          %2737 = vrot.lane.b32.xlu0 %v2029, 32
          %v2738 = vpop.permute.xlu0 %2737
          %2739 = vrot.lane.b32.xlu0 %v2030, 32
          %v2740 = vpop.permute.xlu0 %2739
          %2741 = vrot.lane.b32.xlu0 %v2031, 32
          %v2742 = vpop.permute.xlu0 %2741
          %2743 = vrot.lane.b32.xlu0 %v2032, 32
          %v2744 = vpop.permute.xlu0 %2743
          %2745 = vrot.lane.b32.xlu0 %v2033, 32
          %v2746 = vpop.permute.xlu0 %2745
          %2747 = vrot.lane.b32.xlu0 %v2034, 32
          %v2748 = vpop.permute.xlu0 %2747
          %2749 = vrot.lane.b32.xlu0 %v2035, 32
          %v2750 = vpop.permute.xlu0 %2749
          %2751 = vrot.lane.b32.xlu0 %v2036, 32
          %v2752 = vpop.permute.xlu0 %2751
          %2753 = vrot.lane.b32.xlu0 %v2037, 32
          %v2754 = vpop.permute.xlu0 %2753
          %2755 = vrot.lane.b32.xlu0 %v2038, 32
          %v2756 = vpop.permute.xlu0 %2755
          %2757 = vrot.lane.b32.xlu0 %v2039, 32
          %v2758 = vpop.permute.xlu0 %2757
          %2759 = vrot.lane.b32.xlu0 %v2040, 32
          %v2760 = vpop.permute.xlu0 %2759
          %2793 = vrot.lane.b32.xlu0 %v2303, 64
          %v2794 = vpop.permute.xlu0 %2793
          %2795 = vrot.lane.b32.xlu0 %v2304, 64
          %v2796 = vpop.permute.xlu0 %2795
          %2801 = vrot.lane.b32.xlu0 %v2015, 96
          %v2802 = vpop.permute.xlu0 %2801
          %2803 = vrot.lane.b32.xlu0 %v2016, 96
          %v2804 = vpop.permute.xlu0 %2803
          %2805 = vrot.lane.b32.xlu0 %v2017, 96
          %v2806 = vpop.permute.xlu0 %2805
          %2807 = vrot.lane.b32.xlu0 %v2018, 96
          %v2808 = vpop.permute.xlu0 %2807
          %2809 = vrot.lane.b32.xlu0 %v2019, 96
          %v2810 = vpop.permute.xlu0 %2809
          %2811 = vrot.lane.b32.xlu0 %v2020, 96
          %v2812 = vpop.permute.xlu0 %2811
          %2813 = vrot.lane.b32.xlu0 %v2021, 96
          %v2814 = vpop.permute.xlu0 %2813
          %2815 = vrot.lane.b32.xlu0 %v2022, 96
          %v2816 = vpop.permute.xlu0 %2815
          %2817 = vrot.lane.b32.xlu0 %v2023, 96
          %v2818 = vpop.permute.xlu0 %2817
          %2819 = vrot.lane.b32.xlu0 %v2024, 96
          %v2820 = vpop.permute.xlu0 %2819
          %2821 = vrot.lane.b32.xlu0 %v2025, 96
          %v2822 = vpop.permute.xlu0 %2821
          %2823 = vrot.lane.b32.xlu0 %v2026, 96
          %v2824 = vpop.permute.xlu0 %2823
          %2825 = vrot.lane.b32.xlu0 %v2027, 96
          %v2826 = vpop.permute.xlu0 %2825
          %2827 = vrot.lane.b32.xlu0 %v2028, 96
          %v2828 = vpop.permute.xlu0 %2827
          %2829 = vrot.lane.b32.xlu0 %v2029, 96
          %v2830 = vpop.permute.xlu0 %2829
          %2831 = vrot.lane.b32.xlu0 %v2030, 96
          %v2832 = vpop.permute.xlu0 %2831
          %2833 = vrot.lane.b32.xlu0 %v2031, 96
          %v2834 = vpop.permute.xlu0 %2833
          %2835 = vrot.lane.b32.xlu0 %v2032, 96
          %v2836 = vpop.permute.xlu0 %2835
          %2837 = vrot.lane.b32.xlu0 %v2033, 96
          %v2838 = vpop.permute.xlu0 %2837
          %2839 = vrot.lane.b32.xlu0 %v2034, 96
          %v2840 = vpop.permute.xlu0 %2839
          %2841 = vrot.lane.b32.xlu0 %v2035, 96
          %v2842 = vpop.permute.xlu0 %2841
          %2843 = vrot.lane.b32.xlu0 %v2036, 96
          %v2844 = vpop.permute.xlu0 %2843
          %2845 = vrot.lane.b32.xlu0 %v2037, 96
          %v2846 = vpop.permute.xlu0 %2845
          %2847 = vrot.lane.b32.xlu0 %v2038, 96
          %v2848 = vpop.permute.xlu0 %2847
          %2849 = vrot.lane.b32.xlu0 %v2039, 96
          %v2850 = vpop.permute.xlu0 %2849
          %2851 = vrot.lane.b32.xlu0 %v2040, 96
          %v2852 = vpop.permute.xlu0 %2851
          %2853 = vrot.lane.b32.xlu0 %v2041, 96
          %v2854 = vpop.permute.xlu0 %2853
          %2855 = vrot.lane.b32.xlu0 %v2042, 96
          %v2856 = vpop.permute.xlu0 %2855
          %2857 = vrot.lane.b32.xlu0 %v2043, 96
          %v2858 = vpop.permute.xlu0 %2857
          %2859 = vrot.lane.b32.xlu0 %v2044, 96
          %v2860 = vpop.permute.xlu0 %2859
          %2861 = vrot.lane.b32.xlu0 %v2305, 96
          %v2862 = vpop.permute.xlu0 %2861
          %2863 = vrot.lane.b32.xlu0 %v2306, 96
          %v2864 = vpop.permute.xlu0 %2863
          %v2897 = vsel %vm447, %v1853, %v2342
          %v2898 = vsel %vm447, %v1854, %v2344
          %v2899 = vsel %vm447, %v1855, %v2346
          %v2900 = vsel %vm447, %v1856, %v2348
          %v2901 = vsel %vm447, %v1857, %v2350
          %v2902 = vsel %vm447, %v1858, %v2352
          %v2903 = vsel %vm447, %v1859, %v2354
          %v2904 = vsel %vm447, %v1860, %v2356
          %v2905 = vsel %vm447, %v1861, %v2358
          %v2906 = vsel %vm447, %v1862, %v2360
          %v2907 = vsel %vm447, %v1863, %v2362
          %v2908 = vsel %vm447, %v1864, %v2364
          %v2909 = vsel %vm447, %v1865, %v2366
          %v2910 = vsel %vm447, %v1866, %v2368
          %v2911 = vsel %vm447, %v1867, %v2370
          %v2912 = vsel %vm447, %v1868, %v2372
          %v2913 = vsel %vm447, %v1869, %v2374
          %v2914 = vsel %vm447, %v1870, %v2376
          %v2915 = vsel %vm447, %v1871, %v2378
          %v2916 = vsel %vm447, %v1872, %v2380
          %v2917 = vsel %vm447, %v1873, %v2382
          %v2918 = vsel %vm447, %v1874, %v2384
          %v2919 = vsel %vm447, %v1875, %v2386
          %v2920 = vsel %vm447, %v1876, %v2388
          %v2921 = vsel %vm447, %v1877, %v2390
          %v2922 = vsel %vm447, %v1878, %v2392
          %v2923 = vsel %vm447, %v1879, %v2394
          %v2924 = vsel %vm447, %v1880, %v2396
          %v2925 = vsel %vm447, %v1881, %v2398
          %v2926 = vsel %vm447, %v1882, %v2400
          %v2927 = vsel %vm447, %v1883, %v2402
          %v2928 = vsel %vm447, %v1884, %v2404
          %vm2929 = vcmask 523264
          %v2930 = vsel %vm2929, %v2897, %v2470
          %v2931 = vsel %vm2929, %v2898, %v2472
          %v2932 = vsel %vm2929, %v2899, %v2474
          %v2933 = vsel %vm2929, %v2900, %v2476
          %v2934 = vsel %vm2929, %v2901, %v2478
          %v2935 = vsel %vm2929, %v2902, %v2480
          %v2936 = vsel %vm2929, %v2903, %v2482
          %v2937 = vsel %vm2929, %v2904, %v2484
          %v2938 = vsel %vm2929, %v2905, %v2486
          %v2939 = vsel %vm2929, %v2906, %v2488
          %v2940 = vsel %vm2929, %v2907, %v2490
          %v2941 = vsel %vm2929, %v2908, %v2492
          %v2942 = vsel %vm2929, %v2909, %v2494
          %v2943 = vsel %vm2929, %v2910, %v2496
          %v2944 = vsel %vm2929, %v2911, %v2498
          %v2945 = vsel %vm2929, %v2912, %v2500
          %v2946 = vsel %vm2929, %v2913, %v2502
          %v2947 = vsel %vm2929, %v2914, %v2504
          %v2948 = vsel %vm2929, %v2915, %v2506
          %v2949 = vsel %vm2929, %v2916, %v2508
          %v2950 = vsel %vm2929, %v2917, %v2510
          %v2951 = vsel %vm2929, %v2918, %v2512
          %v2952 = vsel %vm2929, %v2919, %v2514
          %v2953 = vsel %vm2929, %v2920, %v2516
          %v2954 = vsel %vm2929, %v2921, %v2518
          %v2955 = vsel %vm2929, %v2922, %v2520
          %v2956 = vsel %vm2929, %v2923, %v2522
          %v2957 = vsel %vm2929, %v2924, %v2524
          %v2958 = vsel %vm2929, %v2925, %v2526
          %v2959 = vsel %vm2929, %v2926, %v2528
          %v2960 = vsel %vm2929, %v2927, %v2530
          %v2961 = vsel %vm2929, %v2928, %v2532
          %vm2962 = vcmask 785408
          %v2963 = vsel %vm2962, %v2930, %v2598
          %v2964 = vsel %vm2962, %v2931, %v2600
          %v2965 = vsel %vm2962, %v2932, %v2602
          %v2966 = vsel %vm2962, %v2933, %v2604
          %v2967 = vsel %vm2962, %v2934, %v2606
          %v2968 = vsel %vm2962, %v2935, %v2608
          %v2969 = vsel %vm2962, %v2936, %v2610
          %v2970 = vsel %vm2962, %v2937, %v2612
          %v2971 = vsel %vm2962, %v2938, %v2614
          %v2972 = vsel %vm2962, %v2939, %v2616
          %v2973 = vsel %vm2962, %v2940, %v2618
          %v2974 = vsel %vm2962, %v2941, %v2620
          %v2975 = vsel %vm2962, %v2942, %v2622
          %v2976 = vsel %vm2962, %v2943, %v2624
          %v2977 = vsel %vm2962, %v2944, %v2626
          %v2978 = vsel %vm2962, %v2945, %v2628
          %v2979 = vsel %vm2962, %v2946, %v2630
          %v2980 = vsel %vm2962, %v2947, %v2632
          %v2981 = vsel %vm2962, %v2948, %v2634
          %v2982 = vsel %vm2962, %v2949, %v2636
          %v2983 = vsel %vm2962, %v2950, %v2638
          %v2984 = vsel %vm2962, %v2951, %v2640
          %v2985 = vsel %vm2962, %v2952, %v2642
          %v2986 = vsel %vm2962, %v2953, %v2644
          %v2987 = vsel %vm2962, %v2954, %v2646
          %v2988 = vsel %vm2962, %v2955, %v2648
          %v2989 = vsel %vm2962, %v2956, %v2650
          %v2990 = vsel %vm2962, %v2957, %v2652
          %v2991 = vsel %vm2962, %v2958, %v2654
          %v2992 = vsel %vm2962, %v2959, %v2656
          %v2993 = vsel %vm2962, %v2960, %v2658
          %v2994 = vsel %vm2962, %v2961, %v2660
          %v2995 = vsel %vm447, %v2269, %v2698
          %v2996 = vsel %vm447, %v2270, %v2700
          %v2997 = vsel %vm447, %v2271, %v2702
          %v2998 = vsel %vm447, %v2272, %v2704
          %v2999 = vsel %vm447, %v2273, %v2706
          %v3000 = vsel %vm447, %v2274, %v2708
          %v3001 = vsel %vm447, %v2275, %v2710
          %v3002 = vsel %vm447, %v2276, %v2712
          %v3003 = vsel %vm447, %v2277, %v2714
          %v3004 = vsel %vm447, %v2278, %v2716
          %v3005 = vsel %vm447, %v2279, %v2718
          %v3006 = vsel %vm447, %v2280, %v2720
          %v3007 = vsel %vm447, %v2281, %v2722
          %v3008 = vsel %vm447, %v2282, %v2724
          %v3009 = vsel %vm447, %v2283, %v2726
          %v3010 = vsel %vm447, %v2284, %v2728
          %v3011 = vsel %vm447, %v2285, %v2730
          %v3012 = vsel %vm447, %v2286, %v2732
          %v3013 = vsel %vm447, %v2287, %v2734
          %v3014 = vsel %vm447, %v2288, %v2736
          %v3015 = vsel %vm447, %v2289, %v2738
          %v3016 = vsel %vm447, %v2290, %v2740
          %v3017 = vsel %vm447, %v2291, %v2742
          %v3018 = vsel %vm447, %v2292, %v2744
          %v3019 = vsel %vm447, %v2293, %v2746
          %v3020 = vsel %vm447, %v2294, %v2748
          %v3021 = vsel %vm447, %v2295, %v2750
          %v3022 = vsel %vm447, %v2296, %v2752
          %v3023 = vsel %vm447, %v2297, %v2754
          %v3024 = vsel %vm447, %v2298, %v2756
          %v3025 = vsel %vm447, %v2299, %v2758
          %v3026 = vsel %vm447, %v2300, %v2760
          %v3027 = vsel %vm2929, %v2995, %v2794
          %v3028 = vsel %vm2929, %v2996, %v2796
          %v3029 = vsel %vm2929, %v2997, %v2470
          %v3030 = vsel %vm2929, %v2998, %v2472
          %v3031 = vsel %vm2929, %v2999, %v2474
          %v3032 = vsel %vm2929, %v3000, %v2476
          %v3033 = vsel %vm2929, %v3001, %v2478
          %v3034 = vsel %vm2929, %v3002, %v2480
          %v3035 = vsel %vm2929, %v3003, %v2482
          %v3036 = vsel %vm2929, %v3004, %v2484
          %v3037 = vsel %vm2929, %v3005, %v2486
          %v3038 = vsel %vm2929, %v3006, %v2488
          %v3039 = vsel %vm2929, %v3007, %v2490
          %v3040 = vsel %vm2929, %v3008, %v2492
          %v3041 = vsel %vm2929, %v3009, %v2494
          %v3042 = vsel %vm2929, %v3010, %v2496
          %v3043 = vsel %vm2929, %v3011, %v2498
          %v3044 = vsel %vm2929, %v3012, %v2500
          %v3045 = vsel %vm2929, %v3013, %v2502
          %v3046 = vsel %vm2929, %v3014, %v2504
          %v3047 = vsel %vm2929, %v3015, %v2506
          %v3048 = vsel %vm2929, %v3016, %v2508
          %v3049 = vsel %vm2929, %v3017, %v2510
          %v3050 = vsel %vm2929, %v3018, %v2512
          %v3051 = vsel %vm2929, %v3019, %v2514
          %v3052 = vsel %vm2929, %v3020, %v2516
          %v3053 = vsel %vm2929, %v3021, %v2518
          %v3054 = vsel %vm2929, %v3022, %v2520
          %v3055 = vsel %vm2929, %v3023, %v2522
          %v3056 = vsel %vm2929, %v3024, %v2524
          %v3057 = vsel %vm2929, %v3025, %v2526
          %v3058 = vsel %vm2929, %v3026, %v2528
          %v3059 = vsel %vm2962, %v3027, %v2802
          %v3060 = vsel %vm2962, %v3028, %v2804
          %v3061 = vsel %vm2962, %v3029, %v2806
          %v3062 = vsel %vm2962, %v3030, %v2808
          %v3063 = vsel %vm2962, %v3031, %v2810
          %v3064 = vsel %vm2962, %v3032, %v2812
          %v3065 = vsel %vm2962, %v3033, %v2814
          %v3066 = vsel %vm2962, %v3034, %v2816
          %v3067 = vsel %vm2962, %v3035, %v2818
          %v3068 = vsel %vm2962, %v3036, %v2820
          %v3069 = vsel %vm2962, %v3037, %v2822
          %v3070 = vsel %vm2962, %v3038, %v2824
          %v3071 = vsel %vm2962, %v3039, %v2826
          %v3072 = vsel %vm2962, %v3040, %v2828
          %v3073 = vsel %vm2962, %v3041, %v2830
          %v3074 = vsel %vm2962, %v3042, %v2832
          %v3075 = vsel %vm2962, %v3043, %v2834
          %v3076 = vsel %vm2962, %v3044, %v2836
          %v3077 = vsel %vm2962, %v3045, %v2838
          %v3078 = vsel %vm2962, %v3046, %v2840
          %v3079 = vsel %vm2962, %v3047, %v2842
          %v3080 = vsel %vm2962, %v3048, %v2844
          %v3081 = vsel %vm2962, %v3049, %v2846
          %v3082 = vsel %vm2962, %v3050, %v2848
          %v3083 = vsel %vm2962, %v3051, %v2850
          %v3084 = vsel %vm2962, %v3052, %v2852
          %v3085 = vsel %vm2962, %v3053, %v2854
          %v3086 = vsel %vm2962, %v3054, %v2856
          %v3087 = vsel %vm2962, %v3055, %v2858
          %v3088 = vsel %vm2962, %v3056, %v2860
          %v3089 = vsel %vm2962, %v3057, %v2862
          %v3090 = vsel %vm2962, %v3058, %v2864
          %v3091 = vpack.c.bf16 %v2964, %v2963
          %v3092 = vpack.c.bf16 %v3060, %v3059
          %v3093 = vpack.c.bf16 %v2018, %v2017
          %v3094 = vpack.c.bf16 %v2966, %v2965
          %v3095 = vpack.c.bf16 %v3062, %v3061
          %v3096 = vpack.c.bf16 %v2020, %v2019
          %v3097 = vpack.c.bf16 %v2968, %v2967
          %v3098 = vpack.c.bf16 %v3064, %v3063
          %v3099 = vpack.c.bf16 %v2022, %v2021
          %v3100 = vpack.c.bf16 %v2970, %v2969
          %v3101 = vpack.c.bf16 %v3066, %v3065
          %v3102 = vpack.c.bf16 %v2024, %v2023
          %v3103 = vpack.c.bf16 %v2972, %v2971
          %v3104 = vpack.c.bf16 %v3068, %v3067
          %v3105 = vpack.c.bf16 %v2026, %v2025
          %v3106 = vpack.c.bf16 %v2974, %v2973
          %v3107 = vpack.c.bf16 %v3070, %v3069
          %v3108 = vpack.c.bf16 %v2028, %v2027
          %v3109 = vpack.c.bf16 %v2976, %v2975
          %v3110 = vpack.c.bf16 %v3072, %v3071
          %v3111 = vpack.c.bf16 %v2030, %v2029
          %v3112 = vpack.c.bf16 %v2978, %v2977
          %v3113 = vpack.c.bf16 %v3074, %v3073
          %v3114 = vpack.c.bf16 %v2032, %v2031
          %v3115 = vpack.c.bf16 %v2980, %v2979
          %v3116 = vpack.c.bf16 %v3076, %v3075
          %v3117 = vpack.c.bf16 %v2034, %v2033
          %v3118 = vpack.c.bf16 %v2982, %v2981
          %v3119 = vpack.c.bf16 %v3078, %v3077
          %v3120 = vpack.c.bf16 %v2036, %v2035
          %v3121 = vpack.c.bf16 %v2984, %v2983
          %v3122 = vpack.c.bf16 %v3080, %v3079
          %v3123 = vpack.c.bf16 %v2038, %v2037
          %v3124 = vpack.c.bf16 %v2986, %v2985
          %v3125 = vpack.c.bf16 %v3082, %v3081
          %v3126 = vpack.c.bf16 %v2040, %v2039
          %v3127 = vpack.c.bf16 %v2988, %v2987
          %v3128 = vpack.c.bf16 %v3084, %v3083
          %v3129 = vpack.c.bf16 %v2042, %v2041
          %v3130 = vpack.c.bf16 %v2990, %v2989
          %v3131 = vpack.c.bf16 %v3086, %v3085
          %v3132 = vpack.c.bf16 %v2044, %v2043
          %v3133 = vpack.c.bf16 %v2992, %v2991
          %v3134 = vpack.c.bf16 %v3088, %v3087
          %v3135 = vpack.c.bf16 %v2306, %v2305
          %v3136 = vpack.c.bf16 %v2994, %v2993
          %v3137 = vpack.c.bf16 %v3090, %v3089
          %v3138 = vpack.c.bf16 %v2308, %v2307
          %s3139 = smul.u32 %s1752, 36
          %s3140 = smul.addr %s3139, 4
          %s3141 = scalar_lea.vmem [#allocation7], %s3140
          %v3142 = vld [vmem:[%s3141] sm:$0xf]
          %v3143 = vld [vmem:[%s3141 + $0x4] sm:$0xf]
          %v3144 = vld [vmem:[%s3141 + $0x8] sm:$0xf]
          %v3145 = vld [vmem:[%s3141 + $0xc] sm:$0xf]
          %v3146 = vld [vmem:[%s3141 + $0x10] sm:$0xf]
          %v3147 = vld [vmem:[%s3141 + $0x14] sm:$0xf]
          %v3148 = vld [vmem:[%s3141 + $0x18] sm:$0xf]
          %v3149 = vld [vmem:[%s3141 + $0x1c] sm:$0xf]
          %v3150 = vld [vmem:[%s3141 + $0x20] sm:$0xf]
          %v3151 = vld [vmem:[%s3141 + $0x24] sm:$0xf]
          %v3152 = vld [vmem:[%s3141 + $0x28] sm:$0xf]
          %v3153 = vld [vmem:[%s3141 + $0x2c] sm:$0xf]
          %v3154 = vld [vmem:[%s3141 + $0x30] sm:$0xf]
          %v3155 = vld [vmem:[%s3141 + $0x34] sm:$0xf]
          %v3156 = vld [vmem:[%s3141 + $0x38] sm:$0xf]
          %v3157 = vld [vmem:[%s3141 + $0x3c] sm:$0xf]
          %v3158 = vld [vmem:[%s3141 + $0x40] sm:$0xf]
          %v3159 = vld [vmem:[%s3141 + $0x44] sm:$0xf]
          %v3160 = vld [vmem:[%s3141 + $0x48] sm:$0xf]
          %v3161 = vld [vmem:[%s3141 + $0x4c] sm:$0xf]
          %v3162 = vld [vmem:[%s3141 + $0x50] sm:$0xf]
          %v3163 = vld [vmem:[%s3141 + $0x54] sm:$0xf]
          %v3164 = vld [vmem:[%s3141 + $0x58] sm:$0xf]
          %v3165 = vld [vmem:[%s3141 + $0x5c] sm:$0xf]
          %v3166 = vld [vmem:[%s3141 + $0x60] sm:$0xf]
          %v3167 = vld [vmem:[%s3141 + $0x64] sm:$0xf]
          %v3168 = vld [vmem:[%s3141 + $0x68] sm:$0xf]
          %v3169 = vld [vmem:[%s3141 + $0x6c] sm:$0xf]
          %v3170 = vld [vmem:[%s3141 + $0x70] sm:$0xf]
          %v3171 = vld [vmem:[%s3141 + $0x74] sm:$0xf]
          %v3172 = vld [vmem:[%s3141 + $0x78] sm:$0xf]
          %v3173 = vld [vmem:[%s3141 + $0x7c] sm:$0xf]
          %v3174 = vld [vmem:[%s3141 + $0x80] sm:$0xf]
          %v3175 = vld [vmem:[%s3141 + $0x84] sm:$0xf]
          %v3176 = vld [vmem:[%s3141 + $0x88] sm:$0xf]
          %v3177 = vld [vmem:[%s3141 + $0x8c] sm:$0xf]
          %v3214 = vunpack.c.l.b16 %v3142
          %v3215 = vunpack.c.l.b16 %v3143
          %v3216 = vunpack.c.l.b16 %v3144
          %v3217 = vunpack.c.l.b16 %v3145
          %v3218 = vunpack.c.l.b16 %v3146
          %v3219 = vunpack.c.l.b16 %v3147
          %v3220 = vunpack.c.l.b16 %v3148
          %v3221 = vunpack.c.l.b16 %v3149
          %v3222 = vunpack.c.l.b16 %v3150
          %v3223 = vunpack.c.l.b16 %v3151
          %v3224 = vunpack.c.l.b16 %v3152
          %v3225 = vunpack.c.l.b16 %v3153
          %v3226 = vunpack.c.l.b16 %v3154
          %v3227 = vunpack.c.l.b16 %v3155
          %v3228 = vunpack.c.l.b16 %v3156
          %v3229 = vunpack.c.l.b16 %v3157
          %v3230 = vunpack.c.l.b16 %v3158
          %v3231 = vunpack.c.l.b16 %v3159
          %v3232 = vunpack.c.l.b16 %v3160
          %v3233 = vunpack.c.l.b16 %v3161
          %v3234 = vunpack.c.l.b16 %v3162
          %v3235 = vunpack.c.l.b16 %v3163
          %v3236 = vunpack.c.l.b16 %v3164
          %v3237 = vunpack.c.l.b16 %v3165
          %v3238 = vunpack.c.l.b16 %v3166
          %v3239 = vunpack.c.l.b16 %v3167
          %v3240 = vunpack.c.l.b16 %v3168
          %v3241 = vunpack.c.l.b16 %v3169
          %v3242 = vunpack.c.l.b16 %v3170
          %v3243 = vunpack.c.l.b16 %v3171
          %v3244 = vunpack.c.l.b16 %v3172
          %v3245 = vunpack.c.l.b16 %v3173
          %v3246 = vunpack.c.l.b16 %v3174
          %v3247 = vunpack.c.l.b16 %v3175
          %v3248 = vunpack.c.l.b16 %v3176
          %v3249 = vunpack.c.l.b16 %v3177
          %v3250 = vpack.c.b16 %v3215, %v3214
          %v3251 = vpack.c.b16 %v3217, %v3216
          %v3252 = vpack.c.b16 %v3219, %v3218
          %v3253 = vpack.c.b16 %v3221, %v3220
          %v3254 = vpack.c.b16 %v3223, %v3222
          %v3255 = vpack.c.b16 %v3225, %v3224
          %v3256 = vpack.c.b16 %v3227, %v3226
          %v3257 = vpack.c.b16 %v3229, %v3228
          %v3258 = vpack.c.b16 %v3231, %v3230
          %v3259 = vpack.c.b16 %v3233, %v3232
          %v3260 = vpack.c.b16 %v3235, %v3234
          %v3261 = vpack.c.b16 %v3237, %v3236
          %v3262 = vpack.c.b16 %v3239, %v3238
          %v3263 = vpack.c.b16 %v3241, %v3240
          %v3264 = vpack.c.b16 %v3243, %v3242
          %v3265 = vpack.c.b16 %v3245, %v3244
          %v3266 = vpack.c.b16 %v3247, %v3246
          %v3267 = vpack.c.b16 %v3249, %v3248
          %v3287 = vsel %vm447, %v3093, 0
          %v3290 = vsel %vm447, %v3096, 0
          %v3293 = vsel %vm447, %v3099, 0
          %v3296 = vsel %vm447, %v3102, 0
          %v3299 = vsel %vm447, %v3105, 0
          %v3302 = vsel %vm447, %v3108, 0
          %v3305 = vsel %vm447, %v3111, 0
          %v3308 = vsel %vm447, %v3114, 0
          %v3311 = vsel %vm447, %v3117, 0
          %v3314 = vsel %vm447, %v3120, 0
          %v3317 = vsel %vm447, %v3123, 0
          %v3320 = vsel %vm447, %v3126, 0
          %v3323 = vsel %vm447, %v3129, 0
          %v3326 = vsel %vm447, %v3132, 0
          %v3329 = vsel %vm447, %v3135, 0
          %v3332 = vsel %vm447, %v3138, 0
          %3334 = vmatprep.subr.bf16.mxu0 0
          %3335 = vmatpush1.bf16.msra.mxu0 %v3257
          %3336 = vmatprep.subr.bf16.mxu0 0
          %3337 = vmatpush1.bf16.msra.mxu0 %v3256
          %3338 = vmatprep.subr.bf16.mxu0 0
          %3339 = vmatpush1.bf16.msra.mxu0 %v3255
          %3340 = vmatprep.subr.bf16.mxu0 0
          %3341 = vmatpush1.bf16.msra.mxu0 %v3254
          %3342 = vmatprep.subr.bf16.mxu0 0
          %3343 = vmatpush1.bf16.msra.mxu0 %v3253
          %3344 = vmatprep.subr.bf16.mxu0 0
          %3345 = vmatpush1.bf16.msra.mxu0 %v3252
          %3346 = vmatprep.subr.bf16.mxu0 0
          %3347 = vmatpush1.bf16.msra.mxu0 %v3251
          %3348 = vmatprep.subr.bf16.mxu0 0
          %3349 = vmatpush1.bf16.msra.mxu0 %v3250
          %3350 = vmatprep.subr.bf16.mxu0 0
          %3351 = vmatpush2.bf16.msra.mxu0 %v3265
          %3352 = vmatprep.subr.bf16.mxu0 0
          %3353 = vmatpush2.bf16.msra.mxu0 %v3264
          %3354 = vmatprep.subr.bf16.mxu0 0
          %3355 = vmatpush2.bf16.msra.mxu0 %v3263
          %3356 = vmatprep.subr.bf16.mxu0 0
          %3357 = vmatpush2.bf16.msra.mxu0 %v3262
          %3358 = vmatprep.subr.bf16.mxu0 0
          %3359 = vmatpush2.bf16.msra.mxu0 %v3261
          %3360 = vmatprep.subr.bf16.mxu0 0
          %3361 = vmatpush2.bf16.msra.mxu0 %v3260
          %3362 = vmatprep.subr.bf16.mxu0 0
          %3363 = vmatpush2.bf16.msra.mxu0 %v3259
          %3364 = vmatprep.subr.bf16.mxu0 0
          %3365 = vmatpush2.bf16.msra.mxu0 %v3258
          %3366 = vmatprep.mubr.bf16.mxu0 %v3092
          %3367 = vmatmul.mubr.bf16.gmra.mxu0 %v3091
          %v3368 = vpop.f32.mrf.mxu0
          %v3369 = vadd.f32 0.0, %v3368
          %v3370 = vpop.f32.mrf.mxu0
          %v3371 = vpop.f32.mrf.mxu0
          %v3372 = vadd.f32 0.0, %v3371
          %v3373 = vpop.f32.mrf.mxu0
          %3374 = vmatprep.mubr.bf16.mxu0 %v3095
          %3375 = vmatmul.mubr.bf16.gmra.mxu0 %v3094
          %v3376 = vpop.f32.mrf.mxu0
          %v3377 = vadd.f32 0.0, %v3376
          %v3378 = vpop.f32.mrf.mxu0
          %v3379 = vpop.f32.mrf.mxu0
          %v3380 = vadd.f32 0.0, %v3379
          %v3381 = vpop.f32.mrf.mxu0
          %3382 = vmatprep.mubr.bf16.mxu0 %v3098
          %3383 = vmatmul.mubr.bf16.gmra.mxu0 %v3097
          %v3384 = vpop.f32.mrf.mxu0
          %v3385 = vadd.f32 0.0, %v3384
          %v3386 = vpop.f32.mrf.mxu0
          %v3387 = vpop.f32.mrf.mxu0
          %v3388 = vadd.f32 0.0, %v3387
          %v3389 = vpop.f32.mrf.mxu0
          %3390 = vmatprep.mubr.bf16.mxu0 %v3101
          %3391 = vmatmul.mubr.bf16.gmra.mxu0 %v3100
          %v3392 = vpop.f32.mrf.mxu0
          %v3393 = vadd.f32 0.0, %v3392
          %v3394 = vpop.f32.mrf.mxu0
          %v3395 = vpop.f32.mrf.mxu0
          %v3396 = vadd.f32 0.0, %v3395
          %v3397 = vpop.f32.mrf.mxu0
          %3398 = vmatprep.mubr.bf16.mxu0 %v3104
          %3399 = vmatmul.mubr.bf16.gmra.mxu0 %v3103
          %v3400 = vpop.f32.mrf.mxu0
          %v3401 = vadd.f32 0.0, %v3400
          %v3402 = vpop.f32.mrf.mxu0
          %v3403 = vpop.f32.mrf.mxu0
          %v3404 = vadd.f32 0.0, %v3403
          %v3405 = vpop.f32.mrf.mxu0
          %3406 = vmatprep.mubr.bf16.mxu0 %v3107
          %3407 = vmatmul.mubr.bf16.gmra.mxu0 %v3106
          %v3408 = vpop.f32.mrf.mxu0
          %v3409 = vadd.f32 0.0, %v3408
          %v3410 = vpop.f32.mrf.mxu0
          %v3411 = vpop.f32.mrf.mxu0
          %v3412 = vadd.f32 0.0, %v3411
          %v3413 = vpop.f32.mrf.mxu0
          %3414 = vmatprep.mubr.bf16.mxu0 %v3110
          %3415 = vmatmul.mubr.bf16.gmra.mxu0 %v3109
          %v3416 = vpop.f32.mrf.mxu0
          %v3417 = vadd.f32 0.0, %v3416
          %v3418 = vpop.f32.mrf.mxu0
          %v3419 = vpop.f32.mrf.mxu0
          %v3420 = vadd.f32 0.0, %v3419
          %v3421 = vpop.f32.mrf.mxu0
          %3422 = vmatprep.mubr.bf16.mxu0 %v3113
          %3423 = vmatmul.mubr.bf16.gmra.mxu0 %v3112
          %v3424 = vpop.f32.mrf.mxu0
          %v3425 = vadd.f32 0.0, %v3424
          %v3426 = vpop.f32.mrf.mxu0
          %v3427 = vpop.f32.mrf.mxu0
          %v3428 = vadd.f32 0.0, %v3427
          %v3429 = vpop.f32.mrf.mxu0
          %3430 = vmatprep.mubr.bf16.mxu0 %v3116
          %3431 = vmatmul.mubr.bf16.gmra.mxu0 %v3115
          %v3432 = vpop.f32.mrf.mxu0
          %v3433 = vadd.f32 0.0, %v3432
          %v3434 = vpop.f32.mrf.mxu0
          %v3435 = vpop.f32.mrf.mxu0
          %v3436 = vadd.f32 0.0, %v3435
          %v3437 = vpop.f32.mrf.mxu0
          %3438 = vmatprep.mubr.bf16.mxu0 %v3119
          %3439 = vmatmul.mubr.bf16.gmra.mxu0 %v3118
          %v3440 = vpop.f32.mrf.mxu0
          %v3441 = vadd.f32 0.0, %v3440
          %v3442 = vpop.f32.mrf.mxu0
          %v3443 = vpop.f32.mrf.mxu0
          %v3444 = vadd.f32 0.0, %v3443
          %v3445 = vpop.f32.mrf.mxu0
          %3446 = vmatprep.mubr.bf16.mxu0 %v3122
          %3447 = vmatmul.mubr.bf16.gmra.mxu0 %v3121
          %v3448 = vpop.f32.mrf.mxu0
          %v3449 = vadd.f32 0.0, %v3448
          %v3450 = vpop.f32.mrf.mxu0
          %v3451 = vpop.f32.mrf.mxu0
          %v3452 = vadd.f32 0.0, %v3451
          %v3453 = vpop.f32.mrf.mxu0
          %3454 = vmatprep.mubr.bf16.mxu0 %v3125
          %3455 = vmatmul.mubr.bf16.gmra.mxu0 %v3124
          %v3456 = vpop.f32.mrf.mxu0
          %v3457 = vadd.f32 0.0, %v3456
          %v3458 = vpop.f32.mrf.mxu0
          %v3459 = vpop.f32.mrf.mxu0
          %v3460 = vadd.f32 0.0, %v3459
          %v3461 = vpop.f32.mrf.mxu0
          %3462 = vmatprep.mubr.bf16.mxu0 %v3128
          %3463 = vmatmul.mubr.bf16.gmra.mxu0 %v3127
          %v3464 = vpop.f32.mrf.mxu0
          %v3465 = vadd.f32 0.0, %v3464
          %v3466 = vpop.f32.mrf.mxu0
          %v3467 = vpop.f32.mrf.mxu0
          %v3468 = vadd.f32 0.0, %v3467
          %v3469 = vpop.f32.mrf.mxu0
          %3470 = vmatprep.mubr.bf16.mxu0 %v3131
          %3471 = vmatmul.mubr.bf16.gmra.mxu0 %v3130
          %v3472 = vpop.f32.mrf.mxu0
          %v3473 = vadd.f32 0.0, %v3472
          %v3474 = vpop.f32.mrf.mxu0
          %v3475 = vpop.f32.mrf.mxu0
          %v3476 = vadd.f32 0.0, %v3475
          %v3477 = vpop.f32.mrf.mxu0
          %3478 = vmatprep.mubr.bf16.mxu0 %v3134
          %3479 = vmatmul.mubr.bf16.gmra.mxu0 %v3133
          %v3480 = vpop.f32.mrf.mxu0
          %v3481 = vadd.f32 0.0, %v3480
          %v3482 = vpop.f32.mrf.mxu0
          %v3483 = vpop.f32.mrf.mxu0
          %v3484 = vadd.f32 0.0, %v3483
          %v3485 = vpop.f32.mrf.mxu0
          %3486 = vmatprep.mubr.bf16.mxu0 %v3137
          %3487 = vmatmul.mubr.bf16.gmra.mxu0 %v3136
          %v3488 = vpop.f32.mrf.mxu0
          %v3489 = vadd.f32 0.0, %v3488
          %v3490 = vpop.f32.mrf.mxu0
          %v3491 = vpop.f32.mrf.mxu0
          %v3492 = vadd.f32 0.0, %v3491
          %v3493 = vpop.f32.mrf.mxu0
          %3494 = vdwg.mxu0
          %3495 = vmatprep.subr.bf16.mxu0 0
          %3496 = vmatpush1.bf16.msra.mxu0 0
          %3497 = vmatprep.subr.bf16.mxu0 0
          %3498 = vmatpush1.bf16.msra.mxu0 0
          %3499 = vmatprep.subr.bf16.mxu0 0
          %3500 = vmatpush1.bf16.msra.mxu0 0
          %3501 = vmatprep.subr.bf16.mxu0 0
          %3502 = vmatpush1.bf16.msra.mxu0 0
          %3503 = vmatprep.subr.bf16.mxu0 0
          %3504 = vmatpush1.bf16.msra.mxu0 0
          %3505 = vmatprep.subr.bf16.mxu0 0
          %3506 = vmatpush1.bf16.msra.mxu0 0
          %3507 = vmatprep.subr.bf16.mxu0 0
          %3508 = vmatpush1.bf16.msra.mxu0 %v3267
          %3509 = vmatprep.subr.bf16.mxu0 0
          %3510 = vmatpush1.bf16.msra.mxu0 %v3266
          %3511 = vmatprep.subr.bf16.mxu0 0
          %3512 = vmatpush2.bf16.msra.mxu0 0
          %3513 = vmatprep.subr.bf16.mxu0 0
          %3514 = vmatpush2.bf16.msra.mxu0 0
          %3515 = vmatprep.subr.bf16.mxu0 0
          %3516 = vmatpush2.bf16.msra.mxu0 0
          %3517 = vmatprep.subr.bf16.mxu0 0
          %3518 = vmatpush2.bf16.msra.mxu0 0
          %3519 = vmatprep.subr.bf16.mxu0 0
          %3520 = vmatpush2.bf16.msra.mxu0 0
          %3521 = vmatprep.subr.bf16.mxu0 0
          %3522 = vmatpush2.bf16.msra.mxu0 0
          %3523 = vmatprep.subr.bf16.mxu0 0
          %3524 = vmatpush2.bf16.msra.mxu0 0
          %3525 = vmatprep.subr.bf16.mxu0 0
          %3526 = vmatpush2.bf16.msra.mxu0 0
          %3527 = vmatprep.mubr.bf16.mxu0 0
          %3528 = vmatmul.mubr.bf16.gmra.mxu0 %v3287
          %v3529 = vpop.f32.mrf.mxu0
          %v3530 = vadd.f32 %v3369, %v3529
          %v3531 = vpop.f32.mrf.mxu0
          %v3532 = vpop.f32.mrf.mxu0
          %v3533 = vadd.f32 %v3372, %v3532
          %v3534 = vpop.f32.mrf.mxu0
          %3535 = vmatprep.mubr.bf16.mxu0 0
          %3536 = vmatmul.mubr.bf16.gmra.mxu0 %v3290
          %v3537 = vpop.f32.mrf.mxu0
          %v3538 = vadd.f32 %v3377, %v3537
          %v3539 = vpop.f32.mrf.mxu0
          %v3540 = vpop.f32.mrf.mxu0
          %v3541 = vadd.f32 %v3380, %v3540
          %v3542 = vpop.f32.mrf.mxu0
          %3543 = vmatprep.mubr.bf16.mxu0 0
          %3544 = vmatmul.mubr.bf16.gmra.mxu0 %v3293
          %v3545 = vpop.f32.mrf.mxu0
          %v3546 = vadd.f32 %v3385, %v3545
          %v3547 = vpop.f32.mrf.mxu0
          %v3548 = vpop.f32.mrf.mxu0
          %v3549 = vadd.f32 %v3388, %v3548
          %v3550 = vpop.f32.mrf.mxu0
          %3551 = vmatprep.mubr.bf16.mxu0 0
          %3552 = vmatmul.mubr.bf16.gmra.mxu0 %v3296
          %v3553 = vpop.f32.mrf.mxu0
          %v3554 = vadd.f32 %v3393, %v3553
          %v3555 = vpop.f32.mrf.mxu0
          %v3556 = vpop.f32.mrf.mxu0
          %v3557 = vadd.f32 %v3396, %v3556
          %v3558 = vpop.f32.mrf.mxu0
          %3559 = vmatprep.mubr.bf16.mxu0 0
          %3560 = vmatmul.mubr.bf16.gmra.mxu0 %v3299
          %v3561 = vpop.f32.mrf.mxu0
          %v3562 = vadd.f32 %v3401, %v3561
          %v3563 = vpop.f32.mrf.mxu0
          %v3564 = vpop.f32.mrf.mxu0
          %v3565 = vadd.f32 %v3404, %v3564
          %v3566 = vpop.f32.mrf.mxu0
          %3567 = vmatprep.mubr.bf16.mxu0 0
          %3568 = vmatmul.mubr.bf16.gmra.mxu0 %v3302
          %v3569 = vpop.f32.mrf.mxu0
          %v3570 = vadd.f32 %v3409, %v3569
          %v3571 = vpop.f32.mrf.mxu0
          %v3572 = vpop.f32.mrf.mxu0
          %v3573 = vadd.f32 %v3412, %v3572
          %v3574 = vpop.f32.mrf.mxu0
          %3575 = vmatprep.mubr.bf16.mxu0 0
          %3576 = vmatmul.mubr.bf16.gmra.mxu0 %v3305
          %v3577 = vpop.f32.mrf.mxu0
          %v3578 = vadd.f32 %v3417, %v3577
          %v3579 = vpop.f32.mrf.mxu0
          %v3580 = vpop.f32.mrf.mxu0
          %v3581 = vadd.f32 %v3420, %v3580
          %v3582 = vpop.f32.mrf.mxu0
          %3583 = vmatprep.mubr.bf16.mxu0 0
          %3584 = vmatmul.mubr.bf16.gmra.mxu0 %v3308
          %v3585 = vpop.f32.mrf.mxu0
          %v3586 = vadd.f32 %v3425, %v3585
          %v3587 = vpop.f32.mrf.mxu0
          %v3588 = vpop.f32.mrf.mxu0
          %v3589 = vadd.f32 %v3428, %v3588
          %v3590 = vpop.f32.mrf.mxu0
          %3591 = vmatprep.mubr.bf16.mxu0 0
          %3592 = vmatmul.mubr.bf16.gmra.mxu0 %v3311
          %v3593 = vpop.f32.mrf.mxu0
          %v3594 = vadd.f32 %v3433, %v3593
          %v3595 = vpop.f32.mrf.mxu0
          %v3596 = vpop.f32.mrf.mxu0
          %v3597 = vadd.f32 %v3436, %v3596
          %v3598 = vpop.f32.mrf.mxu0
          %3599 = vmatprep.mubr.bf16.mxu0 0
          %3600 = vmatmul.mubr.bf16.gmra.mxu0 %v3314
          %v3601 = vpop.f32.mrf.mxu0
          %v3602 = vadd.f32 %v3441, %v3601
          %v3603 = vpop.f32.mrf.mxu0
          %v3604 = vpop.f32.mrf.mxu0
          %v3605 = vadd.f32 %v3444, %v3604
          %v3606 = vpop.f32.mrf.mxu0
          %3607 = vmatprep.mubr.bf16.mxu0 0
          %3608 = vmatmul.mubr.bf16.gmra.mxu0 %v3317
          %v3609 = vpop.f32.mrf.mxu0
          %v3610 = vadd.f32 %v3449, %v3609
          %v3611 = vpop.f32.mrf.mxu0
          %v3612 = vpop.f32.mrf.mxu0
          %v3613 = vadd.f32 %v3452, %v3612
          %v3614 = vpop.f32.mrf.mxu0
          %3615 = vmatprep.mubr.bf16.mxu0 0
          %3616 = vmatmul.mubr.bf16.gmra.mxu0 %v3320
          %v3617 = vpop.f32.mrf.mxu0
          %v3618 = vadd.f32 %v3457, %v3617
          %v3619 = vpop.f32.mrf.mxu0
          %v3620 = vpop.f32.mrf.mxu0
          %v3621 = vadd.f32 %v3460, %v3620
          %v3622 = vpop.f32.mrf.mxu0
          %3623 = vmatprep.mubr.bf16.mxu0 0
          %3624 = vmatmul.mubr.bf16.gmra.mxu0 %v3323
          %v3625 = vpop.f32.mrf.mxu0
          %v3626 = vadd.f32 %v3465, %v3625
          %v3627 = vpop.f32.mrf.mxu0
          %v3628 = vpop.f32.mrf.mxu0
          %v3629 = vadd.f32 %v3468, %v3628
          %v3630 = vpop.f32.mrf.mxu0
          %3631 = vmatprep.mubr.bf16.mxu0 0
          %3632 = vmatmul.mubr.bf16.gmra.mxu0 %v3326
          %v3633 = vpop.f32.mrf.mxu0
          %v3634 = vadd.f32 %v3473, %v3633
          %v3635 = vpop.f32.mrf.mxu0
          %v3636 = vpop.f32.mrf.mxu0
          %v3637 = vadd.f32 %v3476, %v3636
          %v3638 = vpop.f32.mrf.mxu0
          %3639 = vmatprep.mubr.bf16.mxu0 0
          %3640 = vmatmul.mubr.bf16.gmra.mxu0 %v3329
          %v3641 = vpop.f32.mrf.mxu0
          %v3642 = vadd.f32 %v3481, %v3641
          %v3643 = vpop.f32.mrf.mxu0
          %v3644 = vpop.f32.mrf.mxu0
          %v3645 = vadd.f32 %v3484, %v3644
          %v3646 = vpop.f32.mrf.mxu0
          %3647 = vmatprep.mubr.bf16.mxu0 0
          %3648 = vmatmul.mubr.bf16.gmra.mxu0 %v3332
          %v3649 = vpop.f32.mrf.mxu0
          %v3650 = vadd.f32 %v3489, %v3649
          %v3651 = vpop.f32.mrf.mxu0
          %v3652 = vpop.f32.mrf.mxu0
          %v3653 = vadd.f32 %v3492, %v3652
          %v3654 = vpop.f32.mrf.mxu0
          %3655 = vdwg.mxu0
          %s3656 = scalar_lea.vmem [#allocation8], %s1752
          %v3657 = vld [vmem:[%s3656] sm:$0x1]
          %v3659 = vlaneseq
          %v3660 = vshrl.u32 %v3659, 7
          %v3661 = vsub.s32 0, %v3660
          %v3662 = vrot.slane %v3657, %v3661
          %v3664 = vmul.f32 %v3530, %v3662
          %v3665 = vmul.f32 %v3533, %v3662
          %v3666 = vmul.f32 %v3538, %v3662
          %v3667 = vmul.f32 %v3541, %v3662
          %v3668 = vmul.f32 %v3546, %v3662
          %v3669 = vmul.f32 %v3549, %v3662
          %v3670 = vmul.f32 %v3554, %v3662
          %v3671 = vmul.f32 %v3557, %v3662
          %v3672 = vmul.f32 %v3562, %v3662
          %v3673 = vmul.f32 %v3565, %v3662
          %v3674 = vmul.f32 %v3570, %v3662
          %v3675 = vmul.f32 %v3573, %v3662
          %v3676 = vmul.f32 %v3578, %v3662
          %v3677 = vmul.f32 %v3581, %v3662
          %v3678 = vmul.f32 %v3586, %v3662
          %v3679 = vmul.f32 %v3589, %v3662
          %v3680 = vmul.f32 %v3594, %v3662
          %v3681 = vmul.f32 %v3597, %v3662
          %v3682 = vmul.f32 %v3602, %v3662
          %v3683 = vmul.f32 %v3605, %v3662
          %v3684 = vmul.f32 %v3610, %v3662
          %v3685 = vmul.f32 %v3613, %v3662
          %v3686 = vmul.f32 %v3618, %v3662
          %v3687 = vmul.f32 %v3621, %v3662
          %v3688 = vmul.f32 %v3626, %v3662
          %v3689 = vmul.f32 %v3629, %v3662
          %v3690 = vmul.f32 %v3634, %v3662
          %v3691 = vmul.f32 %v3637, %v3662
          %v3692 = vmul.f32 %v3642, %v3662
          %v3693 = vmul.f32 %v3645, %v3662
          %v3694 = vmul.f32 %v3650, %v3662
          %v3695 = vmul.f32 %v3653, %v3662
          %s3696 = scalar_lea.vmem [#allocation10], %s1752
          %v3697 = vld [vmem:[%s3696] sm:$0x1]
          %v3699 = vlaneseq
          %v3700 = vshrl.u32 %v3699, 7
          %v3701 = vsub.s32 0, %v3700
          %v3702 = vrot.slane %v3697, %v3701
          %v3704 = vadd.f32 %v3664, %v3702
          %v3705 = vadd.f32 %v3665, %v3702
          %v3706 = vadd.f32 %v3666, %v3702
          %v3707 = vadd.f32 %v3667, %v3702
          %v3708 = vadd.f32 %v3668, %v3702
          %v3709 = vadd.f32 %v3669, %v3702
          %v3710 = vadd.f32 %v3670, %v3702
          %v3711 = vadd.f32 %v3671, %v3702
          %v3712 = vadd.f32 %v3672, %v3702
          %v3713 = vadd.f32 %v3673, %v3702
          %v3714 = vadd.f32 %v3674, %v3702
          %v3715 = vadd.f32 %v3675, %v3702
          %v3716 = vadd.f32 %v3676, %v3702
          %v3717 = vadd.f32 %v3677, %v3702
          %v3718 = vadd.f32 %v3678, %v3702
          %v3719 = vadd.f32 %v3679, %v3702
          %v3720 = vadd.f32 %v3680, %v3702
          %v3721 = vadd.f32 %v3681, %v3702
          %v3722 = vadd.f32 %v3682, %v3702
          %v3723 = vadd.f32 %v3683, %v3702
          %v3724 = vadd.f32 %v3684, %v3702
          %v3725 = vadd.f32 %v3685, %v3702
          %v3726 = vadd.f32 %v3686, %v3702
          %v3727 = vadd.f32 %v3687, %v3702
          %v3728 = vadd.f32 %v3688, %v3702
          %v3729 = vadd.f32 %v3689, %v3702
          %v3730 = vadd.f32 %v3690, %v3702
          %v3731 = vadd.f32 %v3691, %v3702
          %v3732 = vadd.f32 %v3692, %v3702
          %v3733 = vadd.f32 %v3693, %v3702
          %v3734 = vadd.f32 %v3694, %v3702
          %v3735 = vadd.f32 %v3695, %v3702
          %v3736 = vmax.f32 %v3704, 0.0
          %v3737 = vmax.f32 %v3705, 0.0
          %v3738 = vmax.f32 %v3706, 0.0
          %v3739 = vmax.f32 %v3707, 0.0
          %v3740 = vmax.f32 %v3708, 0.0
          %v3741 = vmax.f32 %v3709, 0.0
          %v3742 = vmax.f32 %v3710, 0.0
          %v3743 = vmax.f32 %v3711, 0.0
          %v3744 = vmax.f32 %v3712, 0.0
          %v3745 = vmax.f32 %v3713, 0.0
          %v3746 = vmax.f32 %v3714, 0.0
          %v3747 = vmax.f32 %v3715, 0.0
          %v3748 = vmax.f32 %v3716, 0.0
          %v3749 = vmax.f32 %v3717, 0.0
          %v3750 = vmax.f32 %v3718, 0.0
          %v3751 = vmax.f32 %v3719, 0.0
          %v3752 = vmax.f32 %v3720, 0.0
          %v3753 = vmax.f32 %v3721, 0.0
          %v3754 = vmax.f32 %v3722, 0.0
          %v3755 = vmax.f32 %v3723, 0.0
          %v3756 = vmax.f32 %v3724, 0.0
          %v3757 = vmax.f32 %v3725, 0.0
          %v3758 = vmax.f32 %v3726, 0.0
          %v3759 = vmax.f32 %v3727, 0.0
          %v3760 = vmax.f32 %v3728, 0.0
          %v3761 = vmax.f32 %v3729, 0.0
          %v3762 = vmax.f32 %v3730, 0.0
          %v3763 = vmax.f32 %v3731, 0.0
          %v3764 = vmax.f32 %v3732, 0.0
          %v3765 = vmax.f32 %v3733, 0.0
          %v3766 = vmax.f32 %v3734, 0.0
          %v3767 = vmax.f32 %v3735, 0.0
          %v3768 = vpack.c.bf16 %v3737, %v3736
          %v3769 = vpack.c.bf16 %v3739, %v3738
          %v3770 = vpack.c.bf16 %v3741, %v3740
          %v3771 = vpack.c.bf16 %v3743, %v3742
          %v3772 = vpack.c.bf16 %v3745, %v3744
          %v3773 = vpack.c.bf16 %v3747, %v3746
          %v3774 = vpack.c.bf16 %v3749, %v3748
          %v3775 = vpack.c.bf16 %v3751, %v3750
          %v3776 = vpack.c.bf16 %v3753, %v3752
          %v3777 = vpack.c.bf16 %v3755, %v3754
          %v3778 = vpack.c.bf16 %v3757, %v3756
          %v3779 = vpack.c.bf16 %v3759, %v3758
          %v3780 = vpack.c.bf16 %v3761, %v3760
          %v3781 = vpack.c.bf16 %v3763, %v3762
          %v3782 = vpack.c.bf16 %v3765, %v3764
          %v3783 = vpack.c.bf16 %v3767, %v3766
          %s3784 = smul.u32 %s1752, 16
          %s3785 = smul.addr %s3784, 4
          %s3786 = scalar_lea.vmem %s6, %s3785
          %v3787 = vld [vmem:[%s3786] sm:$0xf]
          %v3788 = vld [vmem:[%s3786 + $0x4] sm:$0xf]
          %v3789 = vld [vmem:[%s3786 + $0x8] sm:$0xf]
          %v3790 = vld [vmem:[%s3786 + $0xc] sm:$0xf]
          %v3791 = vld [vmem:[%s3786 + $0x10] sm:$0xf]
          %v3792 = vld [vmem:[%s3786 + $0x14] sm:$0xf]
          %v3793 = vld [vmem:[%s3786 + $0x18] sm:$0xf]
          %v3794 = vld [vmem:[%s3786 + $0x1c] sm:$0xf]
          %v3795 = vld [vmem:[%s3786 + $0x20] sm:$0xf]
          %v3796 = vld [vmem:[%s3786 + $0x24] sm:$0xf]
          %v3797 = vld [vmem:[%s3786 + $0x28] sm:$0xf]
          %v3798 = vld [vmem:[%s3786 + $0x2c] sm:$0xf]
          %v3799 = vld [vmem:[%s3786 + $0x30] sm:$0xf]
          %v3800 = vld [vmem:[%s3786 + $0x34] sm:$0xf]
          %v3801 = vld [vmem:[%s3786 + $0x38] sm:$0xf]
          %v3802 = vld [vmem:[%s3786 + $0x3c] sm:$0xf]
          %s3803 = scalar_lea.vmem [#allocation11], %s1752
          %v3804 = vld [vmem:[%s3803] sm:$0x1]
          %v3806 = vlaneseq
          %v3807 = vshrl.u32 %v3806, 7
          %v3808 = vsub.s32 0, %v3807
          %v3809 = vrot.slane %v3804, %v3808
          %v3827 = vunpack.c.l.b16 %v3787
          %v3828 = vunpack.c.l.b16 %v3788
          %v3829 = vunpack.c.l.b16 %v3789
          %v3830 = vunpack.c.l.b16 %v3790
          %v3831 = vunpack.c.l.b16 %v3791
          %v3832 = vunpack.c.l.b16 %v3792
          %v3833 = vunpack.c.l.b16 %v3793
          %v3834 = vunpack.c.l.b16 %v3794
          %v3835 = vunpack.c.l.b16 %v3795
          %v3836 = vunpack.c.l.b16 %v3796
          %v3837 = vunpack.c.l.b16 %v3797
          %v3838 = vunpack.c.l.b16 %v3798
          %v3839 = vunpack.c.l.b16 %v3799
          %v3840 = vunpack.c.l.b16 %v3800
          %v3841 = vunpack.c.l.b16 %v3801
          %v3842 = vunpack.c.l.b16 %v3802
          %v3843 = vpack.c.b16 %v3828, %v3827
          %v3844 = vpack.c.b16 %v3830, %v3829
          %v3845 = vpack.c.b16 %v3832, %v3831
          %v3846 = vpack.c.b16 %v3834, %v3833
          %v3847 = vpack.c.b16 %v3836, %v3835
          %v3848 = vpack.c.b16 %v3838, %v3837
          %v3849 = vpack.c.b16 %v3840, %v3839
          %v3850 = vpack.c.b16 %v3842, %v3841
          %3859 = vmatprep.subr.bf16.mxu0 0
          %3860 = vmatpush1.bf16.msra.mxu0 %v3850
          %3861 = vmatprep.subr.bf16.mxu0 0
          %3862 = vmatpush1.bf16.msra.mxu0 %v3849
          %3863 = vmatprep.subr.bf16.mxu0 0
          %3864 = vmatpush1.bf16.msra.mxu0 %v3848
          %3865 = vmatprep.subr.bf16.mxu0 0
          %3866 = vmatpush1.bf16.msra.mxu0 %v3847
          %3867 = vmatprep.subr.bf16.mxu0 0
          %3868 = vmatpush1.bf16.msra.mxu0 %v3846
          %3869 = vmatprep.subr.bf16.mxu0 0
          %3870 = vmatpush1.bf16.msra.mxu0 %v3845
          %3871 = vmatprep.subr.bf16.mxu0 0
          %3872 = vmatpush1.bf16.msra.mxu0 %v3844
          %3873 = vmatprep.subr.bf16.mxu0 0
          %3874 = vmatpush1.bf16.msra.mxu0 %v3843
          %3875 = vmatprep.subr.bf16.mxu0 0
          %3876 = vmatpush2.bf16.msra.mxu0 0
          %3877 = vmatprep.subr.bf16.mxu0 0
          %3878 = vmatpush2.bf16.msra.mxu0 0
          %3879 = vmatprep.subr.bf16.mxu0 0
          %3880 = vmatpush2.bf16.msra.mxu0 0
          %3881 = vmatprep.subr.bf16.mxu0 0
          %3882 = vmatpush2.bf16.msra.mxu0 0
          %3883 = vmatprep.subr.bf16.mxu0 0
          %3884 = vmatpush2.bf16.msra.mxu0 0
          %3885 = vmatprep.subr.bf16.mxu0 0
          %3886 = vmatpush2.bf16.msra.mxu0 0
          %3887 = vmatprep.subr.bf16.mxu0 0
          %3888 = vmatpush2.bf16.msra.mxu0 0
          %3889 = vmatprep.subr.bf16.mxu0 0
          %3890 = vmatpush2.bf16.msra.mxu0 0
          %3891 = vmatprep.mubr.bf16.mxu0 0
          %3892 = vmatmul.mubr.bf16.gmra.mxu0 %v3768
          %v3893 = vpop.f32.mrf.mxu0
          %v3894 = vadd.f32 %v3809, %v3893
          %v3895 = vpop.f32.mrf.mxu0
          %v3896 = vpop.f32.mrf.mxu0
          %v3897 = vadd.f32 %v3809, %v3896
          %v3898 = vpop.f32.mrf.mxu0
          %3899 = vmatprep.mubr.bf16.mxu0 0
          %3900 = vmatmul.mubr.bf16.gmra.mxu0 %v3769
          %v3901 = vpop.f32.mrf.mxu0
          %v3902 = vadd.f32 %v3809, %v3901
          %v3903 = vpop.f32.mrf.mxu0
          %v3904 = vpop.f32.mrf.mxu0
          %v3905 = vadd.f32 %v3809, %v3904
          %v3906 = vpop.f32.mrf.mxu0
          %3907 = vmatprep.mubr.bf16.mxu0 0
          %3908 = vmatmul.mubr.bf16.gmra.mxu0 %v3770
          %v3909 = vpop.f32.mrf.mxu0
          %v3910 = vadd.f32 %v3809, %v3909
          %v3911 = vpop.f32.mrf.mxu0
          %v3912 = vpop.f32.mrf.mxu0
          %v3913 = vadd.f32 %v3809, %v3912
          %v3914 = vpop.f32.mrf.mxu0
          %3915 = vmatprep.mubr.bf16.mxu0 0
          %3916 = vmatmul.mubr.bf16.gmra.mxu0 %v3771
          %v3917 = vpop.f32.mrf.mxu0
          %v3918 = vadd.f32 %v3809, %v3917
          %v3919 = vpop.f32.mrf.mxu0
          %v3920 = vpop.f32.mrf.mxu0
          %v3921 = vadd.f32 %v3809, %v3920
          %v3922 = vpop.f32.mrf.mxu0
          %3923 = vmatprep.mubr.bf16.mxu0 0
          %3924 = vmatmul.mubr.bf16.gmra.mxu0 %v3772
          %v3925 = vpop.f32.mrf.mxu0
          %v3926 = vadd.f32 %v3809, %v3925
          %v3927 = vpop.f32.mrf.mxu0
          %v3928 = vpop.f32.mrf.mxu0
          %v3929 = vadd.f32 %v3809, %v3928
          %v3930 = vpop.f32.mrf.mxu0
          %3931 = vmatprep.mubr.bf16.mxu0 0
          %3932 = vmatmul.mubr.bf16.gmra.mxu0 %v3773
          %v3933 = vpop.f32.mrf.mxu0
          %v3934 = vadd.f32 %v3809, %v3933
          %v3935 = vpop.f32.mrf.mxu0
          %v3936 = vpop.f32.mrf.mxu0
          %v3937 = vadd.f32 %v3809, %v3936
          %v3938 = vpop.f32.mrf.mxu0
          %3939 = vmatprep.mubr.bf16.mxu0 0
          %3940 = vmatmul.mubr.bf16.gmra.mxu0 %v3774
          %v3941 = vpop.f32.mrf.mxu0
          %v3942 = vadd.f32 %v3809, %v3941
          %v3943 = vpop.f32.mrf.mxu0
          %v3944 = vpop.f32.mrf.mxu0
          %v3945 = vadd.f32 %v3809, %v3944
          %v3946 = vpop.f32.mrf.mxu0
          %3947 = vmatprep.mubr.bf16.mxu0 0
          %3948 = vmatmul.mubr.bf16.gmra.mxu0 %v3775
          %v3949 = vpop.f32.mrf.mxu0
          %v3950 = vadd.f32 %v3809, %v3949
          %v3951 = vpop.f32.mrf.mxu0
          %v3952 = vpop.f32.mrf.mxu0
          %v3953 = vadd.f32 %v3809, %v3952
          %v3954 = vpop.f32.mrf.mxu0
          %3955 = vmatprep.mubr.bf16.mxu0 0
          %3956 = vmatmul.mubr.bf16.gmra.mxu0 %v3776
          %v3957 = vpop.f32.mrf.mxu0
          %v3958 = vadd.f32 %v3809, %v3957
          %v3959 = vpop.f32.mrf.mxu0
          %v3960 = vpop.f32.mrf.mxu0
          %v3961 = vadd.f32 %v3809, %v3960
          %v3962 = vpop.f32.mrf.mxu0
          %3963 = vmatprep.mubr.bf16.mxu0 0
          %3964 = vmatmul.mubr.bf16.gmra.mxu0 %v3777
          %v3965 = vpop.f32.mrf.mxu0
          %v3966 = vadd.f32 %v3809, %v3965
          %v3967 = vpop.f32.mrf.mxu0
          %v3968 = vpop.f32.mrf.mxu0
          %v3969 = vadd.f32 %v3809, %v3968
          %v3970 = vpop.f32.mrf.mxu0
          %3971 = vmatprep.mubr.bf16.mxu0 0
          %3972 = vmatmul.mubr.bf16.gmra.mxu0 %v3778
          %v3973 = vpop.f32.mrf.mxu0
          %v3974 = vadd.f32 %v3809, %v3973
          %v3975 = vpop.f32.mrf.mxu0
          %v3976 = vpop.f32.mrf.mxu0
          %v3977 = vadd.f32 %v3809, %v3976
          %v3978 = vpop.f32.mrf.mxu0
          %3979 = vmatprep.mubr.bf16.mxu0 0
          %3980 = vmatmul.mubr.bf16.gmra.mxu0 %v3779
          %v3981 = vpop.f32.mrf.mxu0
          %v3982 = vadd.f32 %v3809, %v3981
          %v3983 = vpop.f32.mrf.mxu0
          %v3984 = vpop.f32.mrf.mxu0
          %v3985 = vadd.f32 %v3809, %v3984
          %v3986 = vpop.f32.mrf.mxu0
          %3987 = vmatprep.mubr.bf16.mxu0 0
          %3988 = vmatmul.mubr.bf16.gmra.mxu0 %v3780
          %v3989 = vpop.f32.mrf.mxu0
          %v3990 = vadd.f32 %v3809, %v3989
          %v3991 = vpop.f32.mrf.mxu0
          %v3992 = vpop.f32.mrf.mxu0
          %v3993 = vadd.f32 %v3809, %v3992
          %v3994 = vpop.f32.mrf.mxu0
          %3995 = vmatprep.mubr.bf16.mxu0 0
          %3996 = vmatmul.mubr.bf16.gmra.mxu0 %v3781
          %v3997 = vpop.f32.mrf.mxu0
          %v3998 = vadd.f32 %v3809, %v3997
          %v3999 = vpop.f32.mrf.mxu0
          %v4000 = vpop.f32.mrf.mxu0
          %v4001 = vadd.f32 %v3809, %v4000
          %v4002 = vpop.f32.mrf.mxu0
          %4003 = vmatprep.mubr.bf16.mxu0 0
          %4004 = vmatmul.mubr.bf16.gmra.mxu0 %v3782
          %v4005 = vpop.f32.mrf.mxu0
          %v4006 = vadd.f32 %v3809, %v4005
          %v4007 = vpop.f32.mrf.mxu0
          %v4008 = vpop.f32.mrf.mxu0
          %v4009 = vadd.f32 %v3809, %v4008
          %v4010 = vpop.f32.mrf.mxu0
          %4011 = vmatprep.mubr.bf16.mxu0 0
          %4012 = vmatmul.mubr.bf16.gmra.mxu0 %v3783
          %v4013 = vpop.f32.mrf.mxu0
          %v4014 = vadd.f32 %v3809, %v4013
          %v4015 = vpop.f32.mrf.mxu0
          %v4016 = vpop.f32.mrf.mxu0
          %v4017 = vadd.f32 %v3809, %v4016
          %v4018 = vpop.f32.mrf.mxu0
          %4019 = vdwg.mxu0
          %v4020 = vmax.f32 %v3894, 0.0
          %v4021 = vmax.f32 %v3897, 0.0
          %v4022 = vmax.f32 %v3902, 0.0
          %v4023 = vmax.f32 %v3905, 0.0
          %v4024 = vmax.f32 %v3910, 0.0
          %v4025 = vmax.f32 %v3913, 0.0
          %v4026 = vmax.f32 %v3918, 0.0
          %v4027 = vmax.f32 %v3921, 0.0
          %v4028 = vmax.f32 %v3926, 0.0
          %v4029 = vmax.f32 %v3929, 0.0
          %v4030 = vmax.f32 %v3934, 0.0
          %v4031 = vmax.f32 %v3937, 0.0
          %v4032 = vmax.f32 %v3942, 0.0
          %v4033 = vmax.f32 %v3945, 0.0
          %v4034 = vmax.f32 %v3950, 0.0
          %v4035 = vmax.f32 %v3953, 0.0
          %v4036 = vmax.f32 %v3958, 0.0
          %v4037 = vmax.f32 %v3961, 0.0
          %v4038 = vmax.f32 %v3966, 0.0
          %v4039 = vmax.f32 %v3969, 0.0
          %v4040 = vmax.f32 %v3974, 0.0
          %v4041 = vmax.f32 %v3977, 0.0
          %v4042 = vmax.f32 %v3982, 0.0
          %v4043 = vmax.f32 %v3985, 0.0
          %v4044 = vmax.f32 %v3990, 0.0
          %v4045 = vmax.f32 %v3993, 0.0
          %v4046 = vmax.f32 %v3998, 0.0
          %v4047 = vmax.f32 %v4001, 0.0
          %v4048 = vmax.f32 %v4006, 0.0
          %v4049 = vmax.f32 %v4009, 0.0
          %v4050 = vmax.f32 %v4014, 0.0
          %v4051 = vmax.f32 %v4017, 0.0
          %4052 = vst.msk [vmem:[#allocation2 + $0x20] sm:$0xff] %vm447, %v4020
          %4053 = vst.msk [vmem:[#allocation2 + $0x28] sm:$0xff] %vm447, %v4021
          %4054 = vst.msk [vmem:[#allocation2 + $0x30] sm:$0xff] %vm447, %v4022
          %4055 = vst.msk [vmem:[#allocation2 + $0x38] sm:$0xff] %vm447, %v4023
          %4056 = vst.msk [vmem:[#allocation2 + $0x40] sm:$0xff] %vm447, %v4024
          %4057 = vst.msk [vmem:[#allocation2 + $0x48] sm:$0xff] %vm447, %v4025
          %4058 = vst.msk [vmem:[#allocation2 + $0x50] sm:$0xff] %vm447, %v4026
          %4059 = vst.msk [vmem:[#allocation2 + $0x58] sm:$0xff] %vm447, %v4027
          %4060 = vst.msk [vmem:[#allocation2 + $0x60] sm:$0xff] %vm447, %v4028
          %4061 = vst.msk [vmem:[#allocation2 + $0x68] sm:$0xff] %vm447, %v4029
          %4062 = vst.msk [vmem:[#allocation2 + $0x70] sm:$0xff] %vm447, %v4030
          %4063 = vst.msk [vmem:[#allocation2 + $0x78] sm:$0xff] %vm447, %v4031
          %4064 = vst.msk [vmem:[#allocation2 + $0x80] sm:$0xff] %vm447, %v4032
          %4065 = vst.msk [vmem:[#allocation2 + $0x88] sm:$0xff] %vm447, %v4033
          %4066 = vst.msk [vmem:[#allocation2 + $0x90] sm:$0xff] %vm447, %v4034
          %4067 = vst.msk [vmem:[#allocation2 + $0x98] sm:$0xff] %vm447, %v4035
          %4068 = vst.msk [vmem:[#allocation2 + $0xa0] sm:$0xff] %vm447, %v4036
          %4069 = vst.msk [vmem:[#allocation2 + $0xa8] sm:$0xff] %vm447, %v4037
          %4070 = vst.msk [vmem:[#allocation2 + $0xb0] sm:$0xff] %vm447, %v4038
          %4071 = vst.msk [vmem:[#allocation2 + $0xb8] sm:$0xff] %vm447, %v4039
          %4072 = vst.msk [vmem:[#allocation2 + $0xc0] sm:$0xff] %vm447, %v4040
          %4073 = vst.msk [vmem:[#allocation2 + $0xc8] sm:$0xff] %vm447, %v4041
          %4074 = vst.msk [vmem:[#allocation2 + $0xd0] sm:$0xff] %vm447, %v4042
          %4075 = vst.msk [vmem:[#allocation2 + $0xd8] sm:$0xff] %vm447, %v4043
          %4076 = vst.msk [vmem:[#allocation2 + $0xe0] sm:$0xff] %vm447, %v4044
          %4077 = vst.msk [vmem:[#allocation2 + $0xe8] sm:$0xff] %vm447, %v4045
          %4078 = vst.msk [vmem:[#allocation2 + $0xf0] sm:$0xff] %vm447, %v4046
          %4079 = vst.msk [vmem:[#allocation2 + $0xf8] sm:$0xff] %vm447, %v4047
          %4080 = vst.msk [vmem:[#allocation2 + $0x100] sm:$0xff] %vm447, %v4048
          %4081 = vst.msk [vmem:[#allocation2 + $0x108] sm:$0xff] %vm447, %v4049
          %4082 = vst.msk [vmem:[#allocation2 + $0x110] sm:$0xff] %vm447, %v4050
          %4083 = vst.msk [vmem:[#allocation2 + $0x118] sm:$0xff] %vm447, %v4051
        $region89: #{cnn10_forward.1} parent=59 // loop_footer
          %s1756 = sadd.s32 1, %s1752
        $region90: #{cnn10_forward.1} parent=59 // loop_footer_branch
          %1751 = sbr.rel target = $region86
        $region91: #{cnn10_forward.1} parent=59 // loop_exit
          _
        %v4084 = vld [vmem:[#allocation2 + $0x20] sm:$0xff]
        %v4085 = vld [vmem:[#allocation2 + $0x28] sm:$0xff]
        %v4086 = vld [vmem:[#allocation2 + $0x30] sm:$0xff]
        %v4087 = vld [vmem:[#allocation2 + $0x38] sm:$0xff]
        %v4088 = vld [vmem:[#allocation2 + $0x40] sm:$0xff]
        %v4089 = vld [vmem:[#allocation2 + $0x48] sm:$0xff]
        %v4090 = vld [vmem:[#allocation2 + $0x50] sm:$0xff]
        %v4091 = vld [vmem:[#allocation2 + $0x58] sm:$0xff]
        %v4092 = vld [vmem:[#allocation2 + $0x60] sm:$0xff]
        %v4093 = vld [vmem:[#allocation2 + $0x68] sm:$0xff]
        %v4094 = vld [vmem:[#allocation2 + $0x70] sm:$0xff]
        %v4095 = vld [vmem:[#allocation2 + $0x78] sm:$0xff]
        %v4096 = vld [vmem:[#allocation2 + $0x80] sm:$0xff]
        %v4097 = vld [vmem:[#allocation2 + $0x88] sm:$0xff]
        %v4098 = vld [vmem:[#allocation2 + $0x90] sm:$0xff]
        %v4099 = vld [vmem:[#allocation2 + $0x98] sm:$0xff]
        %v4100 = vld [vmem:[#allocation2 + $0xa0] sm:$0xff]
        %v4101 = vld [vmem:[#allocation2 + $0xa8] sm:$0xff]
        %v4102 = vld [vmem:[#allocation2 + $0xb0] sm:$0xff]
        %v4103 = vld [vmem:[#allocation2 + $0xb8] sm:$0xff]
        %v4104 = vld [vmem:[#allocation2 + $0xc0] sm:$0xff]
        %v4105 = vld [vmem:[#allocation2 + $0xc8] sm:$0xff]
        %v4106 = vld [vmem:[#allocation2 + $0xd0] sm:$0xff]
        %v4107 = vld [vmem:[#allocation2 + $0xd8] sm:$0xff]
        %v4108 = vld [vmem:[#allocation2 + $0xe0] sm:$0xff]
        %v4109 = vld [vmem:[#allocation2 + $0xe8] sm:$0xff]
        %v4110 = vld [vmem:[#allocation2 + $0xf0] sm:$0xff]
        %v4111 = vld [vmem:[#allocation2 + $0xf8] sm:$0xff]
        %v4112 = vld [vmem:[#allocation2 + $0x100] sm:$0xff]
        %v4113 = vld [vmem:[#allocation2 + $0x108] sm:$0xff]
        %v4114 = vld [vmem:[#allocation2 + $0x110] sm:$0xff]
        %v4115 = vld [vmem:[#allocation2 + $0x118] sm:$0xff]
        %v4116 = vpack.c.bf16 %v4085, %v4084
        %v4117 = vpack.c.bf16 %v4087, %v4086
        %v4118 = vpack.c.bf16 %v4089, %v4088
        %v4119 = vpack.c.bf16 %v4091, %v4090
        %v4120 = vpack.c.bf16 %v4093, %v4092
        %v4121 = vpack.c.bf16 %v4095, %v4094
        %v4122 = vpack.c.bf16 %v4097, %v4096
        %v4123 = vpack.c.bf16 %v4099, %v4098
        %v4124 = vpack.c.bf16 %v4101, %v4100
        %v4125 = vpack.c.bf16 %v4103, %v4102
        %v4126 = vpack.c.bf16 %v4105, %v4104
        %v4127 = vpack.c.bf16 %v4107, %v4106
        %v4128 = vpack.c.bf16 %v4109, %v4108
        %v4129 = vpack.c.bf16 %v4111, %v4110
        %v4130 = vpack.c.bf16 %v4113, %v4112
        %v4131 = vpack.c.bf16 %v4115, %v4114
        %v4132 = vld [vmem:[%s8] sm:$0xf]
        %v4133 = vld [vmem:[%s9] sm:$0xff]
        %4135 = vset.pattern.permute.xlu0 0
        %4136 = vperm.xlu0 %4135, %v4133
        %v4137 = vpop.permute.xlu0 %4136
        %v4140 = vsel %vm447, %v4132, 0
        %v4143 = vsel %vm447, %v4116, 0
        %v4146 = vsel %vm447, %v4117, 0
        %v4149 = vsel %vm447, %v4118, 0
        %v4152 = vsel %vm447, %v4119, 0
        %v4155 = vsel %vm447, %v4120, 0
        %v4158 = vsel %vm447, %v4121, 0
        %v4161 = vsel %vm447, %v4122, 0
        %v4164 = vsel %vm447, %v4123, 0
        %v4167 = vsel %vm447, %v4124, 0
        %v4170 = vsel %vm447, %v4125, 0
        %v4173 = vsel %vm447, %v4126, 0
        %v4176 = vsel %vm447, %v4127, 0
        %v4179 = vsel %vm447, %v4128, 0
        %v4182 = vsel %vm447, %v4129, 0
        %v4185 = vsel %vm447, %v4130, 0
        %v4188 = vsel %vm447, %v4131, 0
        %4190 = vmatprep.subr.bf16.mxu0 0
        %4191 = vmatpush1.bf16.xpose.msra.mxu0 %v4164
        %4192 = vmatprep.subr.bf16.mxu0 0
        %4193 = vmatpush1.bf16.xpose.msra.mxu0 %v4161
        %4194 = vmatprep.subr.bf16.mxu0 0
        %4195 = vmatpush1.bf16.xpose.msra.mxu0 %v4158
        %4196 = vmatprep.subr.bf16.mxu0 0
        %4197 = vmatpush1.bf16.xpose.msra.mxu0 %v4155
        %4198 = vmatprep.subr.bf16.mxu0 0
        %4199 = vmatpush1.bf16.xpose.msra.mxu0 %v4152
        %4200 = vmatprep.subr.bf16.mxu0 0
        %4201 = vmatpush1.bf16.xpose.msra.mxu0 %v4149
        %4202 = vmatprep.subr.bf16.mxu0 0
        %4203 = vmatpush1.bf16.xpose.msra.mxu0 %v4146
        %4204 = vmatprep.subr.bf16.mxu0 0
        %4205 = vmatpush1.bf16.xpose.msra.mxu0 %v4143
        %4206 = vmatprep.subr.bf16.mxu0 0
        %4207 = vmatpush2.bf16.xpose.msra.mxu0 %v4188
        %4208 = vmatprep.subr.bf16.mxu0 0
        %4209 = vmatpush2.bf16.xpose.msra.mxu0 %v4185
        %4210 = vmatprep.subr.bf16.mxu0 0
        %4211 = vmatpush2.bf16.xpose.msra.mxu0 %v4182
        %4212 = vmatprep.subr.bf16.mxu0 0
        %4213 = vmatpush2.bf16.xpose.msra.mxu0 %v4179
        %4214 = vmatprep.subr.bf16.mxu0 0
        %4215 = vmatpush2.bf16.xpose.msra.mxu0 %v4176
        %4216 = vmatprep.subr.bf16.mxu0 0
        %4217 = vmatpush2.bf16.xpose.msra.mxu0 %v4173
        %4218 = vmatprep.subr.bf16.mxu0 0
        %4219 = vmatpush2.bf16.xpose.msra.mxu0 %v4170
        %4220 = vmatprep.subr.bf16.mxu0 0
        %4221 = vmatpush2.bf16.xpose.msra.mxu0 %v4167
        %4222 = vmatprep.mubr.bf16.mxu0 0
        %4223 = vmatmul.mubr.bf16.gmra.mxu0 %v4140
        %v4224 = vpop.f32.mrf.mxu0
        %v4225 = vadd.f32 %v4137, %v4224
        %v4226 = vpop.f32.mrf.mxu0
        %v4227 = vadd.f32 %v4137, %v4226
        %v4228 = vpop.f32.mrf.mxu0
        %v4229 = vpop.f32.mrf.mxu0
        %4230 = vdwg.mxu0
        %v4231 = vmax.f32 %v4225, 0.0
        %v4232 = vmax.f32 %v4227, 0.0
        %4233 = vst [vmem:[%s445] sm:$0xff] %v4231
        %4234 = vst [vmem:[%s445 + $0x8] sm:$0xff] %v4232
        %p4235 = scmp.lt.s32.totalorder %s25, 1
        %s4236 = scalar_select %p4235, %s25, 1
        %s4237 = smul.addr %s4236, 2
        %s4238 = smul.addr %s4237, 8
        %s4239 = scalar_lea.vmem %s10, %s4238
        // Predicated region
        $region92: #{cnn10_forward.1} parent=59 // pred_check
          %p4240 = pneg %p258
        $region93: #{cnn10_forward.1} parent=59 // pred_check_branch
          %4242 = sbr.rel (%p4240) target = $region95
        $region94: #{cnn10_forward.1} parent=59 // pred_region
          _
        $region95: #{cnn10_forward.1} parent=59 // pred_fallthru
          _
      $region60: #{cnn10_forward.1} parent=5 // pred_fallthru
        _
      %p4243 = scmp.le.s32.totalorder 2, %s20
      // Predicated region
      $region96: #{cnn10_forward.1} parent=5 // pred_check
        %p4244 = pneg %p4243
      $region97: #{cnn10_forward.1} parent=5 // pred_check_branch
        %4246 = sbr.rel (%p4244) target = $region99
      $region98: #{cnn10_forward.1} parent=5 // pred_region
        %s4247 = ssub.s32 %s20, 2
        // Predicated region
        $region100: #{cnn10_forward.1} parent=98 // pred_check
          %p4248 = pneg %p264
        $region101: #{cnn10_forward.1} parent=98 // pred_check_branch
          %4250 = sbr.rel (%p4248) target = $region103
        $region102: #{cnn10_forward.1} parent=98 // pred_region
          %p4251 = scmp.lt.s32.totalorder %s26, 1
          %s4252 = scalar_select %p4251, %s26, 1
          %s4253 = smul.addr %s4252, 2
          %s4254 = smul.addr %s4253, 8
          %s4255 = scalar_lea.vmem %s10, %s4254
        $region103: #{cnn10_forward.1} parent=98 // pred_fallthru
          _
      $region99: #{cnn10_forward.1} parent=5 // pred_fallthru
        _
    $region6: #{cnn10_forward.1} parent=1 // loop_footer
      %s24 = sadd.s32 1, %s20
    $region7: #{cnn10_forward.1} parent=1 // loop_footer_branch
      %19 = sbr.rel target = $region3
    $region8: #{cnn10_forward.1} parent=1 // loop_exit
      _
    %4256 = vsyncpa [#allocation4], 1
    %s4257 = scalar_lea.sflag [#allocation4], 1
    %4258 = vsyncpa %s4257, 1
    %4259 = vsyncpa [#allocation6], 1
    %4260 = vsyncpa [#allocation9], 1
    %4261 = vsyncpa [#allocation12], 1

</llo_original>
